<compile_context>
chip_gen: v5e
topology: v5e:2x2
jax: 0.10.0
libtpu: 0.0.40
codegen_flags: <defaults>
</compile_context>

<pallas_src>
import functools

import jax
import jax.numpy as jnp
from jax.experimental import pallas as pl
from jax.experimental.pallas import tpu as pltpu

HIDDEN = 256
FLAT = 32 * 9 * 9          # 2592, fixed by the module (requires 84x84 inputs)
K_PAD = 2688               # 21*128: lane-aligned pad of FLAT (3.6% waste vs 18.5% at 3072)
TK = 896                   # 7*128 ; K_PAD / TK = 3 grid steps for the W_ih contraction
HEAD_PAD = 128             # actor + critic heads packed into one 128-lane output

_COMPILER_PARAMS = pltpu.CompilerParams(
    dimension_semantics=("arbitrary",),
    vmem_limit_bytes=32 * 1024 * 1024,
)


def _round_up(n, m):
    return (n + m - 1) // m * m


# ---------------------------------------------------------------------------
# Pallas kernels
# ---------------------------------------------------------------------------
def _conv_matmul_relu_kernel(w_ref, p_ref, b_ref, o_ref):
    # [O, K] @ [K, Mpad] -> [O, Mpad]; lane dim = Mpad (multiple of 128) -> unmasked stores.
    acc = jnp.dot(w_ref[...], p_ref[...], preferred_element_type=jnp.float32)
    o_ref[...] = jnp.maximum(acc + b_ref[...], 0.0).astype(o_ref.dtype)


def conv_matmul_relu(w, patches, b):
    """w: [O, K] bf16, patches: [K, Mpad] bf16, b: [O, 1] f32 -> bf16 [O, Mpad]."""
    O, K = w.shape
    _, M = patches.shape
    return pl.pallas_call(
        _conv_matmul_relu_kernel,
        out_shape=jax.ShapeDtypeStruct((O, M), jnp.bfloat16),
        grid=(1,),
        in_specs=[pl.BlockSpec((O, K), lambda i: (0, 0)),
                  pl.BlockSpec((K, M), lambda i: (0, 0)),
                  pl.BlockSpec((O, 1), lambda i: (0, 0))],
        out_specs=pl.BlockSpec((O, M), lambda i: (0, 0)),
        compiler_params=_COMPILER_PARAMS,
    )(w, patches, b)


def _lstm_heads_kernel(x_ref, wih_ref, h_ref, c_ref, whh_ref, bias_ref,
                       hw_ref, hb_ref,
                       heads_ref, h_out_ref, c_out_ref, acc_ref):
    k = pl.program_id(0)

    @pl.when(k == 0)
    def _():
        # Fold h @ W_hh^T + (b_ih + b_hh) into the accumulator init: this small
        # matmul then overlaps the W_ih DMA of the remaining K-tiles instead of
        # sitting in the exposed epilogue of the last step.
        acc_ref[...] = bias_ref[...] + jnp.dot(
            h_ref[...].astype(jnp.bfloat16), whh_ref[...],
            preferred_element_type=jnp.float32)

    # K-tiled x @ W_ih^T accumulation (bf16 inputs, f32 accumulator).
    acc_ref[...] += jnp.dot(x_ref[...], wih_ref[...],
                            preferred_element_type=jnp.float32)

    @pl.when(k == pl.num_programs(0) - 1)
    def _():
        H = h_ref.shape[1]
        # gates = x @ W_ih^T + h @ W_hh^T + (b_ih + b_hh); PyTorch order i, f, g, o
        gates = acc_ref[...]
        i_g = jax.nn.sigmoid(gates[:, 0 * H:1 * H])
        f_g = jax.nn.sigmoid(gates[:, 1 * H:2 * H])
        g_g = jnp.tanh(gates[:, 2 * H:3 * H])
        o_g = jax.nn.sigmoid(gates[:, 3 * H:4 * H])
        c_new = f_g * c_ref[...] + i_g * g_g
        h_new = o_g * jnp.tanh(c_new)
        c_out_ref[...] = c_new
        h_out_ref[...] = h_new
        # Fused actor+critic heads: one lane-dense [B, 128] matmul.
        heads_ref[...] = (jnp.dot(h_new.astype(jnp.bfloat16), hw_ref[...],
                                  preferred_element_type=jnp.float32)
                          + hb_ref[...])


def lstm_and_heads(x_pad, hx, cx, wih_t, whh_t, bias, heads_w, heads_b):
    B, Kp = x_pad.shape
    H = hx.shape[1]
    n_k = Kp // TK

    def full(shape):
        return pl.BlockSpec(shape, lambda k: (0,) * len(shape))

    return pl.pallas_call(
        _lstm_heads_kernel,
        out_shape=(jax.ShapeDtypeStruct((B, HEAD_PAD), jnp.float32),
                   jax.ShapeDtypeStruct((B, H), jnp.float32),
                   jax.ShapeDtypeStruct((B, H), jnp.float32)),
        grid=(n_k,),
        in_specs=[pl.BlockSpec((B, TK), lambda k: (0, k)),        # x chunk
                  pl.BlockSpec((TK, 4 * H), lambda k: (k, 0)),    # W_ih^T chunk
                  full((B, H)), full((B, H)),                     # hx, cx
                  full((H, 4 * H)), full((1, 4 * H)),             # W_hh^T, bias
                  full((H, HEAD_PAD)), full((1, HEAD_PAD))],      # heads W, b
        out_specs=(full((B, HEAD_PAD)), full((B, H)), full((B, H))),
        scratch_shapes=[pltpu.VMEM((B, 4 * H), jnp.float32)],
        compiler_params=_COMPILER_PARAMS,
    )(x_pad, wih_t, hx, cx, whh_t, bias, heads_w, heads_b)


# ---------------------------------------------------------------------------
# Plain-JAX glue: strided-slice im2col (no gather), layout kept as [C, B, H, W]
# ---------------------------------------------------------------------------
def _im2col_chw(x, kh, kw, stride):
    """x: [C, B, H, W] -> ([C*kh*kw, B*oh*ow], oh, ow).
    Rows ordered (c, kh, kw); columns ordered (b, oh, ow)."""
    C, B, H, W = x.shape
    oh = (H - kh) // stride + 1
    ow = (W - kw) // stride + 1
    cols = []
    for i in range(kh):
        for j in range(kw):
            sl = jax.lax.slice(
                x, (0, 0, i, j),
                (C, B, i + (oh - 1) * stride + 1, j + (ow - 1) * stride + 1),
                (1, 1, stride, stride))            # [C, B, oh, ow]
            cols.append(sl)
    p = jnp.stack(cols, axis=1)                    # [C, kh*kw, B, oh, ow]
    return p.reshape(C * kh * kw, B * oh * ow), oh, ow


def conv2d_relu_t(x_cbhw, w2d, b2d, kh, kw, stride):
    """x_cbhw: [C, B, H, W] bf16; w2d: [O, C*kh*kw] bf16; b2d: [O, 1] f32.
    Returns relu(conv) as [O, B, oh, ow] bf16."""
    _, B, _, _ = x_cbhw.shape
    patches, oh, ow = _im2col_chw(x_cbhw, kh, kw, stride)
    M = B * oh * ow
    Mp = _round_up(M, 128)
    patches = jnp.pad(patches, ((0, 0), (0, Mp - M))).astype(jnp.bfloat16)
    out = conv_matmul_relu(w2d, patches, b2d)                    # [O, Mp]
    return out[:, :M].reshape(w2d.shape[0], B, oh, ow)


@functools.partial(jax.jit, static_argnames=("num_actions",))
def mnih2016_forward(params, x, hx, cx, *, num_actions):
    B = x.shape[0]
    # NCHW -> [C, B, H, W]: the long batch*spatial axis becomes the lane dim.
    x_cbhw = jnp.transpose(x, (1, 0, 2, 3)).astype(jnp.bfloat16)
    y1 = conv2d_relu_t(x_cbhw, params["conv1_w"], params["conv1_b"], 8, 8, 4)  # [16,B,20,20]
    y2 = conv2d_relu_t(y1, params["conv2_w"], params["conv2_b"], 4, 4, 2)      # [32,B,9,9]
    # PyTorch's x.view(B, -1) on NCHW: per-batch flatten order is (c, h, w).
    x_flat = jnp.transpose(y2.reshape(32, B, 81), (1, 0, 2)).reshape(B, FLAT)
    x_pad = jnp.pad(x_flat, ((0, 0), (0, K_PAD - FLAT)))
    heads, h_new, c_new = lstm_and_heads(
        x_pad, hx, cx, params["lstm_wih_t"], params["lstm_whh_t"],
        params["lstm_bias"], params["heads_w"], params["heads_b"])
    actor = heads[:, :num_actions]
    critic = heads[:, num_actions:num_actions + 1]
    return actor, critic, h_new, c_new


# ---------------------------------------------------------------------------
# Parameter init (PyTorch layouts) + one-time packing into kernel layouts
# ---------------------------------------------------------------------------
def xavier_uniform(key, shape, fan_in, fan_out):
    bound = (6.0 / (fan_in + fan_out)) ** 0.5
    return jax.random.uniform(key, shape, jnp.float32, -bound, bound)


def init_torch_params(key, num_inputs, num_actions, hidden=HIDDEN):
    keys = jax.random.split(key, 6)
    lstm_bound = 1.0 / (hidden ** 0.5)
    return {
        # conv/linear: xavier_uniform weights, zero biases (matches _initialize_weights)
        "conv1_w": xavier_uniform(keys[0], (16, num_inputs, 8, 8),
                                  num_inputs * 64, 16 * 64),
        "conv1_b": jnp.zeros((16,), jnp.float32),
        "conv2_w": xavier_uniform(keys[1], (32, 16, 4, 4), 16 * 16, 32 * 16),
        "conv2_b": jnp.zeros((32,), jnp.float32),
        # LSTMCell: PyTorch-default uniform weights, zero biases
        "lstm_wih": jax.random.uniform(keys[2], (4 * hidden, FLAT), jnp.float32,
                                       -lstm_bound, lstm_bound),
        "lstm_whh": jax.random.uniform(keys[3], (4 * hidden, hidden), jnp.float32,
                                       -lstm_bound, lstm_bound),
        "lstm_b_ih": jnp.zeros((4 * hidden,), jnp.float32),
        "lstm_b_hh": jnp.zeros((4 * hidden,), jnp.float32),
        "actor_w": xavier_uniform(keys[4], (num_actions, hidden), hidden, num_actions),
        "actor_b": jnp.zeros((num_actions,), jnp.float32),
        "critic_w": xavier_uniform(keys[5], (1, hidden), hidden, 1),
        "critic_b": jnp.zeros((1,), jnp.float32),
    }


def pack_params(tp, num_actions, hidden=HIDDEN):
    """One-time conversion to kernel layouts: pre-transpose, bf16-cast, zero-pad.
    Nothing here runs per forward call."""
    wih_t = jnp.zeros((K_PAD, 4 * hidden), jnp.float32).at[:FLAT, :].set(tp["lstm_wih"].T)
    heads_w = jnp.zeros((hidden, HEAD_PAD), jnp.float32)
    heads_w = heads_w.at[:, :num_actions].set(tp["actor_w"].T)
    heads_w = heads_w.at[:, num_actions:num_actions + 1].set(tp["critic_w"].T)
    heads_b = jnp.zeros((1, HEAD_PAD), jnp.float32)
    heads_b = heads_b.at[0, :num_actions].set(tp["actor_b"])
    heads_b = heads_b.at[0, num_actions].set(tp["critic_b"][0])
    return {
        "conv1_w": tp["conv1_w"].reshape(16, -1).astype(jnp.bfloat16),
        "conv1_b": tp["conv1_b"].reshape(16, 1),
        "conv2_w": tp["conv2_w"].reshape(32, -1).astype(jnp.bfloat16),
        "conv2_b": tp["conv2_b"].reshape(32, 1),
        "lstm_wih_t": wih_t.astype(jnp.bfloat16),
        "lstm_whh_t": tp["lstm_whh"].T.astype(jnp.bfloat16),
        # NOTE: when loading trained PyTorch weights, lstm_bias = b_ih + b_hh.
        "lstm_bias": (tp["lstm_b_ih"] + tp["lstm_b_hh"]).reshape(1, 4 * hidden),
        "heads_w": heads_w.astype(jnp.bfloat16),
        "heads_b": heads_b,
    }


if __name__ == "__main__":
    B, C_IN, HW, NUM_ACTIONS = 2, 4, 84, 5   # 84x84 is required by the 32*9*9 flatten
    key = jax.random.PRNGKey(0)
    k_param, k_x, k_h, k_c = jax.random.split(key, 4)

    torch_params = init_torch_params(k_param, C_IN, NUM_ACTIONS)
    params = pack_params(torch_params, NUM_ACTIONS)

    x = jax.random.uniform(k_x, (B, C_IN, HW, HW), jnp.float32)
    hx = jax.random.normal(k_h, (B, HIDDEN), jnp.float32) * 0.1
    cx = jax.random.normal(k_c, (B, HIDDEN), jnp.float32) * 0.1

    actor, critic, h_new, c_new = mnih2016_forward(params, x, hx, cx,
                                                   num_actions=NUM_ACTIONS)
    jax.block_until_ready((actor, critic, h_new, c_new))

    assert actor.shape == (B, NUM_ACTIONS)
    assert critic.shape == (B, 1)
    assert h_new.shape == (B, HIDDEN) and c_new.shape == (B, HIDDEN)
    assert bool(jnp.all(jnp.isfinite(actor))) and bool(jnp.all(jnp.isfinite(critic)))
    print("KERNEL_OK")
</pallas_src>

<mosaic_0001>
module attributes {stable_mosaic.version = 11 : i64} {
  func.func @_conv_matmul_relu_kernel(%arg0: i32, %arg1: memref<16x256xbf16, #tpu.memory_space<vmem>>, %arg2: memref<256x896xbf16, #tpu.memory_space<vmem>>, %arg3: memref<16x1xf32, #tpu.memory_space<vmem>>, %arg4: memref<16x896xbf16, #tpu.memory_space<vmem>>) attributes {dimension_semantics = [#tpu.dimension_semantics<arbitrary>], iteration_bounds = array<i64: 1>, scalar_prefetch = 0 : i64, scratch_operands = 0 : i64, tpu.core_type = #tpu.core_type<tc>, window_params = [{pipeline_mode = #tpu.pipeline_mode<synchronous>, transform_indices = @transform_0, window_bounds = array<i64: 16, 256>}, {pipeline_mode = #tpu.pipeline_mode<synchronous>, transform_indices = @transform_1, window_bounds = array<i64: 256, 896>}, {pipeline_mode = #tpu.pipeline_mode<synchronous>, transform_indices = @transform_2, window_bounds = array<i64: 16, 1>}, {pipeline_mode = #tpu.pipeline_mode<synchronous>, transform_indices = @transform_3, window_bounds = array<i64: 16, 896>}]} {
    %c0 = arith.constant 0 : index
    %c0_0 = arith.constant 0 : index
    %0 = vector.load %arg1[%c0, %c0_0] : memref<16x256xbf16, #tpu.memory_space<vmem>>, vector<16x256xbf16>
    %c0_1 = arith.constant 0 : index
    %c0_2 = arith.constant 0 : index
    %1 = vector.load %arg2[%c0_1, %c0_2] : memref<256x896xbf16, #tpu.memory_space<vmem>>, vector<256x896xbf16>
    %cst = arith.constant dense<0.000000e+00> : vector<16x896xf32>
    %2 = tpu.matmul %0, %1, %cst {dimension_numbers = #tpu.dot_dimension_numbers<[1], [0], [0], [1], [0, 0, 1, 1], [], []>} : vector<16x256xbf16>, vector<256x896xbf16>, vector<16x896xf32> -> vector<16x896xf32>
    %c0_3 = arith.constant 0 : index
    %c0_4 = arith.constant 0 : index
    %3 = vector.load %arg3[%c0_3, %c0_4] : memref<16x1xf32, #tpu.memory_space<vmem>>, vector<16x1xf32>
    %4 = vector.broadcast %3 : vector<16x1xf32> to vector<16x896xf32>
    %5 = arith.addf %2, %4 : vector<16x896xf32>
    %cst_5 = arith.constant 0.000000e+00 : f32
    %6 = vector.broadcast %cst_5 : f32 to vector<16x896xf32>
    %7 = arith.maximumf %5, %6 : vector<16x896xf32>
    %8 = arith.truncf %7 : vector<16x896xf32> to vector<16x896xbf16>
    %c0_6 = arith.constant 0 : index
    %c0_7 = arith.constant 0 : index
    %9 = vector.load %arg4[%c0_6, %c0_7] : memref<16x896xbf16, #tpu.memory_space<vmem>>, vector<16x896xbf16>
    tpu.vector_store %arg4[%c0_6, %c0_7], %8 {strides = array<i32>} : memref<16x896xbf16, #tpu.memory_space<vmem>>, vector<16x896xbf16>,
    return
  }
  func.func @transform_0(%arg0: i32) -> (i32, i32) {
    %c0_i32 = arith.constant 0 : i32
    %c0_i32_0 = arith.constant 0 : i32
    %c0_i32_1 = arith.constant 0 : i32
    return %c0_i32, %c0_i32_0 : i32, i32
  }
  func.func @transform_1(%arg0: i32) -> (i32, i32) {
    %c0_i32 = arith.constant 0 : i32
    %c0_i32_0 = arith.constant 0 : i32
    %c0_i32_1 = arith.constant 0 : i32
    return %c0_i32, %c0_i32_0 : i32, i32
  }
  func.func @transform_2(%arg0: i32) -> (i32, i32) {
    %c0_i32 = arith.constant 0 : i32
    %c0_i32_0 = arith.constant 0 : i32
    %c0_i32_1 = arith.constant 0 : i32
    return %c0_i32, %c0_i32_0 : i32, i32
  }
  func.func @transform_3(%arg0: i32) -> (i32, i32) {
    %c0_i32 = arith.constant 0 : i32
    %c0_i32_0 = arith.constant 0 : i32
    %c0_i32_1 = arith.constant 0 : i32
    return %c0_i32, %c0_i32_0 : i32, i32
  }
}

module attributes {stable_mosaic.version = 11 : i64} {
  func.func @_conv_matmul_relu_kernel(%arg0: i32, %arg1: memref<32x256xbf16, #tpu.memory_space<vmem>>, %arg2: memref<256x256xbf16, #tpu.memory_space<vmem>>, %arg3: memref<32x1xf32, #tpu.memory_space<vmem>>, %arg4: memref<32x256xbf16, #tpu.memory_space<vmem>>) attributes {dimension_semantics = [#tpu.dimension_semantics<arbitrary>], iteration_bounds = array<i64: 1>, scalar_prefetch = 0 : i64, scratch_operands = 0 : i64, tpu.core_type = #tpu.core_type<tc>, window_params = [{pipeline_mode = #tpu.pipeline_mode<synchronous>, transform_indices = @transform_0, window_bounds = array<i64: 32, 256>}, {pipeline_mode = #tpu.pipeline_mode<synchronous>, transform_indices = @transform_1, window_bounds = array<i64: 256, 256>}, {pipeline_mode = #tpu.pipeline_mode<synchronous>, transform_indices = @transform_2, window_bounds = array<i64: 32, 1>}, {pipeline_mode = #tpu.pipeline_mode<synchronous>, transform_indices = @transform_3, window_bounds = array<i64: 32, 256>}]} {
    %c0 = arith.constant 0 : index
    %c0_0 = arith.constant 0 : index
    %0 = vector.load %arg1[%c0, %c0_0] : memref<32x256xbf16, #tpu.memory_space<vmem>>, vector<32x256xbf16>
    %c0_1 = arith.constant 0 : index
    %c0_2 = arith.constant 0 : index
    %1 = vector.load %arg2[%c0_1, %c0_2] : memref<256x256xbf16, #tpu.memory_space<vmem>>, vector<256x256xbf16>
    %cst = arith.constant dense<0.000000e+00> : vector<32x256xf32>
    %2 = tpu.matmul %0, %1, %cst {dimension_numbers = #tpu.dot_dimension_numbers<[1], [0], [0], [1], [0, 0, 1, 1], [], []>} : vector<32x256xbf16>, vector<256x256xbf16>, vector<32x256xf32> -> vector<32x256xf32>
    %c0_3 = arith.constant 0 : index
    %c0_4 = arith.constant 0 : index
    %3 = vector.load %arg3[%c0_3, %c0_4] : memref<32x1xf32, #tpu.memory_space<vmem>>, vector<32x1xf32>
    %4 = vector.broadcast %3 : vector<32x1xf32> to vector<32x256xf32>
    %5 = arith.addf %2, %4 : vector<32x256xf32>
    %cst_5 = arith.constant 0.000000e+00 : f32
    %6 = vector.broadcast %cst_5 : f32 to vector<32x256xf32>
    %7 = arith.maximumf %5, %6 : vector<32x256xf32>
    %8 = arith.truncf %7 : vector<32x256xf32> to vector<32x256xbf16>
    %c0_6 = arith.constant 0 : index
    %c0_7 = arith.constant 0 : index
    %9 = vector.load %arg4[%c0_6, %c0_7] : memref<32x256xbf16, #tpu.memory_space<vmem>>, vector<32x256xbf16>
    tpu.vector_store %arg4[%c0_6, %c0_7], %8 {strides = array<i32>} : memref<32x256xbf16, #tpu.memory_space<vmem>>, vector<32x256xbf16>,
    return
  }
  func.func @transform_0(%arg0: i32) -> (i32, i32) {
    %c0_i32 = arith.constant 0 : i32
    %c0_i32_0 = arith.constant 0 : i32
    %c0_i32_1 = arith.constant 0 : i32
    return %c0_i32, %c0_i32_0 : i32, i32
  }
  func.func @transform_1(%arg0: i32) -> (i32, i32) {
    %c0_i32 = arith.constant 0 : i32
    %c0_i32_0 = arith.constant 0 : i32
    %c0_i32_1 = arith.constant 0 : i32
    return %c0_i32, %c0_i32_0 : i32, i32
  }
  func.func @transform_2(%arg0: i32) -> (i32, i32) {
    %c0_i32 = arith.constant 0 : i32
    %c0_i32_0 = arith.constant 0 : i32
    %c0_i32_1 = arith.constant 0 : i32
    return %c0_i32, %c0_i32_0 : i32, i32
  }
  func.func @transform_3(%arg0: i32) -> (i32, i32) {
    %c0_i32 = arith.constant 0 : i32
    %c0_i32_0 = arith.constant 0 : i32
    %c0_i32_1 = arith.constant 0 : i32
    return %c0_i32, %c0_i32_0 : i32, i32
  }
}

module attributes {stable_mosaic.version = 11 : i64} {
  func.func @_lstm_heads_kernel(%arg0: i32, %arg1: memref<2x896xbf16, #tpu.memory_space<vmem>>, %arg2: memref<896x1024xbf16, #tpu.memory_space<vmem>>, %arg3: memref<2x256xf32, #tpu.memory_space<vmem>>, %arg4: memref<2x256xf32, #tpu.memory_space<vmem>>, %arg5: memref<256x1024xbf16, #tpu.memory_space<vmem>>, %arg6: memref<1x1024xf32, #tpu.memory_space<vmem>>, %arg7: memref<256x128xbf16, #tpu.memory_space<vmem>>, %arg8: memref<1x128xf32, #tpu.memory_space<vmem>>, %arg9: memref<2x128xf32, #tpu.memory_space<vmem>>, %arg10: memref<2x256xf32, #tpu.memory_space<vmem>>, %arg11: memref<2x256xf32, #tpu.memory_space<vmem>>, %arg12: memref<2x1024xf32, #tpu.memory_space<vmem>>) attributes {dimension_semantics = [#tpu.dimension_semantics<arbitrary>], iteration_bounds = array<i64: 3>, scalar_prefetch = 0 : i64, scratch_operands = 1 : i64, tpu.core_type = #tpu.core_type<tc>, window_params = [{transform_indices = @transform_0, window_bounds = array<i64: 2, 896>}, {transform_indices = @transform_1, window_bounds = array<i64: 896, 1024>}, {pipeline_mode = #tpu.pipeline_mode<synchronous>, transform_indices = @transform_2, window_bounds = array<i64: 2, 256>}, {pipeline_mode = #tpu.pipeline_mode<synchronous>, transform_indices = @transform_3, window_bounds = array<i64: 2, 256>}, {pipeline_mode = #tpu.pipeline_mode<synchronous>, transform_indices = @transform_4, window_bounds = array<i64: 256, 1024>}, {pipeline_mode = #tpu.pipeline_mode<synchronous>, transform_indices = @transform_5, window_bounds = array<i64: 1, 1024>}, {pipeline_mode = #tpu.pipeline_mode<synchronous>, transform_indices = @transform_6, window_bounds = array<i64: 256, 128>}, {pipeline_mode = #tpu.pipeline_mode<synchronous>, transform_indices = @transform_7, window_bounds = array<i64: 1, 128>}, {pipeline_mode = #tpu.pipeline_mode<synchronous>, transform_indices = @transform_8, window_bounds = array<i64: 2, 128>}, {pipeline_mode = #tpu.pipeline_mode<synchronous>, transform_indices = @transform_9, window_bounds = array<i64: 2, 256>}, {pipeline_mode = #tpu.pipeline_mode<synchronous>, transform_indices = @transform_10, window_bounds = array<i64: 2, 256>}]} {
    %c0_i32 = arith.constant 0 : i32
    %0 = arith.cmpi eq, %arg0, %c0_i32 : i32
    %1 = arith.extui %0 : i1 to i32
    %c0_i32_0 = arith.constant 0 : i32
    %2 = arith.cmpi ne, %1, %c0_i32_0 : i32
    scf.if %2 {
      %c0_9 = arith.constant 0 : index
      %c0_10 = arith.constant 0 : index
      %12 = vector.load %arg6[%c0_9, %c0_10] : memref<1x1024xf32, #tpu.memory_space<vmem>>, vector<1x1024xf32>
      %c0_11 = arith.constant 0 : index
      %c0_12 = arith.constant 0 : index
      %13 = vector.load %arg3[%c0_11, %c0_12] : memref<2x256xf32, #tpu.memory_space<vmem>>, vector<2x256xf32>
      %14 = arith.truncf %13 : vector<2x256xf32> to vector<2x256xbf16>
      %c0_13 = arith.constant 0 : index
      %c0_14 = arith.constant 0 : index
      %15 = vector.load %arg5[%c0_13, %c0_14] : memref<256x1024xbf16, #tpu.memory_space<vmem>>, vector<256x1024xbf16>
      %cst_15 = arith.constant dense<0.000000e+00> : vector<2x1024xf32>
      %16 = tpu.matmul %14, %15, %cst_15 {dimension_numbers = #tpu.dot_dimension_numbers<[1], [0], [0], [1], [0, 0, 1, 1], [], []>} : vector<2x256xbf16>, vector<256x1024xbf16>, vector<2x1024xf32> -> vector<2x1024xf32>
      %17 = vector.broadcast %12 : vector<1x1024xf32> to vector<2x1024xf32>
      %18 = arith.addf %17, %16 : vector<2x1024xf32>
      %c0_16 = arith.constant 0 : index
      %c0_17 = arith.constant 0 : index
      %19 = vector.load %arg12[%c0_16, %c0_17] : memref<2x1024xf32, #tpu.memory_space<vmem>>, vector<2x1024xf32>
      tpu.vector_store %arg12[%c0_16, %c0_17], %18 {strides = array<i32>} : memref<2x1024xf32, #tpu.memory_space<vmem>>, vector<2x1024xf32>,
    } else {
    }
    %c0 = arith.constant 0 : index
    %c0_1 = arith.constant 0 : index
    %3 = vector.load %arg12[%c0, %c0_1] : memref<2x1024xf32, #tpu.memory_space<vmem>>, vector<2x1024xf32>
    %c0_2 = arith.constant 0 : index
    %c0_3 = arith.constant 0 : index
    %4 = vector.load %arg1[%c0_2, %c0_3] : memref<2x896xbf16, #tpu.memory_space<vmem>>, vector<2x896xbf16>
    %c0_4 = arith.constant 0 : index
    %c0_5 = arith.constant 0 : index
    %5 = vector.load %arg2[%c0_4, %c0_5] : memref<896x1024xbf16, #tpu.memory_space<vmem>>, vector<896x1024xbf16>
    %cst = arith.constant dense<0.000000e+00> : vector<2x1024xf32>
    %6 = tpu.matmul %4, %5, %cst {dimension_numbers = #tpu.dot_dimension_numbers<[1], [0], [0], [1], [0, 0, 1, 1], [], []>} : vector<2x896xbf16>, vector<896x1024xbf16>, vector<2x1024xf32> -> vector<2x1024xf32>
    %7 = arith.addf %3, %6 : vector<2x1024xf32>
    %c0_6 = arith.constant 0 : index
    %c0_7 = arith.constant 0 : index
    %8 = vector.load %arg12[%c0_6, %c0_7] : memref<2x1024xf32, #tpu.memory_space<vmem>>, vector<2x1024xf32>
    tpu.vector_store %arg12[%c0_6, %c0_7], %7 {strides = array<i32>} : memref<2x1024xf32, #tpu.memory_space<vmem>>, vector<2x1024xf32>,
    %c2_i32 = arith.constant 2 : i32
    %9 = arith.cmpi eq, %arg0, %c2_i32 : i32
    %10 = arith.extui %9 : i1 to i32
    %c0_i32_8 = arith.constant 0 : i32
    %11 = arith.cmpi ne, %10, %c0_i32_8 : i32
    scf.if %11 {
      %c0_9 = arith.constant 0 : index
      %c0_10 = arith.constant 0 : index
      %12 = vector.load %arg12[%c0_9, %c0_10] : memref<2x1024xf32, #tpu.memory_space<vmem>>, vector<2x1024xf32>
      %13 = vector.extract_strided_slice %12 {offsets = [0, 0], sizes = [2, 256], strides = [1, 1]} : vector<2x1024xf32> to vector<2x256xf32>
      %14 = arith.negf %13 : vector<2x256xf32>
      %15 = math.exp %14 : vector<2x256xf32>
      %cst_11 = arith.constant 1.000000e+00 : f32
      %16 = vector.broadcast %cst_11 : f32 to vector<2x256xf32>
      %17 = arith.addf %16, %15 : vector<2x256xf32>
      %18 = arith.divf %16, %17 : vector<2x256xf32>
      %19 = vector.extract_strided_slice %12 {offsets = [0, 256], sizes = [2, 256], strides = [1, 1]} : vector<2x1024xf32> to vector<2x256xf32>
      %20 = arith.negf %19 : vector<2x256xf32>
      %21 = math.exp %20 : vector<2x256xf32>
      %cst_12 = arith.constant 1.000000e+00 : f32
      %22 = vector.broadcast %cst_12 : f32 to vector<2x256xf32>
      %23 = arith.addf %22, %21 : vector<2x256xf32>
      %24 = arith.divf %22, %23 : vector<2x256xf32>
      %25 = vector.extract_strided_slice %12 {offsets = [0, 512], sizes = [2, 256], strides = [1, 1]} : vector<2x1024xf32> to vector<2x256xf32>
      %26 = math.tanh %25 : vector<2x256xf32>
      %27 = vector.extract_strided_slice %12 {offsets = [0, 768], sizes = [2, 256], strides = [1, 1]} : vector<2x1024xf32> to vector<2x256xf32>
      %28 = arith.negf %27 : vector<2x256xf32>
      %29 = math.exp %28 : vector<2x256xf32>
      %cst_13 = arith.constant 1.000000e+00 : f32
      %30 = vector.broadcast %cst_13 : f32 to vector<2x256xf32>
      %31 = arith.addf %30, %29 : vector<2x256xf32>
      %32 = arith.divf %30, %31 : vector<2x256xf32>
      %c0_14 = arith.constant 0 : index
      %c0_15 = arith.constant 0 : index
      %33 = vector.load %arg4[%c0_14, %c0_15] : memref<2x256xf32, #tpu.memory_space<vmem>>, vector<2x256xf32>
      %34 = arith.mulf %24, %33 : vector<2x256xf32>
      %35 = arith.mulf %18, %26 : vector<2x256xf32>
      %36 = arith.addf %34, %35 : vector<2x256xf32>
      %37 = math.tanh %36 : vector<2x256xf32>
      %38 = arith.mulf %32, %37 : vector<2x256xf32>
      %c0_16 = arith.constant 0 : index
      %c0_17 = arith.constant 0 : index
      %39 = vector.load %arg11[%c0_16, %c0_17] : memref<2x256xf32, #tpu.memory_space<vmem>>, vector<2x256xf32>
      tpu.vector_store %arg11[%c0_16, %c0_17], %36 {strides = array<i32>} : memref<2x256xf32, #tpu.memory_space<vmem>>, vector<2x256xf32>,
      %c0_18 = arith.constant 0 : index
      %c0_19 = arith.constant 0 : index
      %40 = vector.load %arg10[%c0_18, %c0_19] : memref<2x256xf32, #tpu.memory_space<vmem>>, vector<2x256xf32>
      tpu.vector_store %arg10[%c0_18, %c0_19], %38 {strides = array<i32>} : memref<2x256xf32, #tpu.memory_space<vmem>>, vector<2x256xf32>,
      %41 = arith.truncf %38 : vector<2x256xf32> to vector<2x256xbf16>
      %c0_20 = arith.constant 0 : index
      %c0_21 = arith.constant 0 : index
      %42 = vector.load %arg7[%c0_20, %c0_21] : memref<256x128xbf16, #tpu.memory_space<vmem>>, vector<256x128xbf16>
      %cst_22 = arith.constant dense<0.000000e+00> : vector<2x128xf32>
      %43 = tpu.matmul %41, %42, %cst_22 {dimension_numbers = #tpu.dot_dimension_numbers<[1], [0], [0], [1], [0, 0, 1, 1], [], []>} : vector<2x256xbf16>, vector<256x128xbf16>, vector<2x128xf32> -> vector<2x128xf32>
      %c0_23 = arith.constant 0 : index
      %c0_24 = arith.constant 0 : index
      %44 = vector.load %arg8[%c0_23, %c0_24] : memref<1x128xf32, #tpu.memory_space<vmem>>, vector<1x128xf32>
      %45 = vector.broadcast %44 : vector<1x128xf32> to vector<2x128xf32>
      %46 = arith.addf %43, %45 : vector<2x128xf32>
      %c0_25 = arith.constant 0 : index
      %c0_26 = arith.constant 0 : index
      %47 = vector.load %arg9[%c0_25, %c0_26] : memref<2x128xf32, #tpu.memory_space<vmem>>, vector<2x128xf32>
      tpu.vector_store %arg9[%c0_25, %c0_26], %46 {strides = array<i32>} : memref<2x128xf32, #tpu.memory_space<vmem>>, vector<2x128xf32>,
    } else {
    }
    return
  }
  func.func @transform_0(%arg0: i32) -> (i32, i32) {
    %c0_i32 = arith.constant 0 : i32
    %c0_i32_0 = arith.constant 0 : i32
    return %c0_i32, %arg0 : i32, i32
  }
  func.func @transform_1(%arg0: i32) -> (i32, i32) {
    %c0_i32 = arith.constant 0 : i32
    %c0_i32_0 = arith.constant 0 : i32
    return %arg0, %c0_i32 : i32, i32
  }
  func.func @transform_2(%arg0: i32) -> (i32, i32) {
    %c0_i32 = arith.constant 0 : i32
    %c0_i32_0 = arith.constant 0 : i32
    %c0_i32_1 = arith.constant 0 : i32
    return %c0_i32, %c0_i32_0 : i32, i32
  }
  func.func @transform_3(%arg0: i32) -> (i32, i32) {
    %c0_i32 = arith.constant 0 : i32
    %c0_i32_0 = arith.constant 0 : i32
    %c0_i32_1 = arith.constant 0 : i32
    return %c0_i32, %c0_i32_0 : i32, i32
  }
  func.func @transform_4(%arg0: i32) -> (i32, i32) {
    %c0_i32 = arith.constant 0 : i32
    %c0_i32_0 = arith.constant 0 : i32
    %c0_i32_1 = arith.constant 0 : i32
    return %c0_i32, %c0_i32_0 : i32, i32
  }
  func.func @transform_5(%arg0: i32) -> (i32, i32) {
    %c0_i32 = arith.constant 0 : i32
    %c0_i32_0 = arith.constant 0 : i32
    %c0_i32_1 = arith.constant 0 : i32
    return %c0_i32, %c0_i32_0 : i32, i32
  }
  func.func @transform_6(%arg0: i32) -> (i32, i32) {
    %c0_i32 = arith.constant 0 : i32
    %c0_i32_0 = arith.constant 0 : i32
    %c0_i32_1 = arith.constant 0 : i32
    return %c0_i32, %c0_i32_0 : i32, i32
  }
  func.func @transform_7(%arg0: i32) -> (i32, i32) {
    %c0_i32 = arith.constant 0 : i32
    %c0_i32_0 = arith.constant 0 : i32
    %c0_i32_1 = arith.constant 0 : i32
    return %c0_i32, %c0_i32_0 : i32, i32
  }
  func.func @transform_8(%arg0: i32) -> (i32, i32) {
    %c0_i32 = arith.constant 0 : i32
    %c0_i32_0 = arith.constant 0 : i32
    %c0_i32_1 = arith.constant 0 : i32
    return %c0_i32, %c0_i32_0 : i32, i32
  }
  func.func @transform_9(%arg0: i32) -> (i32, i32) {
    %c0_i32 = arith.constant 0 : i32
    %c0_i32_0 = arith.constant 0 : i32
    %c0_i32_1 = arith.constant 0 : i32
    return %c0_i32, %c0_i32_0 : i32, i32
  }
  func.func @transform_10(%arg0: i32) -> (i32, i32) {
    %c0_i32 = arith.constant 0 : i32
    %c0_i32_0 = arith.constant 0 : i32
    %c0_i32_1 = arith.constant 0 : i32
    return %c0_i32, %c0_i32_0 : i32, i32
  }
}

</mosaic_0001>

<llo_original>
// kernel: mnih2016_forward.3
$region0: #{mnih2016_forward.3}
  #allocation0 [shape = 'u32[]', space=smem, size = 0x4, offset = 0x4, fixed_abs, tag = 'smem constant byte address 0x4 - core index']
  #allocation1 [shape = 'u32[72,128]{1,0:T(1,128)}', space=vmem, size = 0x9000, scoped, tag = 'internal scratch']
  %s0 = inlined_call_operand.vmem [shape: bf16[16,256], index: 0, kind: input, shape index: {}]
  %s1 = inlined_call_operand.vmem [shape: bf16[256,896], index: 1, kind: input, shape index: {}]
  %s2 = inlined_call_operand.vmem [shape: f32[16,1], index: 2, kind: input, shape index: {}]
  %s3 = inlined_call_operand.vmem [shape: bf16[16,896], index: 3, kind: output, shape index: {}]
  %s4 = sld [smem:[#allocation0]]
  $region22: #{mnih2016_forward.3} parent=0
    _
  %s6 = ssub.s32 1, %s4
  %s7 = scalar_select 0, %s6, %s4
  // Predicated region
  $region2: #{mnih2016_forward.3} parent=0 // pred_check
    _
  $region3: #{mnih2016_forward.3} parent=0 // pred_check_branch
    %9 = sbr.rel (0) target = $region5
  $region4: #{mnih2016_forward.3} parent=0 // pred_region
    _
  $region5: #{mnih2016_forward.3} parent=0 // pred_fallthru
    _
  // Predicated region
  $region6: #{mnih2016_forward.3} parent=0 // pred_check
    _
  $region7: #{mnih2016_forward.3} parent=0 // pred_check_branch
    %11 = sbr.rel (0) target = $region9
  $region8: #{mnih2016_forward.3} parent=0 // pred_region
    _
  $region9: #{mnih2016_forward.3} parent=0 // pred_fallthru
    _
  // Predicated region
  $region10: #{mnih2016_forward.3} parent=0 // pred_check
    _
  $region11: #{mnih2016_forward.3} parent=0 // pred_check_branch
    %13 = sbr.rel (0) target = $region13
  $region12: #{mnih2016_forward.3} parent=0 // pred_region
    _
  $region13: #{mnih2016_forward.3} parent=0 // pred_fallthru
    _
  %v14 = vld [vmem:[%s0] sm:$0xff]
  %v15 = vld [vmem:[%s0 + $0x8] sm:$0xff]
  %v16 = vld [vmem:[%s1] sm:$0xff]
  %v17 = vld [vmem:[%s1 + $0x8] sm:$0xff]
  %v18 = vld [vmem:[%s1 + $0x10] sm:$0xff]
  %v19 = vld [vmem:[%s1 + $0x18] sm:$0xf]
  %v20 = vld [vmem:[%s1 + $0x1c] sm:$0xff]
  %v21 = vld [vmem:[%s1 + $0x24] sm:$0xff]
  %v22 = vld [vmem:[%s1 + $0x2c] sm:$0xff]
  %v23 = vld [vmem:[%s1 + $0x34] sm:$0xf]
  %v24 = vld [vmem:[%s1 + $0x38] sm:$0xff]
  %v25 = vld [vmem:[%s1 + $0x40] sm:$0xff]
  %v26 = vld [vmem:[%s1 + $0x48] sm:$0xff]
  %v27 = vld [vmem:[%s1 + $0x50] sm:$0xf]
  %v28 = vld [vmem:[%s1 + $0x54] sm:$0xff]
  %v29 = vld [vmem:[%s1 + $0x5c] sm:$0xff]
  %v30 = vld [vmem:[%s1 + $0x64] sm:$0xff]
  %v31 = vld [vmem:[%s1 + $0x6c] sm:$0xf]
  %v32 = vld [vmem:[%s1 + $0x70] sm:$0xff]
  %v33 = vld [vmem:[%s1 + $0x78] sm:$0xff]
  %v34 = vld [vmem:[%s1 + $0x80] sm:$0xff]
  %v35 = vld [vmem:[%s1 + $0x88] sm:$0xf]
  %v36 = vld [vmem:[%s1 + $0x8c] sm:$0xff]
  %v37 = vld [vmem:[%s1 + $0x94] sm:$0xff]
  %v38 = vld [vmem:[%s1 + $0x9c] sm:$0xff]
  %v39 = vld [vmem:[%s1 + $0xa4] sm:$0xf]
  %v40 = vld [vmem:[%s1 + $0xa8] sm:$0xff]
  %v41 = vld [vmem:[%s1 + $0xb0] sm:$0xff]
  %v42 = vld [vmem:[%s1 + $0xb8] sm:$0xff]
  %v43 = vld [vmem:[%s1 + $0xc0] sm:$0xf]
  %v44 = vld [vmem:[%s1 + $0xc4] sm:$0xff]
  %v45 = vld [vmem:[%s1 + $0xcc] sm:$0xff]
  %v46 = vld [vmem:[%s1 + $0xd4] sm:$0xff]
  %v47 = vld [vmem:[%s1 + $0xdc] sm:$0xf]
  %v48 = vld [vmem:[%s1 + $0xe0] sm:$0xff]
  %v49 = vld [vmem:[%s1 + $0xe8] sm:$0xff]
  %v50 = vld [vmem:[%s1 + $0xf0] sm:$0xff]
  %v51 = vld [vmem:[%s1 + $0xf8] sm:$0xf]
  %v52 = vld [vmem:[%s1 + $0xfc] sm:$0xff]
  %v53 = vld [vmem:[%s1 + $0x104] sm:$0xff]
  %v54 = vld [vmem:[%s1 + $0x10c] sm:$0xff]
  %v55 = vld [vmem:[%s1 + $0x114] sm:$0xf]
  %v56 = vld [vmem:[%s1 + $0x118] sm:$0xff]
  %v57 = vld [vmem:[%s1 + $0x120] sm:$0xff]
  %v58 = vld [vmem:[%s1 + $0x128] sm:$0xff]
  %v59 = vld [vmem:[%s1 + $0x130] sm:$0xf]
  %v60 = vld [vmem:[%s1 + $0x134] sm:$0xff]
  %v61 = vld [vmem:[%s1 + $0x13c] sm:$0xff]
  %v62 = vld [vmem:[%s1 + $0x144] sm:$0xff]
  %v63 = vld [vmem:[%s1 + $0x14c] sm:$0xf]
  %v64 = vld [vmem:[%s1 + $0x150] sm:$0xff]
  %v65 = vld [vmem:[%s1 + $0x158] sm:$0xff]
  %v66 = vld [vmem:[%s1 + $0x160] sm:$0xff]
  %v67 = vld [vmem:[%s1 + $0x168] sm:$0xf]
  %v68 = vld [vmem:[%s1 + $0x16c] sm:$0xff]
  %v69 = vld [vmem:[%s1 + $0x174] sm:$0xff]
  %v70 = vld [vmem:[%s1 + $0x17c] sm:$0xff]
  %v71 = vld [vmem:[%s1 + $0x184] sm:$0xf]
  %v72 = vld [vmem:[%s1 + $0x188] sm:$0xff]
  %v73 = vld [vmem:[%s1 + $0x190] sm:$0xff]
  %v74 = vld [vmem:[%s1 + $0x198] sm:$0xff]
  %v75 = vld [vmem:[%s1 + $0x1a0] sm:$0xf]
  %v76 = vld [vmem:[%s1 + $0x1a4] sm:$0xff]
  %v77 = vld [vmem:[%s1 + $0x1ac] sm:$0xff]
  %v78 = vld [vmem:[%s1 + $0x1b4] sm:$0xff]
  %v79 = vld [vmem:[%s1 + $0x1bc] sm:$0xf]
  %v80 = vld [vmem:[%s1 + $0x1c0] sm:$0xff]
  %v81 = vld [vmem:[%s1 + $0x1c8] sm:$0xff]
  %v82 = vld [vmem:[%s1 + $0x1d0] sm:$0xff]
  %v83 = vld [vmem:[%s1 + $0x1d8] sm:$0xf]
  %v84 = vld [vmem:[%s1 + $0x1dc] sm:$0xff]
  %v85 = vld [vmem:[%s1 + $0x1e4] sm:$0xff]
  %v86 = vld [vmem:[%s1 + $0x1ec] sm:$0xff]
  %v87 = vld [vmem:[%s1 + $0x1f4] sm:$0xf]
  %v88 = vld [vmem:[%s1 + $0x1f8] sm:$0xff]
  %v89 = vld [vmem:[%s1 + $0x200] sm:$0xff]
  %v90 = vld [vmem:[%s1 + $0x208] sm:$0xff]
  %v91 = vld [vmem:[%s1 + $0x210] sm:$0xf]
  %v92 = vld [vmem:[%s1 + $0x214] sm:$0xff]
  %v93 = vld [vmem:[%s1 + $0x21c] sm:$0xff]
  %v94 = vld [vmem:[%s1 + $0x224] sm:$0xff]
  %v95 = vld [vmem:[%s1 + $0x22c] sm:$0xf]
  %v96 = vld [vmem:[%s1 + $0x230] sm:$0xff]
  %v97 = vld [vmem:[%s1 + $0x238] sm:$0xff]
  %v98 = vld [vmem:[%s1 + $0x240] sm:$0xff]
  %v99 = vld [vmem:[%s1 + $0x248] sm:$0xf]
  %v100 = vld [vmem:[%s1 + $0x24c] sm:$0xff]
  %v101 = vld [vmem:[%s1 + $0x254] sm:$0xff]
  %v102 = vld [vmem:[%s1 + $0x25c] sm:$0xff]
  %v103 = vld [vmem:[%s1 + $0x264] sm:$0xf]
  %v104 = vld [vmem:[%s1 + $0x268] sm:$0xff]
  %v105 = vld [vmem:[%s1 + $0x270] sm:$0xff]
  %v106 = vld [vmem:[%s1 + $0x278] sm:$0xff]
  %v107 = vld [vmem:[%s1 + $0x280] sm:$0xf]
  %v108 = vld [vmem:[%s1 + $0x284] sm:$0xff]
  %v109 = vld [vmem:[%s1 + $0x28c] sm:$0xff]
  %v110 = vld [vmem:[%s1 + $0x294] sm:$0xff]
  %v111 = vld [vmem:[%s1 + $0x29c] sm:$0xf]
  %v112 = vld [vmem:[%s1 + $0x2a0] sm:$0xff]
  %v113 = vld [vmem:[%s1 + $0x2a8] sm:$0xff]
  %v114 = vld [vmem:[%s1 + $0x2b0] sm:$0xff]
  %v115 = vld [vmem:[%s1 + $0x2b8] sm:$0xf]
  %v116 = vld [vmem:[%s1 + $0x2bc] sm:$0xff]
  %v117 = vld [vmem:[%s1 + $0x2c4] sm:$0xff]
  %v118 = vld [vmem:[%s1 + $0x2cc] sm:$0xff]
  %v119 = vld [vmem:[%s1 + $0x2d4] sm:$0xf]
  %v120 = vld [vmem:[%s1 + $0x2d8] sm:$0xff]
  %v121 = vld [vmem:[%s1 + $0x2e0] sm:$0xff]
  %v122 = vld [vmem:[%s1 + $0x2e8] sm:$0xff]
  %v123 = vld [vmem:[%s1 + $0x2f0] sm:$0xf]
  %v124 = vld [vmem:[%s1 + $0x2f4] sm:$0xff]
  %v125 = vld [vmem:[%s1 + $0x2fc] sm:$0xff]
  %v126 = vld [vmem:[%s1 + $0x304] sm:$0xff]
  %v127 = vld [vmem:[%s1 + $0x30c] sm:$0xf]
  %v128 = vld [vmem:[%s1 + $0x310] sm:$0xff]
  %v129 = vld [vmem:[%s1 + $0x318] sm:$0xff]
  %v130 = vld [vmem:[%s1 + $0x320] sm:$0xff]
  %v131 = vld [vmem:[%s1 + $0x328] sm:$0xf]
  %v132 = vld [vmem:[%s1 + $0x32c] sm:$0xff]
  %v133 = vld [vmem:[%s1 + $0x334] sm:$0xff]
  %v134 = vld [vmem:[%s1 + $0x33c] sm:$0xff]
  %v135 = vld [vmem:[%s1 + $0x344] sm:$0xf]
  %v136 = vld [vmem:[%s1 + $0x348] sm:$0xff]
  %v137 = vld [vmem:[%s1 + $0x350] sm:$0xff]
  %v138 = vld [vmem:[%s1 + $0x358] sm:$0xff]
  %v139 = vld [vmem:[%s1 + $0x360] sm:$0xf]
  %v140 = vld [vmem:[%s1 + $0x364] sm:$0xff]
  %v141 = vld [vmem:[%s1 + $0x36c] sm:$0xff]
  %v142 = vld [vmem:[%s1 + $0x374] sm:$0xff]
  %v143 = vld [vmem:[%s1 + $0x37c] sm:$0xf]
  %v144 = vld [vmem:[%s2] sm:$0xff]
  %v145 = vld [vmem:[%s2 + $0x8] sm:$0xff]
  %147 = vset.pattern.permute.xlu0 0
  %148 = vperm.xlu0 %147, %v144
  %v149 = vpop.permute.xlu0 %148
  %152 = vset.pattern.permute.xlu0 0
  %153 = vperm.xlu0 %152, %v145
  %v154 = vpop.permute.xlu0 %153
  %v158 = vunpack.c.l.b16 %v14
  %v159 = vunpack.c.h.b16 %v14
  %v160 = vunpack.c.l.b16 %v15
  %v161 = vunpack.c.h.b16 %v15
  %v162 = vpack.c.b16 %v160, %v158
  %v163 = vpack.c.b16 %v161, %v159
  %v294 = vunpack.c.l.b16 %v16
  %v295 = vunpack.c.h.b16 %v16
  %v296 = vunpack.c.l.b16 %v17
  %v297 = vunpack.c.h.b16 %v17
  %v298 = vunpack.c.l.b16 %v18
  %v299 = vunpack.c.h.b16 %v18
  %v300 = vunpack.c.l.b16 %v19
  %v301 = vunpack.c.l.b16 %v20
  %v302 = vunpack.c.h.b16 %v20
  %v303 = vunpack.c.l.b16 %v21
  %v304 = vunpack.c.h.b16 %v21
  %v305 = vunpack.c.l.b16 %v22
  %v306 = vunpack.c.h.b16 %v22
  %v307 = vunpack.c.l.b16 %v23
  %v308 = vunpack.c.l.b16 %v24
  %v309 = vunpack.c.h.b16 %v24
  %v310 = vunpack.c.l.b16 %v25
  %v311 = vunpack.c.h.b16 %v25
  %v312 = vunpack.c.l.b16 %v26
  %v313 = vunpack.c.h.b16 %v26
  %v314 = vunpack.c.l.b16 %v27
  %v315 = vunpack.c.l.b16 %v28
  %v316 = vunpack.c.h.b16 %v28
  %v317 = vunpack.c.l.b16 %v29
  %v318 = vunpack.c.h.b16 %v29
  %v319 = vunpack.c.l.b16 %v30
  %v320 = vunpack.c.h.b16 %v30
  %v321 = vunpack.c.l.b16 %v31
  %v322 = vunpack.c.l.b16 %v32
  %v323 = vunpack.c.h.b16 %v32
  %v324 = vunpack.c.l.b16 %v33
  %v325 = vunpack.c.h.b16 %v33
  %v326 = vunpack.c.l.b16 %v34
  %v327 = vunpack.c.h.b16 %v34
  %v328 = vunpack.c.l.b16 %v35
  %v329 = vunpack.c.l.b16 %v36
  %v330 = vunpack.c.h.b16 %v36
  %v331 = vunpack.c.l.b16 %v37
  %v332 = vunpack.c.h.b16 %v37
  %v333 = vunpack.c.l.b16 %v38
  %v334 = vunpack.c.h.b16 %v38
  %v335 = vunpack.c.l.b16 %v39
  %v336 = vunpack.c.l.b16 %v40
  %v337 = vunpack.c.h.b16 %v40
  %v338 = vunpack.c.l.b16 %v41
  %v339 = vunpack.c.h.b16 %v41
  %v340 = vunpack.c.l.b16 %v42
  %v341 = vunpack.c.h.b16 %v42
  %v342 = vunpack.c.l.b16 %v43
  %v343 = vunpack.c.l.b16 %v44
  %v344 = vunpack.c.h.b16 %v44
  %v345 = vunpack.c.l.b16 %v45
  %v346 = vunpack.c.h.b16 %v45
  %v347 = vunpack.c.l.b16 %v46
  %v348 = vunpack.c.h.b16 %v46
  %v349 = vunpack.c.l.b16 %v47
  %v350 = vunpack.c.l.b16 %v48
  %v351 = vunpack.c.h.b16 %v48
  %v352 = vunpack.c.l.b16 %v49
  %v353 = vunpack.c.h.b16 %v49
  %v354 = vunpack.c.l.b16 %v50
  %v355 = vunpack.c.h.b16 %v50
  %v356 = vunpack.c.l.b16 %v51
  %v357 = vunpack.c.l.b16 %v52
  %v358 = vunpack.c.h.b16 %v52
  %v359 = vunpack.c.l.b16 %v53
  %v360 = vunpack.c.h.b16 %v53
  %v361 = vunpack.c.l.b16 %v54
  %v362 = vunpack.c.h.b16 %v54
  %v363 = vunpack.c.l.b16 %v55
  %v364 = vunpack.c.l.b16 %v56
  %v365 = vunpack.c.h.b16 %v56
  %v366 = vunpack.c.l.b16 %v57
  %v367 = vunpack.c.h.b16 %v57
  %v368 = vunpack.c.l.b16 %v58
  %v369 = vunpack.c.h.b16 %v58
  %v370 = vunpack.c.l.b16 %v59
  %v371 = vunpack.c.l.b16 %v60
  %v372 = vunpack.c.h.b16 %v60
  %v373 = vunpack.c.l.b16 %v61
  %v374 = vunpack.c.h.b16 %v61
  %v375 = vunpack.c.l.b16 %v62
  %v376 = vunpack.c.h.b16 %v62
  %v377 = vunpack.c.l.b16 %v63
  %v378 = vunpack.c.l.b16 %v64
  %v379 = vunpack.c.h.b16 %v64
  %v380 = vunpack.c.l.b16 %v65
  %v381 = vunpack.c.h.b16 %v65
  %v382 = vunpack.c.l.b16 %v66
  %v383 = vunpack.c.h.b16 %v66
  %v384 = vunpack.c.l.b16 %v67
  %v385 = vunpack.c.l.b16 %v68
  %v386 = vunpack.c.h.b16 %v68
  %v387 = vunpack.c.l.b16 %v69
  %v388 = vunpack.c.h.b16 %v69
  %v389 = vunpack.c.l.b16 %v70
  %v390 = vunpack.c.h.b16 %v70
  %v391 = vunpack.c.l.b16 %v71
  %v392 = vunpack.c.l.b16 %v72
  %v393 = vunpack.c.h.b16 %v72
  %v394 = vunpack.c.l.b16 %v73
  %v395 = vunpack.c.h.b16 %v73
  %v396 = vunpack.c.l.b16 %v74
  %v397 = vunpack.c.h.b16 %v74
  %v398 = vunpack.c.l.b16 %v75
  %v399 = vunpack.c.l.b16 %v76
  %v400 = vunpack.c.h.b16 %v76
  %v401 = vunpack.c.l.b16 %v77
  %v402 = vunpack.c.h.b16 %v77
  %v403 = vunpack.c.l.b16 %v78
  %v404 = vunpack.c.h.b16 %v78
  %v405 = vunpack.c.l.b16 %v79
  %v406 = vunpack.c.l.b16 %v80
  %v407 = vunpack.c.h.b16 %v80
  %v408 = vunpack.c.l.b16 %v81
  %v409 = vunpack.c.h.b16 %v81
  %v410 = vunpack.c.l.b16 %v82
  %v411 = vunpack.c.h.b16 %v82
  %v412 = vunpack.c.l.b16 %v83
  %v413 = vunpack.c.l.b16 %v84
  %v414 = vunpack.c.h.b16 %v84
  %v415 = vunpack.c.l.b16 %v85
  %v416 = vunpack.c.h.b16 %v85
  %v417 = vunpack.c.l.b16 %v86
  %v418 = vunpack.c.h.b16 %v86
  %v419 = vunpack.c.l.b16 %v87
  %v420 = vunpack.c.l.b16 %v88
  %v421 = vunpack.c.h.b16 %v88
  %v422 = vunpack.c.l.b16 %v89
  %v423 = vunpack.c.h.b16 %v89
  %v424 = vunpack.c.l.b16 %v90
  %v425 = vunpack.c.h.b16 %v90
  %v426 = vunpack.c.l.b16 %v91
  %v427 = vunpack.c.l.b16 %v92
  %v428 = vunpack.c.h.b16 %v92
  %v429 = vunpack.c.l.b16 %v93
  %v430 = vunpack.c.h.b16 %v93
  %v431 = vunpack.c.l.b16 %v94
  %v432 = vunpack.c.h.b16 %v94
  %v433 = vunpack.c.l.b16 %v95
  %v434 = vunpack.c.l.b16 %v96
  %v435 = vunpack.c.h.b16 %v96
  %v436 = vunpack.c.l.b16 %v97
  %v437 = vunpack.c.h.b16 %v97
  %v438 = vunpack.c.l.b16 %v98
  %v439 = vunpack.c.h.b16 %v98
  %v440 = vunpack.c.l.b16 %v99
  %v441 = vunpack.c.l.b16 %v100
  %v442 = vunpack.c.h.b16 %v100
  %v443 = vunpack.c.l.b16 %v101
  %v444 = vunpack.c.h.b16 %v101
  %v445 = vunpack.c.l.b16 %v102
  %v446 = vunpack.c.h.b16 %v102
  %v447 = vunpack.c.l.b16 %v103
  %v448 = vunpack.c.l.b16 %v104
  %v449 = vunpack.c.h.b16 %v104
  %v450 = vunpack.c.l.b16 %v105
  %v451 = vunpack.c.h.b16 %v105
  %v452 = vunpack.c.l.b16 %v106
  %v453 = vunpack.c.h.b16 %v106
  %v454 = vunpack.c.l.b16 %v107
  %v455 = vunpack.c.l.b16 %v108
  %v456 = vunpack.c.h.b16 %v108
  %v457 = vunpack.c.l.b16 %v109
  %v458 = vunpack.c.h.b16 %v109
  %v459 = vunpack.c.l.b16 %v110
  %v460 = vunpack.c.h.b16 %v110
  %v461 = vunpack.c.l.b16 %v111
  %v462 = vunpack.c.l.b16 %v112
  %v463 = vunpack.c.h.b16 %v112
  %v464 = vunpack.c.l.b16 %v113
  %v465 = vunpack.c.h.b16 %v113
  %v466 = vunpack.c.l.b16 %v114
  %v467 = vunpack.c.h.b16 %v114
  %v468 = vunpack.c.l.b16 %v115
  %v469 = vunpack.c.l.b16 %v116
  %v470 = vunpack.c.h.b16 %v116
  %v471 = vunpack.c.l.b16 %v117
  %v472 = vunpack.c.h.b16 %v117
  %v473 = vunpack.c.l.b16 %v118
  %v474 = vunpack.c.h.b16 %v118
  %v475 = vunpack.c.l.b16 %v119
  %v476 = vunpack.c.l.b16 %v120
  %v477 = vunpack.c.h.b16 %v120
  %v478 = vunpack.c.l.b16 %v121
  %v479 = vunpack.c.h.b16 %v121
  %v480 = vunpack.c.l.b16 %v122
  %v481 = vunpack.c.h.b16 %v122
  %v482 = vunpack.c.l.b16 %v123
  %v483 = vunpack.c.l.b16 %v124
  %v484 = vunpack.c.h.b16 %v124
  %v485 = vunpack.c.l.b16 %v125
  %v486 = vunpack.c.h.b16 %v125
  %v487 = vunpack.c.l.b16 %v126
  %v488 = vunpack.c.h.b16 %v126
  %v489 = vunpack.c.l.b16 %v127
  %v490 = vunpack.c.l.b16 %v128
  %v491 = vunpack.c.h.b16 %v128
  %v492 = vunpack.c.l.b16 %v129
  %v493 = vunpack.c.h.b16 %v129
  %v494 = vunpack.c.l.b16 %v130
  %v495 = vunpack.c.h.b16 %v130
  %v496 = vunpack.c.l.b16 %v131
  %v497 = vunpack.c.l.b16 %v132
  %v498 = vunpack.c.h.b16 %v132
  %v499 = vunpack.c.l.b16 %v133
  %v500 = vunpack.c.h.b16 %v133
  %v501 = vunpack.c.l.b16 %v134
  %v502 = vunpack.c.h.b16 %v134
  %v503 = vunpack.c.l.b16 %v135
  %v504 = vunpack.c.l.b16 %v136
  %v505 = vunpack.c.h.b16 %v136
  %v506 = vunpack.c.l.b16 %v137
  %v507 = vunpack.c.h.b16 %v137
  %v508 = vunpack.c.l.b16 %v138
  %v509 = vunpack.c.h.b16 %v138
  %v510 = vunpack.c.l.b16 %v139
  %v511 = vunpack.c.l.b16 %v140
  %v512 = vunpack.c.h.b16 %v140
  %v513 = vunpack.c.l.b16 %v141
  %v514 = vunpack.c.h.b16 %v141
  %v515 = vunpack.c.l.b16 %v142
  %v516 = vunpack.c.h.b16 %v142
  %v517 = vunpack.c.l.b16 %v143
  %v518 = vpack.c.b16 %v301, %v294
  %v519 = vpack.c.b16 %v302, %v295
  %v520 = vpack.c.b16 %v303, %v296
  %v521 = vpack.c.b16 %v304, %v297
  %v522 = vpack.c.b16 %v305, %v298
  %v523 = vpack.c.b16 %v306, %v299
  %v524 = vpack.c.b16 %v307, %v300
  %v525 = vpack.c.b16 %v315, %v308
  %v526 = vpack.c.b16 %v316, %v309
  %v527 = vpack.c.b16 %v317, %v310
  %v528 = vpack.c.b16 %v318, %v311
  %v529 = vpack.c.b16 %v319, %v312
  %v530 = vpack.c.b16 %v320, %v313
  %v531 = vpack.c.b16 %v321, %v314
  %v532 = vpack.c.b16 %v329, %v322
  %v533 = vpack.c.b16 %v330, %v323
  %v534 = vpack.c.b16 %v331, %v324
  %v535 = vpack.c.b16 %v332, %v325
  %v536 = vpack.c.b16 %v333, %v326
  %v537 = vpack.c.b16 %v334, %v327
  %v538 = vpack.c.b16 %v335, %v328
  %v539 = vpack.c.b16 %v343, %v336
  %v540 = vpack.c.b16 %v344, %v337
  %v541 = vpack.c.b16 %v345, %v338
  %v542 = vpack.c.b16 %v346, %v339
  %v543 = vpack.c.b16 %v347, %v340
  %v544 = vpack.c.b16 %v348, %v341
  %v545 = vpack.c.b16 %v349, %v342
  %v546 = vpack.c.b16 %v357, %v350
  %v547 = vpack.c.b16 %v358, %v351
  %v548 = vpack.c.b16 %v359, %v352
  %v549 = vpack.c.b16 %v360, %v353
  %v550 = vpack.c.b16 %v361, %v354
  %v551 = vpack.c.b16 %v362, %v355
  %v552 = vpack.c.b16 %v363, %v356
  %v553 = vpack.c.b16 %v371, %v364
  %v554 = vpack.c.b16 %v372, %v365
  %v555 = vpack.c.b16 %v373, %v366
  %v556 = vpack.c.b16 %v374, %v367
  %v557 = vpack.c.b16 %v375, %v368
  %v558 = vpack.c.b16 %v376, %v369
  %v559 = vpack.c.b16 %v377, %v370
  %v560 = vpack.c.b16 %v385, %v378
  %v561 = vpack.c.b16 %v386, %v379
  %v562 = vpack.c.b16 %v387, %v380
  %v563 = vpack.c.b16 %v388, %v381
  %v564 = vpack.c.b16 %v389, %v382
  %v565 = vpack.c.b16 %v390, %v383
  %v566 = vpack.c.b16 %v391, %v384
  %v567 = vpack.c.b16 %v399, %v392
  %v568 = vpack.c.b16 %v400, %v393
  %v569 = vpack.c.b16 %v401, %v394
  %v570 = vpack.c.b16 %v402, %v395
  %v571 = vpack.c.b16 %v403, %v396
  %v572 = vpack.c.b16 %v404, %v397
  %v573 = vpack.c.b16 %v405, %v398
  %v574 = vpack.c.b16 %v413, %v406
  %v575 = vpack.c.b16 %v414, %v407
  %v576 = vpack.c.b16 %v415, %v408
  %v577 = vpack.c.b16 %v416, %v409
  %v578 = vpack.c.b16 %v417, %v410
  %v579 = vpack.c.b16 %v418, %v411
  %v580 = vpack.c.b16 %v419, %v412
  %v581 = vpack.c.b16 %v427, %v420
  %v582 = vpack.c.b16 %v428, %v421
  %v583 = vpack.c.b16 %v429, %v422
  %v584 = vpack.c.b16 %v430, %v423
  %v585 = vpack.c.b16 %v431, %v424
  %v586 = vpack.c.b16 %v432, %v425
  %v587 = vpack.c.b16 %v433, %v426
  %v588 = vpack.c.b16 %v441, %v434
  %v589 = vpack.c.b16 %v442, %v435
  %v590 = vpack.c.b16 %v443, %v436
  %v591 = vpack.c.b16 %v444, %v437
  %v592 = vpack.c.b16 %v445, %v438
  %v593 = vpack.c.b16 %v446, %v439
  %v594 = vpack.c.b16 %v447, %v440
  %v595 = vpack.c.b16 %v455, %v448
  %v596 = vpack.c.b16 %v456, %v449
  %v597 = vpack.c.b16 %v457, %v450
  %v598 = vpack.c.b16 %v458, %v451
  %v599 = vpack.c.b16 %v459, %v452
  %v600 = vpack.c.b16 %v460, %v453
  %v601 = vpack.c.b16 %v461, %v454
  %v602 = vpack.c.b16 %v469, %v462
  %v603 = vpack.c.b16 %v470, %v463
  %v604 = vpack.c.b16 %v471, %v464
  %v605 = vpack.c.b16 %v472, %v465
  %v606 = vpack.c.b16 %v473, %v466
  %v607 = vpack.c.b16 %v474, %v467
  %v608 = vpack.c.b16 %v475, %v468
  %v609 = vpack.c.b16 %v483, %v476
  %v610 = vpack.c.b16 %v484, %v477
  %v611 = vpack.c.b16 %v485, %v478
  %v612 = vpack.c.b16 %v486, %v479
  %v613 = vpack.c.b16 %v487, %v480
  %v614 = vpack.c.b16 %v488, %v481
  %v615 = vpack.c.b16 %v489, %v482
  %v616 = vpack.c.b16 %v497, %v490
  %v617 = vpack.c.b16 %v498, %v491
  %v618 = vpack.c.b16 %v499, %v492
  %v619 = vpack.c.b16 %v500, %v493
  %v620 = vpack.c.b16 %v501, %v494
  %v621 = vpack.c.b16 %v502, %v495
  %v622 = vpack.c.b16 %v503, %v496
  %v623 = vpack.c.b16 %v511, %v504
  %v624 = vpack.c.b16 %v512, %v505
  %v625 = vpack.c.b16 %v513, %v506
  %v626 = vpack.c.b16 %v514, %v507
  %v627 = vpack.c.b16 %v515, %v508
  %v628 = vpack.c.b16 %v516, %v509
  %v629 = vpack.c.b16 %v517, %v510
  %742 = vmatpush.bf16.msra.mxu0 %v567
  %743 = vmatpush.bf16.msra.mxu0 %v560
  %744 = vmatpush.bf16.msra.mxu0 %v553
  %745 = vmatpush.bf16.msra.mxu0 %v546
  %746 = vmatpush.bf16.msra.mxu0 %v539
  %747 = vmatpush.bf16.msra.mxu0 %v532
  %748 = vmatpush.bf16.msra.mxu0 %v525
  %749 = vmatpush.bf16.msra.mxu0 %v518
  %750 = vmatmul.bf16.gmra.mxu0 %v162
  %v751 = vpop.f32.mrf.mxu0
  %v752 = vadd.f32 %v149, %v751
  %v753 = vpop.f32.mrf.mxu0
  %v754 = vadd.f32 %v154, %v753
  %755 = vdwg.mxu0
  %756 = vmatpush.bf16.msra.mxu0 %v623
  %757 = vmatpush.bf16.msra.mxu0 %v616
  %758 = vmatpush.bf16.msra.mxu0 %v609
  %759 = vmatpush.bf16.msra.mxu0 %v602
  %760 = vmatpush.bf16.msra.mxu0 %v595
  %761 = vmatpush.bf16.msra.mxu0 %v588
  %762 = vmatpush.bf16.msra.mxu0 %v581
  %763 = vmatpush.bf16.msra.mxu0 %v574
  %764 = vmatmul.bf16.gmra.mxu0 %v163
  %v765 = vpop.f32.mrf.mxu0
  %v766 = vadd.f32 %v752, %v765
  %v767 = vpop.f32.mrf.mxu0
  %v768 = vadd.f32 %v754, %v767
  %769 = vdwg.mxu0
  %770 = vmatpush.bf16.msra.mxu0 %v568
  %771 = vmatpush.bf16.msra.mxu0 %v561
  %772 = vmatpush.bf16.msra.mxu0 %v554
  %773 = vmatpush.bf16.msra.mxu0 %v547
  %774 = vmatpush.bf16.msra.mxu0 %v540
  %775 = vmatpush.bf16.msra.mxu0 %v533
  %776 = vmatpush.bf16.msra.mxu0 %v526
  %777 = vmatpush.bf16.msra.mxu0 %v519
  %778 = vmatmul.bf16.gmra.mxu0 %v162
  %v779 = vpop.f32.mrf.mxu0
  %v780 = vadd.f32 %v149, %v779
  %v781 = vpop.f32.mrf.mxu0
  %v782 = vadd.f32 %v154, %v781
  %783 = vdwg.mxu0
  %784 = vmatpush.bf16.msra.mxu0 %v624
  %785 = vmatpush.bf16.msra.mxu0 %v617
  %786 = vmatpush.bf16.msra.mxu0 %v610
  %787 = vmatpush.bf16.msra.mxu0 %v603
  %788 = vmatpush.bf16.msra.mxu0 %v596
  %789 = vmatpush.bf16.msra.mxu0 %v589
  %790 = vmatpush.bf16.msra.mxu0 %v582
  %791 = vmatpush.bf16.msra.mxu0 %v575
  %792 = vmatmul.bf16.gmra.mxu0 %v163
  %v793 = vpop.f32.mrf.mxu0
  %v794 = vadd.f32 %v780, %v793
  %v795 = vpop.f32.mrf.mxu0
  %v796 = vadd.f32 %v782, %v795
  %797 = vdwg.mxu0
  %798 = vmatpush.bf16.msra.mxu0 %v569
  %799 = vmatpush.bf16.msra.mxu0 %v562
  %800 = vmatpush.bf16.msra.mxu0 %v555
  %801 = vmatpush.bf16.msra.mxu0 %v548
  %802 = vmatpush.bf16.msra.mxu0 %v541
  %803 = vmatpush.bf16.msra.mxu0 %v534
  %804 = vmatpush.bf16.msra.mxu0 %v527
  %805 = vmatpush.bf16.msra.mxu0 %v520
  %806 = vmatmul.bf16.gmra.mxu0 %v162
  %v807 = vpop.f32.mrf.mxu0
  %v808 = vadd.f32 %v149, %v807
  %v809 = vpop.f32.mrf.mxu0
  %v810 = vadd.f32 %v154, %v809
  %811 = vdwg.mxu0
  %812 = vmatpush.bf16.msra.mxu0 %v625
  %813 = vmatpush.bf16.msra.mxu0 %v618
  %814 = vmatpush.bf16.msra.mxu0 %v611
  %815 = vmatpush.bf16.msra.mxu0 %v604
  %816 = vmatpush.bf16.msra.mxu0 %v597
  %817 = vmatpush.bf16.msra.mxu0 %v590
  %818 = vmatpush.bf16.msra.mxu0 %v583
  %819 = vmatpush.bf16.msra.mxu0 %v576
  %820 = vmatmul.bf16.gmra.mxu0 %v163
  %v821 = vpop.f32.mrf.mxu0
  %v822 = vadd.f32 %v808, %v821
  %v823 = vpop.f32.mrf.mxu0
  %v824 = vadd.f32 %v810, %v823
  %825 = vdwg.mxu0
  %826 = vmatpush.bf16.msra.mxu0 %v570
  %827 = vmatpush.bf16.msra.mxu0 %v563
  %828 = vmatpush.bf16.msra.mxu0 %v556
  %829 = vmatpush.bf16.msra.mxu0 %v549
  %830 = vmatpush.bf16.msra.mxu0 %v542
  %831 = vmatpush.bf16.msra.mxu0 %v535
  %832 = vmatpush.bf16.msra.mxu0 %v528
  %833 = vmatpush.bf16.msra.mxu0 %v521
  %834 = vmatmul.bf16.gmra.mxu0 %v162
  %v835 = vpop.f32.mrf.mxu0
  %v836 = vadd.f32 %v149, %v835
  %v837 = vpop.f32.mrf.mxu0
  %v838 = vadd.f32 %v154, %v837
  %839 = vdwg.mxu0
  %840 = vmatpush.bf16.msra.mxu0 %v626
  %841 = vmatpush.bf16.msra.mxu0 %v619
  %842 = vmatpush.bf16.msra.mxu0 %v612
  %843 = vmatpush.bf16.msra.mxu0 %v605
  %844 = vmatpush.bf16.msra.mxu0 %v598
  %845 = vmatpush.bf16.msra.mxu0 %v591
  %846 = vmatpush.bf16.msra.mxu0 %v584
  %847 = vmatpush.bf16.msra.mxu0 %v577
  %848 = vmatmul.bf16.gmra.mxu0 %v163
  %v849 = vpop.f32.mrf.mxu0
  %v850 = vadd.f32 %v836, %v849
  %v851 = vpop.f32.mrf.mxu0
  %v852 = vadd.f32 %v838, %v851
  %853 = vdwg.mxu0
  %854 = vmatpush.bf16.msra.mxu0 %v571
  %855 = vmatpush.bf16.msra.mxu0 %v564
  %856 = vmatpush.bf16.msra.mxu0 %v557
  %857 = vmatpush.bf16.msra.mxu0 %v550
  %858 = vmatpush.bf16.msra.mxu0 %v543
  %859 = vmatpush.bf16.msra.mxu0 %v536
  %860 = vmatpush.bf16.msra.mxu0 %v529
  %861 = vmatpush.bf16.msra.mxu0 %v522
  %862 = vmatmul.bf16.gmra.mxu0 %v162
  %v863 = vpop.f32.mrf.mxu0
  %v864 = vadd.f32 %v149, %v863
  %v865 = vpop.f32.mrf.mxu0
  %v866 = vadd.f32 %v154, %v865
  %867 = vdwg.mxu0
  %868 = vmatpush.bf16.msra.mxu0 %v627
  %869 = vmatpush.bf16.msra.mxu0 %v620
  %870 = vmatpush.bf16.msra.mxu0 %v613
  %871 = vmatpush.bf16.msra.mxu0 %v606
  %872 = vmatpush.bf16.msra.mxu0 %v599
  %873 = vmatpush.bf16.msra.mxu0 %v592
  %874 = vmatpush.bf16.msra.mxu0 %v585
  %875 = vmatpush.bf16.msra.mxu0 %v578
  %876 = vmatmul.bf16.gmra.mxu0 %v163
  %v877 = vpop.f32.mrf.mxu0
  %v878 = vadd.f32 %v864, %v877
  %v879 = vpop.f32.mrf.mxu0
  %v880 = vadd.f32 %v866, %v879
  %881 = vdwg.mxu0
  %882 = vmatpush.bf16.msra.mxu0 %v572
  %883 = vmatpush.bf16.msra.mxu0 %v565
  %884 = vmatpush.bf16.msra.mxu0 %v558
  %885 = vmatpush.bf16.msra.mxu0 %v551
  %886 = vmatpush.bf16.msra.mxu0 %v544
  %887 = vmatpush.bf16.msra.mxu0 %v537
  %888 = vmatpush.bf16.msra.mxu0 %v530
  %889 = vmatpush.bf16.msra.mxu0 %v523
  %890 = vmatmul.bf16.gmra.mxu0 %v162
  %v891 = vpop.f32.mrf.mxu0
  %v892 = vadd.f32 %v149, %v891
  %v893 = vpop.f32.mrf.mxu0
  %v894 = vadd.f32 %v154, %v893
  %895 = vdwg.mxu0
  %896 = vmatpush.bf16.msra.mxu0 %v628
  %897 = vmatpush.bf16.msra.mxu0 %v621
  %898 = vmatpush.bf16.msra.mxu0 %v614
  %899 = vmatpush.bf16.msra.mxu0 %v607
  %900 = vmatpush.bf16.msra.mxu0 %v600
  %901 = vmatpush.bf16.msra.mxu0 %v593
  %902 = vmatpush.bf16.msra.mxu0 %v586
  %903 = vmatpush.bf16.msra.mxu0 %v579
  %904 = vmatmul.bf16.gmra.mxu0 %v163
  %v905 = vpop.f32.mrf.mxu0
  %v906 = vadd.f32 %v892, %v905
  %v907 = vpop.f32.mrf.mxu0
  %v908 = vadd.f32 %v894, %v907
  %909 = vdwg.mxu0
  %910 = vmatpush.bf16.msra.mxu0 %v573
  %911 = vmatpush.bf16.msra.mxu0 %v566
  %912 = vmatpush.bf16.msra.mxu0 %v559
  %913 = vmatpush.bf16.msra.mxu0 %v552
  %914 = vmatpush.bf16.msra.mxu0 %v545
  %915 = vmatpush.bf16.msra.mxu0 %v538
  %916 = vmatpush.bf16.msra.mxu0 %v531
  %917 = vmatpush.bf16.msra.mxu0 %v524
  %918 = vmatmul.bf16.gmra.mxu0 %v162
  %v919 = vpop.f32.mrf.mxu0
  %v920 = vadd.f32 %v149, %v919
  %v921 = vpop.f32.mrf.mxu0
  %v922 = vadd.f32 %v154, %v921
  %923 = vdwg.mxu0
  %924 = vmatpush.bf16.msra.mxu0 %v629
  %925 = vmatpush.bf16.msra.mxu0 %v622
  %926 = vmatpush.bf16.msra.mxu0 %v615
  %927 = vmatpush.bf16.msra.mxu0 %v608
  %928 = vmatpush.bf16.msra.mxu0 %v601
  %929 = vmatpush.bf16.msra.mxu0 %v594
  %930 = vmatpush.bf16.msra.mxu0 %v587
  %931 = vmatpush.bf16.msra.mxu0 %v580
  %932 = vmatmul.bf16.gmra.mxu0 %v163
  %v933 = vpop.f32.mrf.mxu0
  %v934 = vadd.f32 %v920, %v933
  %v935 = vpop.f32.mrf.mxu0
  %v936 = vadd.f32 %v922, %v935
  %937 = vdwg.mxu0
  %v938 = vmax.f32 %v766, 0.0
  %v939 = vmax.f32 %v794, 0.0
  %v940 = vmax.f32 %v822, 0.0
  %v941 = vmax.f32 %v850, 0.0
  %v942 = vmax.f32 %v878, 0.0
  %v943 = vmax.f32 %v906, 0.0
  %v944 = vmax.f32 %v934, 0.0
  %v945 = vmax.f32 %v768, 0.0
  %v946 = vmax.f32 %v796, 0.0
  %v947 = vmax.f32 %v824, 0.0
  %v948 = vmax.f32 %v852, 0.0
  %v949 = vmax.f32 %v880, 0.0
  %v950 = vmax.f32 %v908, 0.0
  %v951 = vmax.f32 %v936, 0.0
  %v952 = vpack.c.bf16 %v939, %v938
  %v953 = vpack.c.bf16 %v941, %v940
  %v954 = vpack.c.bf16 %v943, %v942
  %v955 = vpack.c.bf16 %v944, %v944
  %v956 = vpack.c.bf16 %v946, %v945
  %v957 = vpack.c.bf16 %v948, %v947
  %v958 = vpack.c.bf16 %v950, %v949
  %v959 = vpack.c.bf16 %v951, %v951
  %960 = vst [vmem:[%s3] sm:$0xff] %v952
  %961 = vst [vmem:[%s3 + $0x8] sm:$0xff] %v953
  %962 = vst [vmem:[%s3 + $0x10] sm:$0xff] %v954
  %963 = vst [vmem:[%s3 + $0x18] sm:$0xf] %v955
  %964 = vst [vmem:[%s3 + $0x1c] sm:$0xff] %v956
  %965 = vst [vmem:[%s3 + $0x24] sm:$0xff] %v957
  %966 = vst [vmem:[%s3 + $0x2c] sm:$0xff] %v958
  %967 = vst [vmem:[%s3 + $0x34] sm:$0xf] %v959
  // Predicated region
  $region14: #{mnih2016_forward.3} parent=0 // pred_check
    _
  $region15: #{mnih2016_forward.3} parent=0 // pred_check_branch
    %969 = sbr.rel (0) target = $region17
  $region16: #{mnih2016_forward.3} parent=0 // pred_region
    _
  $region17: #{mnih2016_forward.3} parent=0 // pred_fallthru
    _
  // Predicated region
  $region18: #{mnih2016_forward.3} parent=0 // pred_check
    _
  $region19: #{mnih2016_forward.3} parent=0 // pred_check_branch
    %971 = sbr.rel (0) target = $region21
  $region20: #{mnih2016_forward.3} parent=0 // pred_region
    _
  $region21: #{mnih2016_forward.3} parent=0 // pred_fallthru
    _

// kernel: mnih2016_forward.4
$region0: #{mnih2016_forward.4}
  #allocation0 [shape = 'u32[]', space=smem, size = 0x4, offset = 0x4, fixed_abs, tag = 'smem constant byte address 0x4 - core index']
  #allocation1 [shape = 'u32[72,128]{1,0:T(1,128)}', space=vmem, size = 0x9000, scoped, tag = 'internal scratch']
  %s0 = inlined_call_operand.vmem [shape: bf16[32,256], index: 0, kind: input, shape index: {}]
  %s1 = inlined_call_operand.vmem [shape: bf16[256,256], index: 1, kind: input, shape index: {}]
  %s2 = inlined_call_operand.vmem [shape: f32[32,1], index: 2, kind: input, shape index: {}]
  %s3 = inlined_call_operand.vmem [shape: bf16[32,256], index: 3, kind: output, shape index: {}]
  %s4 = sld [smem:[#allocation0]]
  $region22: #{mnih2016_forward.4} parent=0
    _
  %s6 = ssub.s32 1, %s4
  %s7 = scalar_select 0, %s6, %s4
  // Predicated region
  $region2: #{mnih2016_forward.4} parent=0 // pred_check
    _
  $region3: #{mnih2016_forward.4} parent=0 // pred_check_branch
    %9 = sbr.rel (0) target = $region5
  $region4: #{mnih2016_forward.4} parent=0 // pred_region
    _
  $region5: #{mnih2016_forward.4} parent=0 // pred_fallthru
    _
  // Predicated region
  $region6: #{mnih2016_forward.4} parent=0 // pred_check
    _
  $region7: #{mnih2016_forward.4} parent=0 // pred_check_branch
    %11 = sbr.rel (0) target = $region9
  $region8: #{mnih2016_forward.4} parent=0 // pred_region
    _
  $region9: #{mnih2016_forward.4} parent=0 // pred_fallthru
    _
  // Predicated region
  $region10: #{mnih2016_forward.4} parent=0 // pred_check
    _
  $region11: #{mnih2016_forward.4} parent=0 // pred_check_branch
    %13 = sbr.rel (0) target = $region13
  $region12: #{mnih2016_forward.4} parent=0 // pred_region
    _
  $region13: #{mnih2016_forward.4} parent=0 // pred_fallthru
    _
  %v14 = vld [vmem:[%s0] sm:$0xff]
  %v15 = vld [vmem:[%s0 + $0x8] sm:$0xff]
  %v16 = vld [vmem:[%s0 + $0x10] sm:$0xff]
  %v17 = vld [vmem:[%s0 + $0x18] sm:$0xff]
  %v18 = vld [vmem:[%s1] sm:$0xff]
  %v19 = vld [vmem:[%s1 + $0x8] sm:$0xff]
  %v20 = vld [vmem:[%s1 + $0x10] sm:$0xff]
  %v21 = vld [vmem:[%s1 + $0x18] sm:$0xff]
  %v22 = vld [vmem:[%s1 + $0x20] sm:$0xff]
  %v23 = vld [vmem:[%s1 + $0x28] sm:$0xff]
  %v24 = vld [vmem:[%s1 + $0x30] sm:$0xff]
  %v25 = vld [vmem:[%s1 + $0x38] sm:$0xff]
  %v26 = vld [vmem:[%s1 + $0x40] sm:$0xff]
  %v27 = vld [vmem:[%s1 + $0x48] sm:$0xff]
  %v28 = vld [vmem:[%s1 + $0x50] sm:$0xff]
  %v29 = vld [vmem:[%s1 + $0x58] sm:$0xff]
  %v30 = vld [vmem:[%s1 + $0x60] sm:$0xff]
  %v31 = vld [vmem:[%s1 + $0x68] sm:$0xff]
  %v32 = vld [vmem:[%s1 + $0x70] sm:$0xff]
  %v33 = vld [vmem:[%s1 + $0x78] sm:$0xff]
  %v34 = vld [vmem:[%s1 + $0x80] sm:$0xff]
  %v35 = vld [vmem:[%s1 + $0x88] sm:$0xff]
  %v36 = vld [vmem:[%s1 + $0x90] sm:$0xff]
  %v37 = vld [vmem:[%s1 + $0x98] sm:$0xff]
  %v38 = vld [vmem:[%s1 + $0xa0] sm:$0xff]
  %v39 = vld [vmem:[%s1 + $0xa8] sm:$0xff]
  %v40 = vld [vmem:[%s1 + $0xb0] sm:$0xff]
  %v41 = vld [vmem:[%s1 + $0xb8] sm:$0xff]
  %v42 = vld [vmem:[%s1 + $0xc0] sm:$0xff]
  %v43 = vld [vmem:[%s1 + $0xc8] sm:$0xff]
  %v44 = vld [vmem:[%s1 + $0xd0] sm:$0xff]
  %v45 = vld [vmem:[%s1 + $0xd8] sm:$0xff]
  %v46 = vld [vmem:[%s1 + $0xe0] sm:$0xff]
  %v47 = vld [vmem:[%s1 + $0xe8] sm:$0xff]
  %v48 = vld [vmem:[%s1 + $0xf0] sm:$0xff]
  %v49 = vld [vmem:[%s1 + $0xf8] sm:$0xff]
  %v50 = vld [vmem:[%s2] sm:$0xff]
  %v51 = vld [vmem:[%s2 + $0x8] sm:$0xff]
  %v52 = vld [vmem:[%s2 + $0x10] sm:$0xff]
  %v53 = vld [vmem:[%s2 + $0x18] sm:$0xff]
  %55 = vset.pattern.permute.xlu0 0
  %56 = vperm.xlu0 %55, %v50
  %v57 = vpop.permute.xlu0 %56
  %60 = vset.pattern.permute.xlu0 0
  %61 = vperm.xlu0 %60, %v51
  %v62 = vpop.permute.xlu0 %61
  %65 = vset.pattern.permute.xlu0 0
  %66 = vperm.xlu0 %65, %v52
  %v67 = vpop.permute.xlu0 %66
  %70 = vset.pattern.permute.xlu0 0
  %71 = vperm.xlu0 %70, %v53
  %v72 = vpop.permute.xlu0 %71
  %v78 = vunpack.c.l.b16 %v14
  %v79 = vunpack.c.h.b16 %v14
  %v80 = vunpack.c.l.b16 %v15
  %v81 = vunpack.c.h.b16 %v15
  %v82 = vunpack.c.l.b16 %v16
  %v83 = vunpack.c.h.b16 %v16
  %v84 = vunpack.c.l.b16 %v17
  %v85 = vunpack.c.h.b16 %v17
  %v86 = vpack.c.b16 %v80, %v78
  %v87 = vpack.c.b16 %v81, %v79
  %v88 = vpack.c.b16 %v84, %v82
  %v89 = vpack.c.b16 %v85, %v83
  %v126 = vunpack.c.l.b16 %v18
  %v127 = vunpack.c.h.b16 %v18
  %v128 = vunpack.c.l.b16 %v19
  %v129 = vunpack.c.h.b16 %v19
  %v130 = vunpack.c.l.b16 %v20
  %v131 = vunpack.c.h.b16 %v20
  %v132 = vunpack.c.l.b16 %v21
  %v133 = vunpack.c.h.b16 %v21
  %v134 = vunpack.c.l.b16 %v22
  %v135 = vunpack.c.h.b16 %v22
  %v136 = vunpack.c.l.b16 %v23
  %v137 = vunpack.c.h.b16 %v23
  %v138 = vunpack.c.l.b16 %v24
  %v139 = vunpack.c.h.b16 %v24
  %v140 = vunpack.c.l.b16 %v25
  %v141 = vunpack.c.h.b16 %v25
  %v142 = vunpack.c.l.b16 %v26
  %v143 = vunpack.c.h.b16 %v26
  %v144 = vunpack.c.l.b16 %v27
  %v145 = vunpack.c.h.b16 %v27
  %v146 = vunpack.c.l.b16 %v28
  %v147 = vunpack.c.h.b16 %v28
  %v148 = vunpack.c.l.b16 %v29
  %v149 = vunpack.c.h.b16 %v29
  %v150 = vunpack.c.l.b16 %v30
  %v151 = vunpack.c.h.b16 %v30
  %v152 = vunpack.c.l.b16 %v31
  %v153 = vunpack.c.h.b16 %v31
  %v154 = vunpack.c.l.b16 %v32
  %v155 = vunpack.c.h.b16 %v32
  %v156 = vunpack.c.l.b16 %v33
  %v157 = vunpack.c.h.b16 %v33
  %v158 = vunpack.c.l.b16 %v34
  %v159 = vunpack.c.h.b16 %v34
  %v160 = vunpack.c.l.b16 %v35
  %v161 = vunpack.c.h.b16 %v35
  %v162 = vunpack.c.l.b16 %v36
  %v163 = vunpack.c.h.b16 %v36
  %v164 = vunpack.c.l.b16 %v37
  %v165 = vunpack.c.h.b16 %v37
  %v166 = vunpack.c.l.b16 %v38
  %v167 = vunpack.c.h.b16 %v38
  %v168 = vunpack.c.l.b16 %v39
  %v169 = vunpack.c.h.b16 %v39
  %v170 = vunpack.c.l.b16 %v40
  %v171 = vunpack.c.h.b16 %v40
  %v172 = vunpack.c.l.b16 %v41
  %v173 = vunpack.c.h.b16 %v41
  %v174 = vunpack.c.l.b16 %v42
  %v175 = vunpack.c.h.b16 %v42
  %v176 = vunpack.c.l.b16 %v43
  %v177 = vunpack.c.h.b16 %v43
  %v178 = vunpack.c.l.b16 %v44
  %v179 = vunpack.c.h.b16 %v44
  %v180 = vunpack.c.l.b16 %v45
  %v181 = vunpack.c.h.b16 %v45
  %v182 = vunpack.c.l.b16 %v46
  %v183 = vunpack.c.h.b16 %v46
  %v184 = vunpack.c.l.b16 %v47
  %v185 = vunpack.c.h.b16 %v47
  %v186 = vunpack.c.l.b16 %v48
  %v187 = vunpack.c.h.b16 %v48
  %v188 = vunpack.c.l.b16 %v49
  %v189 = vunpack.c.h.b16 %v49
  %v190 = vpack.c.b16 %v128, %v126
  %v191 = vpack.c.b16 %v129, %v127
  %v192 = vpack.c.b16 %v132, %v130
  %v193 = vpack.c.b16 %v133, %v131
  %v194 = vpack.c.b16 %v136, %v134
  %v195 = vpack.c.b16 %v137, %v135
  %v196 = vpack.c.b16 %v140, %v138
  %v197 = vpack.c.b16 %v141, %v139
  %v198 = vpack.c.b16 %v144, %v142
  %v199 = vpack.c.b16 %v145, %v143
  %v200 = vpack.c.b16 %v148, %v146
  %v201 = vpack.c.b16 %v149, %v147
  %v202 = vpack.c.b16 %v152, %v150
  %v203 = vpack.c.b16 %v153, %v151
  %v204 = vpack.c.b16 %v156, %v154
  %v205 = vpack.c.b16 %v157, %v155
  %v206 = vpack.c.b16 %v160, %v158
  %v207 = vpack.c.b16 %v161, %v159
  %v208 = vpack.c.b16 %v164, %v162
  %v209 = vpack.c.b16 %v165, %v163
  %v210 = vpack.c.b16 %v168, %v166
  %v211 = vpack.c.b16 %v169, %v167
  %v212 = vpack.c.b16 %v172, %v170
  %v213 = vpack.c.b16 %v173, %v171
  %v214 = vpack.c.b16 %v176, %v174
  %v215 = vpack.c.b16 %v177, %v175
  %v216 = vpack.c.b16 %v180, %v178
  %v217 = vpack.c.b16 %v181, %v179
  %v218 = vpack.c.b16 %v184, %v182
  %v219 = vpack.c.b16 %v185, %v183
  %v220 = vpack.c.b16 %v188, %v186
  %v221 = vpack.c.b16 %v189, %v187
  %254 = vmatpush.bf16.msra.mxu0 %v204
  %255 = vmatpush.bf16.msra.mxu0 %v202
  %256 = vmatpush.bf16.msra.mxu0 %v200
  %257 = vmatpush.bf16.msra.mxu0 %v198
  %258 = vmatpush.bf16.msra.mxu0 %v196
  %259 = vmatpush.bf16.msra.mxu0 %v194
  %260 = vmatpush.bf16.msra.mxu0 %v192
  %261 = vmatpush.bf16.msra.mxu0 %v190
  %262 = vmatmul.bf16.gmra.mxu0 %v86
  %v263 = vpop.f32.mrf.mxu0
  %v264 = vadd.f32 %v57, %v263
  %v265 = vpop.f32.mrf.mxu0
  %v266 = vadd.f32 %v62, %v265
  %267 = vmatmul.bf16.gmra.mxu0 %v88
  %v268 = vpop.f32.mrf.mxu0
  %v269 = vadd.f32 %v67, %v268
  %v270 = vpop.f32.mrf.mxu0
  %v271 = vadd.f32 %v72, %v270
  %272 = vdwg.mxu0
  %273 = vmatpush.bf16.msra.mxu0 %v220
  %274 = vmatpush.bf16.msra.mxu0 %v218
  %275 = vmatpush.bf16.msra.mxu0 %v216
  %276 = vmatpush.bf16.msra.mxu0 %v214
  %277 = vmatpush.bf16.msra.mxu0 %v212
  %278 = vmatpush.bf16.msra.mxu0 %v210
  %279 = vmatpush.bf16.msra.mxu0 %v208
  %280 = vmatpush.bf16.msra.mxu0 %v206
  %281 = vmatmul.bf16.gmra.mxu0 %v87
  %v282 = vpop.f32.mrf.mxu0
  %v283 = vadd.f32 %v264, %v282
  %v284 = vpop.f32.mrf.mxu0
  %v285 = vadd.f32 %v266, %v284
  %286 = vmatmul.bf16.gmra.mxu0 %v89
  %v287 = vpop.f32.mrf.mxu0
  %v288 = vadd.f32 %v269, %v287
  %v289 = vpop.f32.mrf.mxu0
  %v290 = vadd.f32 %v271, %v289
  %291 = vdwg.mxu0
  %292 = vmatpush.bf16.msra.mxu0 %v205
  %293 = vmatpush.bf16.msra.mxu0 %v203
  %294 = vmatpush.bf16.msra.mxu0 %v201
  %295 = vmatpush.bf16.msra.mxu0 %v199
  %296 = vmatpush.bf16.msra.mxu0 %v197
  %297 = vmatpush.bf16.msra.mxu0 %v195
  %298 = vmatpush.bf16.msra.mxu0 %v193
  %299 = vmatpush.bf16.msra.mxu0 %v191
  %300 = vmatmul.bf16.gmra.mxu0 %v86
  %v301 = vpop.f32.mrf.mxu0
  %v302 = vadd.f32 %v57, %v301
  %v303 = vpop.f32.mrf.mxu0
  %v304 = vadd.f32 %v62, %v303
  %305 = vmatmul.bf16.gmra.mxu0 %v88
  %v306 = vpop.f32.mrf.mxu0
  %v307 = vadd.f32 %v67, %v306
  %v308 = vpop.f32.mrf.mxu0
  %v309 = vadd.f32 %v72, %v308
  %310 = vdwg.mxu0
  %311 = vmatpush.bf16.msra.mxu0 %v221
  %312 = vmatpush.bf16.msra.mxu0 %v219
  %313 = vmatpush.bf16.msra.mxu0 %v217
  %314 = vmatpush.bf16.msra.mxu0 %v215
  %315 = vmatpush.bf16.msra.mxu0 %v213
  %316 = vmatpush.bf16.msra.mxu0 %v211
  %317 = vmatpush.bf16.msra.mxu0 %v209
  %318 = vmatpush.bf16.msra.mxu0 %v207
  %319 = vmatmul.bf16.gmra.mxu0 %v87
  %v320 = vpop.f32.mrf.mxu0
  %v321 = vadd.f32 %v302, %v320
  %v322 = vpop.f32.mrf.mxu0
  %v323 = vadd.f32 %v304, %v322
  %324 = vmatmul.bf16.gmra.mxu0 %v89
  %v325 = vpop.f32.mrf.mxu0
  %v326 = vadd.f32 %v307, %v325
  %v327 = vpop.f32.mrf.mxu0
  %v328 = vadd.f32 %v309, %v327
  %329 = vdwg.mxu0
  %v330 = vmax.f32 %v283, 0.0
  %v331 = vmax.f32 %v321, 0.0
  %v332 = vmax.f32 %v285, 0.0
  %v333 = vmax.f32 %v323, 0.0
  %v334 = vmax.f32 %v288, 0.0
  %v335 = vmax.f32 %v326, 0.0
  %v336 = vmax.f32 %v290, 0.0
  %v337 = vmax.f32 %v328, 0.0
  %v338 = vpack.c.bf16 %v331, %v330
  %v339 = vpack.c.bf16 %v333, %v332
  %v340 = vpack.c.bf16 %v335, %v334
  %v341 = vpack.c.bf16 %v337, %v336
  %342 = vst [vmem:[%s3] sm:$0xff] %v338
  %343 = vst [vmem:[%s3 + $0x8] sm:$0xff] %v339
  %344 = vst [vmem:[%s3 + $0x10] sm:$0xff] %v340
  %345 = vst [vmem:[%s3 + $0x18] sm:$0xff] %v341
  // Predicated region
  $region14: #{mnih2016_forward.4} parent=0 // pred_check
    _
  $region15: #{mnih2016_forward.4} parent=0 // pred_check_branch
    %347 = sbr.rel (0) target = $region17
  $region16: #{mnih2016_forward.4} parent=0 // pred_region
    _
  $region17: #{mnih2016_forward.4} parent=0 // pred_fallthru
    _
  // Predicated region
  $region18: #{mnih2016_forward.4} parent=0 // pred_check
    _
  $region19: #{mnih2016_forward.4} parent=0 // pred_check_branch
    %349 = sbr.rel (0) target = $region21
  $region20: #{mnih2016_forward.4} parent=0 // pred_region
    _
  $region21: #{mnih2016_forward.4} parent=0 // pred_fallthru
    _

// kernel: mnih2016_forward.5
$region0: #{mnih2016_forward.5}
  #allocation0 [shape = 'u32[]', space=smem, size = 0x4, offset = 0x4, fixed_abs, tag = 'smem constant byte address 0x4 - core index']
  #allocation1 [shape = 'u32[72,128]{1,0:T(1,128)}', space=vmem, size = 0x9000, scoped, tag = 'internal scratch']
  #allocation2 [shape = 'f32[2,1024]{1,0:T(2,128)}', space=vmem, size = 0x2000, scoped, tag = 'scratch operand']
  %s0 = inlined_call_operand.vmem [shape: bf16[2,2688], index: 0, kind: input, shape index: {}]
  %s1 = inlined_call_operand.vmem [shape: bf16[2688,1024], index: 1, kind: input, shape index: {}]
  %s2 = inlined_call_operand.vmem [shape: f32[2,256], index: 2, kind: input, shape index: {}]
  %s3 = inlined_call_operand.vmem [shape: f32[2,256], index: 3, kind: input, shape index: {}]
  %s4 = inlined_call_operand.vmem [shape: bf16[256,1024], index: 4, kind: input, shape index: {}]
  %s5 = inlined_call_operand.vmem [shape: f32[1,1024], index: 5, kind: input, shape index: {}]
  %s6 = inlined_call_operand.vmem [shape: bf16[256,128], index: 6, kind: input, shape index: {}]
  %s7 = inlined_call_operand.vmem [shape: f32[1,128], index: 7, kind: input, shape index: {}]
  %s8 = inlined_call_operand.vmem [shape: f32[2,128], index: 8, kind: output, shape index: {0}]
  %s9 = inlined_call_operand.hbm [shape: f32[2,256], index: 9, kind: output, shape index: {1}]
  %s10 = inlined_call_operand.hbm [shape: f32[2,256], index: 10, kind: output, shape index: {2}]
  %11 = xla_tuple %s8, %s9, %s10
  %s12 = sld [smem:[#allocation0]]
  $region89: #{mnih2016_forward.5} parent=0
    _
  %s14 = ssub.s32 1, %s12
  %s15 = scalar_select 0, %s14, %s12
  $region1: #{mnih2016_forward.5} parent=0
    #allocation3 [shape = 'u8[2048]{0}', space=vmem, size = 0x800, scoped, tag = 'output window, operand 1, single buffered']
    #allocation4 [shape = 's32[2]{0}', space=sflag, size = 0x8, scoped, tag = 'scoped memory for mnih2016_forward.5']
    #allocation5 [shape = 'u8[2048]{0}', space=vmem, size = 0x800, scoped, tag = 'output window, operand 2, single buffered']
    #allocation6 [shape = 's32[1]{0}', space=sflag, size = 0x4, scoped, tag = 'scoped memory for mnih2016_forward.5']
    %16 = vsyncpa [#allocation4], 0
    %17 = vsyncpa [#allocation6], 0
    loop: start=0, step=1, limit=5
    $region2: #{mnih2016_forward.5} parent=1 // loop_pre_header
      _
    $region3: #{mnih2016_forward.5} parent=1 // loop_header
      %s19 = sphi 0, %s23
      %p20 = scmp.ge.s32.totalorder %s19, 5
      %s29 = sphi 0, %s31
      %s32 = sphi 0, %s29
      %s33 = sphi 0, %s32
      %s49 = sphi 0, %s33
      %s55 = sphi 0, %s57
      %s58 = sphi 0, %s55
      %s59 = sphi 0, %s58
      %s75 = sphi 0, %s59
      %s79 = sphi 0, %s79
      %s81 = sphi 0, %s79
      %s82 = sphi 0, %s81
      %s96 = sphi 0, %s82
      %s100 = sphi 0, %s100
      %s102 = sphi 0, %s100
      %s103 = sphi 0, %s102
      %s117 = sphi 0, %s103
      %s121 = sphi 0, %s121
      %s123 = sphi 0, %s121
      %s124 = sphi 0, %s123
      %s138 = sphi 0, %s124
      %s142 = sphi 0, %s142
      %s144 = sphi 0, %s142
      %s145 = sphi 0, %s144
      %s159 = sphi 0, %s145
      %s163 = sphi 0, %s163
      %s165 = sphi 0, %s163
      %s166 = sphi 0, %s165
      %s180 = sphi 0, %s166
      %s184 = sphi 0, %s184
      %s186 = sphi 0, %s184
      %s187 = sphi 0, %s186
      %s201 = sphi 0, %s187
      %s205 = sphi 0, %s205
      %s207 = sphi 0, %s205
      %s208 = sphi 0, %s207
      %s222 = sphi 0, %s208
      %s226 = sphi 0, %s226
      %s228 = sphi 0, %s226
      %s229 = sphi 0, %s228
      %s243 = sphi 0, %s229
      %s247 = sphi 0, %s247
      %s249 = sphi 0, %s247
      %s250 = sphi 0, %s249
      %s264 = sphi 0, %s250
    $region4: #{mnih2016_forward.5} parent=1 // loop_header_branch
      %22 = sbr.rel (%p20) target = $region8
    $region5: #{mnih2016_forward.5} parent=1 // loop_body
      %s24 = ssub.s32 %s19, 1
      %s25 = ssub.s32 %s19, 2
      %s26 = sadd.s32 %s19, 1
      %s27 = ssub.s32 %s19, %s26
      %p28 = scmp.eq.s32.totalorder %s27, 0
      %s30 = sadd.s32 %s29, 1
      %s31 = scalar_select %p28, %s29, %s30
      %p34 = pneg %p28
      %p35 = scmp.eq.s32.totalorder %s19, 2
      %p36 = por %p34, %p35
      %p37 = scmp.ne.s32.totalorder %s29, %s32
      %p38 = scmp.eq.s32.totalorder %s19, 0
      %p39 = por %p37, %p38
      %p40 = scmp.ne.s32.totalorder %s29, %s32
      %p41 = scmp.eq.s32.totalorder %s24, 2
      %p42 = por %p40, %p41
      %p43 = scmp.ne.s32.totalorder %s32, %s33
      %p44 = scmp.eq.s32.totalorder %s24, 0
      %p45 = por %p43, %p44
      %p46 = scmp.ne.s32.totalorder %s32, %s33
      %p47 = scmp.eq.s32.totalorder %s25, 2
      %p48 = por %p46, %p47
      %p50 = scmp.ne.s32.totalorder %s33, %s49
      %p51 = scmp.eq.s32.totalorder %s25, 0
      %p52 = por %p50, %p51
      %s53 = ssub.s32 %s19, %s26
      %p54 = scmp.eq.s32.totalorder %s53, 0
      %s56 = sadd.s32 %s55, 1
      %s57 = scalar_select %p54, %s55, %s56
      %p60 = pneg %p54
      %p61 = scmp.eq.s32.totalorder %s19, 2
      %p62 = por %p60, %p61
      %p63 = scmp.ne.s32.totalorder %s55, %s58
      %p64 = scmp.eq.s32.totalorder %s19, 0
      %p65 = por %p63, %p64
      %p66 = scmp.ne.s32.totalorder %s55, %s58
      %p67 = scmp.eq.s32.totalorder %s24, 2
      %p68 = por %p66, %p67
      %p69 = scmp.ne.s32.totalorder %s58, %s59
      %p70 = scmp.eq.s32.totalorder %s24, 0
      %p71 = por %p69, %p70
      %p72 = scmp.ne.s32.totalorder %s58, %s59
      %p73 = scmp.eq.s32.totalorder %s25, 2
      %p74 = por %p72, %p73
      %p76 = scmp.ne.s32.totalorder %s59, %s75
      %p77 = scmp.eq.s32.totalorder %s25, 0
      %p78 = por %p76, %p77
      %s80 = sadd.s32 %s79, 1
      %p83 = scmp.eq.s32.totalorder %s19, 2
      %p84 = scmp.ne.s32.totalorder %s79, %s81
      %p85 = scmp.eq.s32.totalorder %s19, 0
      %p86 = por %p84, %p85
      %p87 = scmp.ne.s32.totalorder %s79, %s81
      %p88 = scmp.eq.s32.totalorder %s24, 2
      %p89 = por %p87, %p88
      %p90 = scmp.ne.s32.totalorder %s81, %s82
      %p91 = scmp.eq.s32.totalorder %s24, 0
      %p92 = por %p90, %p91
      %p93 = scmp.ne.s32.totalorder %s81, %s82
      %p94 = scmp.eq.s32.totalorder %s25, 2
      %p95 = por %p93, %p94
      %p97 = scmp.ne.s32.totalorder %s82, %s96
      %p98 = scmp.eq.s32.totalorder %s25, 0
      %p99 = por %p97, %p98
      %s101 = sadd.s32 %s100, 1
      %p104 = scmp.eq.s32.totalorder %s19, 2
      %p105 = scmp.ne.s32.totalorder %s100, %s102
      %p106 = scmp.eq.s32.totalorder %s19, 0
      %p107 = por %p105, %p106
      %p108 = scmp.ne.s32.totalorder %s100, %s102
      %p109 = scmp.eq.s32.totalorder %s24, 2
      %p110 = por %p108, %p109
      %p111 = scmp.ne.s32.totalorder %s102, %s103
      %p112 = scmp.eq.s32.totalorder %s24, 0
      %p113 = por %p111, %p112
      %p114 = scmp.ne.s32.totalorder %s102, %s103
      %p115 = scmp.eq.s32.totalorder %s25, 2
      %p116 = por %p114, %p115
      %p118 = scmp.ne.s32.totalorder %s103, %s117
      %p119 = scmp.eq.s32.totalorder %s25, 0
      %p120 = por %p118, %p119
      %s122 = sadd.s32 %s121, 1
      %p125 = scmp.eq.s32.totalorder %s19, 2
      %p126 = scmp.ne.s32.totalorder %s121, %s123
      %p127 = scmp.eq.s32.totalorder %s19, 0
      %p128 = por %p126, %p127
      %p129 = scmp.ne.s32.totalorder %s121, %s123
      %p130 = scmp.eq.s32.totalorder %s24, 2
      %p131 = por %p129, %p130
      %p132 = scmp.ne.s32.totalorder %s123, %s124
      %p133 = scmp.eq.s32.totalorder %s24, 0
      %p134 = por %p132, %p133
      %p135 = scmp.ne.s32.totalorder %s123, %s124
      %p136 = scmp.eq.s32.totalorder %s25, 2
      %p137 = por %p135, %p136
      %p139 = scmp.ne.s32.totalorder %s124, %s138
      %p140 = scmp.eq.s32.totalorder %s25, 0
      %p141 = por %p139, %p140
      %s143 = sadd.s32 %s142, 1
      %p146 = scmp.eq.s32.totalorder %s19, 2
      %p147 = scmp.ne.s32.totalorder %s142, %s144
      %p148 = scmp.eq.s32.totalorder %s19, 0
      %p149 = por %p147, %p148
      %p150 = scmp.ne.s32.totalorder %s142, %s144
      %p151 = scmp.eq.s32.totalorder %s24, 2
      %p152 = por %p150, %p151
      %p153 = scmp.ne.s32.totalorder %s144, %s145
      %p154 = scmp.eq.s32.totalorder %s24, 0
      %p155 = por %p153, %p154
      %p156 = scmp.ne.s32.totalorder %s144, %s145
      %p157 = scmp.eq.s32.totalorder %s25, 2
      %p158 = por %p156, %p157
      %p160 = scmp.ne.s32.totalorder %s145, %s159
      %p161 = scmp.eq.s32.totalorder %s25, 0
      %p162 = por %p160, %p161
      %s164 = sadd.s32 %s163, 1
      %p167 = scmp.eq.s32.totalorder %s19, 2
      %p168 = scmp.ne.s32.totalorder %s163, %s165
      %p169 = scmp.eq.s32.totalorder %s19, 0
      %p170 = por %p168, %p169
      %p171 = scmp.ne.s32.totalorder %s163, %s165
      %p172 = scmp.eq.s32.totalorder %s24, 2
      %p173 = por %p171, %p172
      %p174 = scmp.ne.s32.totalorder %s165, %s166
      %p175 = scmp.eq.s32.totalorder %s24, 0
      %p176 = por %p174, %p175
      %p177 = scmp.ne.s32.totalorder %s165, %s166
      %p178 = scmp.eq.s32.totalorder %s25, 2
      %p179 = por %p177, %p178
      %p181 = scmp.ne.s32.totalorder %s166, %s180
      %p182 = scmp.eq.s32.totalorder %s25, 0
      %p183 = por %p181, %p182
      %s185 = sadd.s32 %s184, 1
      %p188 = scmp.eq.s32.totalorder %s19, 2
      %p189 = scmp.ne.s32.totalorder %s184, %s186
      %p190 = scmp.eq.s32.totalorder %s19, 0
      %p191 = por %p189, %p190
      %p192 = scmp.ne.s32.totalorder %s184, %s186
      %p193 = scmp.eq.s32.totalorder %s24, 2
      %p194 = por %p192, %p193
      %p195 = scmp.ne.s32.totalorder %s186, %s187
      %p196 = scmp.eq.s32.totalorder %s24, 0
      %p197 = por %p195, %p196
      %p198 = scmp.ne.s32.totalorder %s186, %s187
      %p199 = scmp.eq.s32.totalorder %s25, 2
      %p200 = por %p198, %p199
      %p202 = scmp.ne.s32.totalorder %s187, %s201
      %p203 = scmp.eq.s32.totalorder %s25, 0
      %p204 = por %p202, %p203
      %s206 = sadd.s32 %s205, 1
      %p209 = scmp.eq.s32.totalorder %s19, 2
      %p210 = scmp.ne.s32.totalorder %s205, %s207
      %p211 = scmp.eq.s32.totalorder %s19, 0
      %p212 = por %p210, %p211
      %p213 = scmp.ne.s32.totalorder %s205, %s207
      %p214 = scmp.eq.s32.totalorder %s24, 2
      %p215 = por %p213, %p214
      %p216 = scmp.ne.s32.totalorder %s207, %s208
      %p217 = scmp.eq.s32.totalorder %s24, 0
      %p218 = por %p216, %p217
      %p219 = scmp.ne.s32.totalorder %s207, %s208
      %p220 = scmp.eq.s32.totalorder %s25, 2
      %p221 = por %p219, %p220
      %p223 = scmp.ne.s32.totalorder %s208, %s222
      %p224 = scmp.eq.s32.totalorder %s25, 0
      %p225 = por %p223, %p224
      %s227 = sadd.s32 %s226, 1
      %p230 = scmp.eq.s32.totalorder %s19, 2
      %p231 = scmp.ne.s32.totalorder %s226, %s228
      %p232 = scmp.eq.s32.totalorder %s19, 0
      %p233 = por %p231, %p232
      %p234 = scmp.ne.s32.totalorder %s226, %s228
      %p235 = scmp.eq.s32.totalorder %s24, 2
      %p236 = por %p234, %p235
      %p237 = scmp.ne.s32.totalorder %s228, %s229
      %p238 = scmp.eq.s32.totalorder %s24, 0
      %p239 = por %p237, %p238
      %p240 = scmp.ne.s32.totalorder %s228, %s229
      %p241 = scmp.eq.s32.totalorder %s25, 2
      %p242 = por %p240, %p241
      %p244 = scmp.ne.s32.totalorder %s229, %s243
      %p245 = scmp.eq.s32.totalorder %s25, 0
      %p246 = por %p244, %p245
      %s248 = sadd.s32 %s247, 1
      %p251 = scmp.eq.s32.totalorder %s19, 2
      %p252 = scmp.ne.s32.totalorder %s247, %s249
      %p253 = scmp.eq.s32.totalorder %s19, 0
      %p254 = por %p252, %p253
      %p255 = scmp.ne.s32.totalorder %s247, %s249
      %p256 = scmp.eq.s32.totalorder %s24, 2
      %p257 = por %p255, %p256
      %p258 = scmp.ne.s32.totalorder %s249, %s250
      %p259 = scmp.eq.s32.totalorder %s24, 0
      %p260 = por %p258, %p259
      %p261 = scmp.ne.s32.totalorder %s249, %s250
      %p262 = scmp.eq.s32.totalorder %s25, 2
      %p263 = por %p261, %p262
      %p265 = scmp.ne.s32.totalorder %s250, %s264
      %p266 = scmp.eq.s32.totalorder %s25, 0
      %p267 = por %p265, %p266
      %p268 = scmp.le.s32.totalorder 1, %s19
      %p269 = scmp.lt.s32.totalorder %s19, 4
      %p270 = pnand %p268, %p269
      %p271 = pneg %p270
      // Predicated region
      $region9: #{mnih2016_forward.5} parent=5 // pred_check
        _
      $region10: #{mnih2016_forward.5} parent=5 // pred_check_branch
        %273 = sbr.rel (%p270) target = $region12
      $region11: #{mnih2016_forward.5} parent=5 // pred_region
        %s274 = ssub.s32 %s19, 1
        // Predicated region
        $region13: #{mnih2016_forward.5} parent=11 // pred_check
          %p275 = pneg %p92
        $region14: #{mnih2016_forward.5} parent=11 // pred_check_branch
          %277 = sbr.rel (%p275) target = $region16
        $region15: #{mnih2016_forward.5} parent=11 // pred_region
          _
        $region16: #{mnih2016_forward.5} parent=11 // pred_fallthru
          _
        // Predicated region
        $region17: #{mnih2016_forward.5} parent=11 // pred_check
          %p278 = pneg %p113
        $region18: #{mnih2016_forward.5} parent=11 // pred_check_branch
          %280 = sbr.rel (%p278) target = $region20
        $region19: #{mnih2016_forward.5} parent=11 // pred_region
          _
        $region20: #{mnih2016_forward.5} parent=11 // pred_fallthru
          _
        // Predicated region
        $region21: #{mnih2016_forward.5} parent=11 // pred_check
          %p281 = pneg %p134
        $region22: #{mnih2016_forward.5} parent=11 // pred_check_branch
          %283 = sbr.rel (%p281) target = $region24
        $region23: #{mnih2016_forward.5} parent=11 // pred_region
          _
        $region24: #{mnih2016_forward.5} parent=11 // pred_fallthru
          _
        // Predicated region
        $region25: #{mnih2016_forward.5} parent=11 // pred_check
          %p284 = pneg %p155
        $region26: #{mnih2016_forward.5} parent=11 // pred_check_branch
          %286 = sbr.rel (%p284) target = $region28
        $region27: #{mnih2016_forward.5} parent=11 // pred_region
          _
        $region28: #{mnih2016_forward.5} parent=11 // pred_fallthru
          _
        // Predicated region
        $region29: #{mnih2016_forward.5} parent=11 // pred_check
          %p287 = pneg %p176
        $region30: #{mnih2016_forward.5} parent=11 // pred_check_branch
          %289 = sbr.rel (%p287) target = $region32
        $region31: #{mnih2016_forward.5} parent=11 // pred_region
          _
        $region32: #{mnih2016_forward.5} parent=11 // pred_fallthru
          _
        // Predicated region
        $region33: #{mnih2016_forward.5} parent=11 // pred_check
          %p290 = pneg %p197
        $region34: #{mnih2016_forward.5} parent=11 // pred_check_branch
          %292 = sbr.rel (%p290) target = $region36
        $region35: #{mnih2016_forward.5} parent=11 // pred_region
          _
        $region36: #{mnih2016_forward.5} parent=11 // pred_fallthru
          _
      $region12: #{mnih2016_forward.5} parent=5 // pred_fallthru
        _
      %p293 = scmp.lt.s32.totalorder %s19, 3
      // Predicated region
      $region37: #{mnih2016_forward.5} parent=5 // pred_check
        %p294 = pneg %p293
      $region38: #{mnih2016_forward.5} parent=5 // pred_check_branch
        %296 = sbr.rel (%p294) target = $region40
      $region39: #{mnih2016_forward.5} parent=5 // pred_region
        // Predicated region
        $region41: #{mnih2016_forward.5} parent=39 // pred_check
          %p297 = pneg %p39
        $region42: #{mnih2016_forward.5} parent=39 // pred_check_branch
          %299 = sbr.rel (%p297) target = $region44
        $region43: #{mnih2016_forward.5} parent=39 // pred_region
          %s300 = smul.u32 7, %s19
          %p301 = scmp.lt.s32.totalorder %s300, 20
          %s302 = scalar_select %p301, %s300, 20
          %s303 = scalar_lea.vmem %s0, %s302
          %s304 = smul.u32 7, %s19
        $region44: #{mnih2016_forward.5} parent=39 // pred_fallthru
          _
        // Predicated region
        $region45: #{mnih2016_forward.5} parent=39 // pred_check
          %p305 = pneg %p65
        $region46: #{mnih2016_forward.5} parent=39 // pred_check_branch
          %307 = sbr.rel (%p305) target = $region48
        $region47: #{mnih2016_forward.5} parent=39 // pred_region
          %s308 = smul.u32 112, %s19
          %p309 = scmp.lt.s32.totalorder %s308, 335
          %s310 = scalar_select %p309, %s308, 335
          %s311 = smul.addr %s310, 8
          %s312 = smul.addr %s311, 4
          %s313 = scalar_lea.vmem %s1, %s312
          %s314 = smul.u32 112, %s19
        $region48: #{mnih2016_forward.5} parent=39 // pred_fallthru
          _
      $region40: #{mnih2016_forward.5} parent=5 // pred_fallthru
        _
      %p315 = scmp.le.s32.totalorder 1, %s19
      %p316 = scmp.lt.s32.totalorder %s19, 4
      %p317 = pnand %p315, %p316
      %p318 = pneg %p317
      // Predicated region
      $region49: #{mnih2016_forward.5} parent=5 // pred_check
        _
      $region50: #{mnih2016_forward.5} parent=5 // pred_check_branch
        %320 = sbr.rel (%p317) target = $region52
      $region51: #{mnih2016_forward.5} parent=5 // pred_region
        %s321 = ssub.s32 %s19, 1
        %s322 = smul.u32 7, %s24
        %p323 = scmp.lt.s32.totalorder %s322, 20
        %s324 = scalar_select %p323, %s322, 20
        %s325 = scalar_lea.vmem %s0, %s324
        %p326 = pneg %p45
        %p327 = pneg %p42
        %s328 = smul.u32 112, %s24
        %p329 = scmp.lt.s32.totalorder %s328, 335
        %s330 = scalar_select %p329, %s328, 335
        %s331 = smul.addr %s330, 8
        %s332 = smul.addr %s331, 4
        %s333 = scalar_lea.vmem %s1, %s332
        %p334 = pneg %p71
        %p335 = pneg %p68
        %p336 = pneg %p92
        %p337 = pneg %p89
        %p338 = pneg %p113
        %p339 = pneg %p110
        %p340 = pneg %p134
        %p341 = pneg %p131
        %p342 = pneg %p155
        %p343 = pneg %p152
        %p344 = pneg %p176
        %p345 = pneg %p173
        %p346 = pneg %p197
        %p347 = pneg %p194
        %p348 = pneg %p218
        %p349 = pneg %p215
        %p350 = pneg %p239
        %p351 = pneg %p236
        %p352 = pneg %p260
        %p353 = pneg %p257
        %s354 = smul.u32 7, %s24
        %p355 = scmp.lt.s32.totalorder %s354, 20
        %s356 = scalar_select %p355, %s354, 20
        %s357 = scalar_lea.vmem %s0, %s356
        %s358 = smul.u32 7, %s24
        %s359 = smul.u32 112, %s24
        %p360 = scmp.lt.s32.totalorder %s359, 335
        %s361 = scalar_select %p360, %s359, 335
        %s362 = smul.addr %s361, 8
        %s363 = smul.addr %s362, 4
        %s364 = scalar_lea.vmem %s1, %s363
        %s365 = smul.u32 112, %s24
        %p366 = scmp.eq.s32.totalorder %s24, 0
        // Predicated region
        $region53: #{mnih2016_forward.5} parent=51 // pred_check
          %p367 = pneg %p366
        $region54: #{mnih2016_forward.5} parent=51 // pred_check_branch
          %369 = sbr.rel (%p367) target = $region56
        $region55: #{mnih2016_forward.5} parent=51 // pred_region
          %v370 = vld [vmem:[%s5] sm:$0xff]
          %v371 = vld [vmem:[%s2] sm:$0xf]
          %373 = vst [vmem:[#allocation1] ss:$4 sm:$0xff] %v371
          %v374 = vld.sshfl [vmem:[#allocation1] sm:$0xff pattern:$0x73625140]
          %v375 = vld.sshfl [vmem:[#allocation1 + $0x8] sm:$0xff pattern:$0x73625140]
          %v378 = vpack.c.bf16 %v374, %v374
          %v379 = vpack.c.bf16 %v375, %v375
          %v380 = vld [vmem:[%s4] sm:$0xff]
          %v381 = vld [vmem:[%s4 + $0x8] sm:$0xff]
          %v382 = vld [vmem:[%s4 + $0x10] sm:$0xff]
          %v383 = vld [vmem:[%s4 + $0x18] sm:$0xff]
          %v384 = vld [vmem:[%s4 + $0x20] sm:$0xff]
          %v385 = vld [vmem:[%s4 + $0x28] sm:$0xff]
          %v386 = vld [vmem:[%s4 + $0x30] sm:$0xff]
          %v387 = vld [vmem:[%s4 + $0x38] sm:$0xff]
          %v388 = vld [vmem:[%s4 + $0x40] sm:$0xff]
          %v389 = vld [vmem:[%s4 + $0x48] sm:$0xff]
          %v390 = vld [vmem:[%s4 + $0x50] sm:$0xff]
          %v391 = vld [vmem:[%s4 + $0x58] sm:$0xff]
          %v392 = vld [vmem:[%s4 + $0x60] sm:$0xff]
          %v393 = vld [vmem:[%s4 + $0x68] sm:$0xff]
          %v394 = vld [vmem:[%s4 + $0x70] sm:$0xff]
          %v395 = vld [vmem:[%s4 + $0x78] sm:$0xff]
          %v396 = vld [vmem:[%s4 + $0x80] sm:$0xff]
          %v397 = vld [vmem:[%s4 + $0x88] sm:$0xff]
          %v398 = vld [vmem:[%s4 + $0x90] sm:$0xff]
          %v399 = vld [vmem:[%s4 + $0x98] sm:$0xff]
          %v400 = vld [vmem:[%s4 + $0xa0] sm:$0xff]
          %v401 = vld [vmem:[%s4 + $0xa8] sm:$0xff]
          %v402 = vld [vmem:[%s4 + $0xb0] sm:$0xff]
          %v403 = vld [vmem:[%s4 + $0xb8] sm:$0xff]
          %v404 = vld [vmem:[%s4 + $0xc0] sm:$0xff]
          %v405 = vld [vmem:[%s4 + $0xc8] sm:$0xff]
          %v406 = vld [vmem:[%s4 + $0xd0] sm:$0xff]
          %v407 = vld [vmem:[%s4 + $0xd8] sm:$0xff]
          %v408 = vld [vmem:[%s4 + $0xe0] sm:$0xff]
          %v409 = vld [vmem:[%s4 + $0xe8] sm:$0xff]
          %v410 = vld [vmem:[%s4 + $0xf0] sm:$0xff]
          %v411 = vld [vmem:[%s4 + $0xf8] sm:$0xff]
          %v412 = vld [vmem:[%s4 + $0x100] sm:$0xff]
          %v413 = vld [vmem:[%s4 + $0x108] sm:$0xff]
          %v414 = vld [vmem:[%s4 + $0x110] sm:$0xff]
          %v415 = vld [vmem:[%s4 + $0x118] sm:$0xff]
          %v416 = vld [vmem:[%s4 + $0x120] sm:$0xff]
          %v417 = vld [vmem:[%s4 + $0x128] sm:$0xff]
          %v418 = vld [vmem:[%s4 + $0x130] sm:$0xff]
          %v419 = vld [vmem:[%s4 + $0x138] sm:$0xff]
          %v420 = vld [vmem:[%s4 + $0x140] sm:$0xff]
          %v421 = vld [vmem:[%s4 + $0x148] sm:$0xff]
          %v422 = vld [vmem:[%s4 + $0x150] sm:$0xff]
          %v423 = vld [vmem:[%s4 + $0x158] sm:$0xff]
          %v424 = vld [vmem:[%s4 + $0x160] sm:$0xff]
          %v425 = vld [vmem:[%s4 + $0x168] sm:$0xff]
          %v426 = vld [vmem:[%s4 + $0x170] sm:$0xff]
          %v427 = vld [vmem:[%s4 + $0x178] sm:$0xff]
          %v428 = vld [vmem:[%s4 + $0x180] sm:$0xff]
          %v429 = vld [vmem:[%s4 + $0x188] sm:$0xff]
          %v430 = vld [vmem:[%s4 + $0x190] sm:$0xff]
          %v431 = vld [vmem:[%s4 + $0x198] sm:$0xff]
          %v432 = vld [vmem:[%s4 + $0x1a0] sm:$0xff]
          %v433 = vld [vmem:[%s4 + $0x1a8] sm:$0xff]
          %v434 = vld [vmem:[%s4 + $0x1b0] sm:$0xff]
          %v435 = vld [vmem:[%s4 + $0x1b8] sm:$0xff]
          %v436 = vld [vmem:[%s4 + $0x1c0] sm:$0xff]
          %v437 = vld [vmem:[%s4 + $0x1c8] sm:$0xff]
          %v438 = vld [vmem:[%s4 + $0x1d0] sm:$0xff]
          %v439 = vld [vmem:[%s4 + $0x1d8] sm:$0xff]
          %v440 = vld [vmem:[%s4 + $0x1e0] sm:$0xff]
          %v441 = vld [vmem:[%s4 + $0x1e8] sm:$0xff]
          %v442 = vld [vmem:[%s4 + $0x1f0] sm:$0xff]
          %v443 = vld [vmem:[%s4 + $0x1f8] sm:$0xff]
          %v444 = vld [vmem:[%s4 + $0x200] sm:$0xff]
          %v445 = vld [vmem:[%s4 + $0x208] sm:$0xff]
          %v446 = vld [vmem:[%s4 + $0x210] sm:$0xff]
          %v447 = vld [vmem:[%s4 + $0x218] sm:$0xff]
          %v448 = vld [vmem:[%s4 + $0x220] sm:$0xff]
          %v449 = vld [vmem:[%s4 + $0x228] sm:$0xff]
          %v450 = vld [vmem:[%s4 + $0x230] sm:$0xff]
          %v451 = vld [vmem:[%s4 + $0x238] sm:$0xff]
          %v452 = vld [vmem:[%s4 + $0x240] sm:$0xff]
          %v453 = vld [vmem:[%s4 + $0x248] sm:$0xff]
          %v454 = vld [vmem:[%s4 + $0x250] sm:$0xff]
          %v455 = vld [vmem:[%s4 + $0x258] sm:$0xff]
          %v456 = vld [vmem:[%s4 + $0x260] sm:$0xff]
          %v457 = vld [vmem:[%s4 + $0x268] sm:$0xff]
          %v458 = vld [vmem:[%s4 + $0x270] sm:$0xff]
          %v459 = vld [vmem:[%s4 + $0x278] sm:$0xff]
          %v460 = vld [vmem:[%s4 + $0x280] sm:$0xff]
          %v461 = vld [vmem:[%s4 + $0x288] sm:$0xff]
          %v462 = vld [vmem:[%s4 + $0x290] sm:$0xff]
          %v463 = vld [vmem:[%s4 + $0x298] sm:$0xff]
          %v464 = vld [vmem:[%s4 + $0x2a0] sm:$0xff]
          %v465 = vld [vmem:[%s4 + $0x2a8] sm:$0xff]
          %v466 = vld [vmem:[%s4 + $0x2b0] sm:$0xff]
          %v467 = vld [vmem:[%s4 + $0x2b8] sm:$0xff]
          %v468 = vld [vmem:[%s4 + $0x2c0] sm:$0xff]
          %v469 = vld [vmem:[%s4 + $0x2c8] sm:$0xff]
          %v470 = vld [vmem:[%s4 + $0x2d0] sm:$0xff]
          %v471 = vld [vmem:[%s4 + $0x2d8] sm:$0xff]
          %v472 = vld [vmem:[%s4 + $0x2e0] sm:$0xff]
          %v473 = vld [vmem:[%s4 + $0x2e8] sm:$0xff]
          %v474 = vld [vmem:[%s4 + $0x2f0] sm:$0xff]
          %v475 = vld [vmem:[%s4 + $0x2f8] sm:$0xff]
          %v476 = vld [vmem:[%s4 + $0x300] sm:$0xff]
          %v477 = vld [vmem:[%s4 + $0x308] sm:$0xff]
          %v478 = vld [vmem:[%s4 + $0x310] sm:$0xff]
          %v479 = vld [vmem:[%s4 + $0x318] sm:$0xff]
          %v480 = vld [vmem:[%s4 + $0x320] sm:$0xff]
          %v481 = vld [vmem:[%s4 + $0x328] sm:$0xff]
          %v482 = vld [vmem:[%s4 + $0x330] sm:$0xff]
          %v483 = vld [vmem:[%s4 + $0x338] sm:$0xff]
          %v484 = vld [vmem:[%s4 + $0x340] sm:$0xff]
          %v485 = vld [vmem:[%s4 + $0x348] sm:$0xff]
          %v486 = vld [vmem:[%s4 + $0x350] sm:$0xff]
          %v487 = vld [vmem:[%s4 + $0x358] sm:$0xff]
          %v488 = vld [vmem:[%s4 + $0x360] sm:$0xff]
          %v489 = vld [vmem:[%s4 + $0x368] sm:$0xff]
          %v490 = vld [vmem:[%s4 + $0x370] sm:$0xff]
          %v491 = vld [vmem:[%s4 + $0x378] sm:$0xff]
          %v492 = vld [vmem:[%s4 + $0x380] sm:$0xff]
          %v493 = vld [vmem:[%s4 + $0x388] sm:$0xff]
          %v494 = vld [vmem:[%s4 + $0x390] sm:$0xff]
          %v495 = vld [vmem:[%s4 + $0x398] sm:$0xff]
          %v496 = vld [vmem:[%s4 + $0x3a0] sm:$0xff]
          %v497 = vld [vmem:[%s4 + $0x3a8] sm:$0xff]
          %v498 = vld [vmem:[%s4 + $0x3b0] sm:$0xff]
          %v499 = vld [vmem:[%s4 + $0x3b8] sm:$0xff]
          %v500 = vld [vmem:[%s4 + $0x3c0] sm:$0xff]
          %v501 = vld [vmem:[%s4 + $0x3c8] sm:$0xff]
          %v502 = vld [vmem:[%s4 + $0x3d0] sm:$0xff]
          %v503 = vld [vmem:[%s4 + $0x3d8] sm:$0xff]
          %v504 = vld [vmem:[%s4 + $0x3e0] sm:$0xff]
          %v505 = vld [vmem:[%s4 + $0x3e8] sm:$0xff]
          %v506 = vld [vmem:[%s4 + $0x3f0] sm:$0xff]
          %v507 = vld [vmem:[%s4 + $0x3f8] sm:$0xff]
          %v636 = vunpack.c.l.b16 %v380
          %v637 = vunpack.c.h.b16 %v380
          %v638 = vunpack.c.l.b16 %v381
          %v639 = vunpack.c.h.b16 %v381
          %v640 = vunpack.c.l.b16 %v382
          %v641 = vunpack.c.h.b16 %v382
          %v642 = vunpack.c.l.b16 %v383
          %v643 = vunpack.c.h.b16 %v383
          %v644 = vunpack.c.l.b16 %v384
          %v645 = vunpack.c.h.b16 %v384
          %v646 = vunpack.c.l.b16 %v385
          %v647 = vunpack.c.h.b16 %v385
          %v648 = vunpack.c.l.b16 %v386
          %v649 = vunpack.c.h.b16 %v386
          %v650 = vunpack.c.l.b16 %v387
          %v651 = vunpack.c.h.b16 %v387
          %v652 = vunpack.c.l.b16 %v388
          %v653 = vunpack.c.h.b16 %v388
          %v654 = vunpack.c.l.b16 %v389
          %v655 = vunpack.c.h.b16 %v389
          %v656 = vunpack.c.l.b16 %v390
          %v657 = vunpack.c.h.b16 %v390
          %v658 = vunpack.c.l.b16 %v391
          %v659 = vunpack.c.h.b16 %v391
          %v660 = vunpack.c.l.b16 %v392
          %v661 = vunpack.c.h.b16 %v392
          %v662 = vunpack.c.l.b16 %v393
          %v663 = vunpack.c.h.b16 %v393
          %v664 = vunpack.c.l.b16 %v394
          %v665 = vunpack.c.h.b16 %v394
          %v666 = vunpack.c.l.b16 %v395
          %v667 = vunpack.c.h.b16 %v395
          %v668 = vunpack.c.l.b16 %v396
          %v669 = vunpack.c.h.b16 %v396
          %v670 = vunpack.c.l.b16 %v397
          %v671 = vunpack.c.h.b16 %v397
          %v672 = vunpack.c.l.b16 %v398
          %v673 = vunpack.c.h.b16 %v398
          %v674 = vunpack.c.l.b16 %v399
          %v675 = vunpack.c.h.b16 %v399
          %v676 = vunpack.c.l.b16 %v400
          %v677 = vunpack.c.h.b16 %v400
          %v678 = vunpack.c.l.b16 %v401
          %v679 = vunpack.c.h.b16 %v401
          %v680 = vunpack.c.l.b16 %v402
          %v681 = vunpack.c.h.b16 %v402
          %v682 = vunpack.c.l.b16 %v403
          %v683 = vunpack.c.h.b16 %v403
          %v684 = vunpack.c.l.b16 %v404
          %v685 = vunpack.c.h.b16 %v404
          %v686 = vunpack.c.l.b16 %v405
          %v687 = vunpack.c.h.b16 %v405
          %v688 = vunpack.c.l.b16 %v406
          %v689 = vunpack.c.h.b16 %v406
          %v690 = vunpack.c.l.b16 %v407
          %v691 = vunpack.c.h.b16 %v407
          %v692 = vunpack.c.l.b16 %v408
          %v693 = vunpack.c.h.b16 %v408
          %v694 = vunpack.c.l.b16 %v409
          %v695 = vunpack.c.h.b16 %v409
          %v696 = vunpack.c.l.b16 %v410
          %v697 = vunpack.c.h.b16 %v410
          %v698 = vunpack.c.l.b16 %v411
          %v699 = vunpack.c.h.b16 %v411
          %v700 = vunpack.c.l.b16 %v412
          %v701 = vunpack.c.h.b16 %v412
          %v702 = vunpack.c.l.b16 %v413
          %v703 = vunpack.c.h.b16 %v413
          %v704 = vunpack.c.l.b16 %v414
          %v705 = vunpack.c.h.b16 %v414
          %v706 = vunpack.c.l.b16 %v415
          %v707 = vunpack.c.h.b16 %v415
          %v708 = vunpack.c.l.b16 %v416
          %v709 = vunpack.c.h.b16 %v416
          %v710 = vunpack.c.l.b16 %v417
          %v711 = vunpack.c.h.b16 %v417
          %v712 = vunpack.c.l.b16 %v418
          %v713 = vunpack.c.h.b16 %v418
          %v714 = vunpack.c.l.b16 %v419
          %v715 = vunpack.c.h.b16 %v419
          %v716 = vunpack.c.l.b16 %v420
          %v717 = vunpack.c.h.b16 %v420
          %v718 = vunpack.c.l.b16 %v421
          %v719 = vunpack.c.h.b16 %v421
          %v720 = vunpack.c.l.b16 %v422
          %v721 = vunpack.c.h.b16 %v422
          %v722 = vunpack.c.l.b16 %v423
          %v723 = vunpack.c.h.b16 %v423
          %v724 = vunpack.c.l.b16 %v424
          %v725 = vunpack.c.h.b16 %v424
          %v726 = vunpack.c.l.b16 %v425
          %v727 = vunpack.c.h.b16 %v425
          %v728 = vunpack.c.l.b16 %v426
          %v729 = vunpack.c.h.b16 %v426
          %v730 = vunpack.c.l.b16 %v427
          %v731 = vunpack.c.h.b16 %v427
          %v732 = vunpack.c.l.b16 %v428
          %v733 = vunpack.c.h.b16 %v428
          %v734 = vunpack.c.l.b16 %v429
          %v735 = vunpack.c.h.b16 %v429
          %v736 = vunpack.c.l.b16 %v430
          %v737 = vunpack.c.h.b16 %v430
          %v738 = vunpack.c.l.b16 %v431
          %v739 = vunpack.c.h.b16 %v431
          %v740 = vunpack.c.l.b16 %v432
          %v741 = vunpack.c.h.b16 %v432
          %v742 = vunpack.c.l.b16 %v433
          %v743 = vunpack.c.h.b16 %v433
          %v744 = vunpack.c.l.b16 %v434
          %v745 = vunpack.c.h.b16 %v434
          %v746 = vunpack.c.l.b16 %v435
          %v747 = vunpack.c.h.b16 %v435
          %v748 = vunpack.c.l.b16 %v436
          %v749 = vunpack.c.h.b16 %v436
          %v750 = vunpack.c.l.b16 %v437
          %v751 = vunpack.c.h.b16 %v437
          %v752 = vunpack.c.l.b16 %v438
          %v753 = vunpack.c.h.b16 %v438
          %v754 = vunpack.c.l.b16 %v439
          %v755 = vunpack.c.h.b16 %v439
          %v756 = vunpack.c.l.b16 %v440
          %v757 = vunpack.c.h.b16 %v440
          %v758 = vunpack.c.l.b16 %v441
          %v759 = vunpack.c.h.b16 %v441
          %v760 = vunpack.c.l.b16 %v442
          %v761 = vunpack.c.h.b16 %v442
          %v762 = vunpack.c.l.b16 %v443
          %v763 = vunpack.c.h.b16 %v443
          %v764 = vunpack.c.l.b16 %v444
          %v765 = vunpack.c.h.b16 %v444
          %v766 = vunpack.c.l.b16 %v445
          %v767 = vunpack.c.h.b16 %v445
          %v768 = vunpack.c.l.b16 %v446
          %v769 = vunpack.c.h.b16 %v446
          %v770 = vunpack.c.l.b16 %v447
          %v771 = vunpack.c.h.b16 %v447
          %v772 = vunpack.c.l.b16 %v448
          %v773 = vunpack.c.h.b16 %v448
          %v774 = vunpack.c.l.b16 %v449
          %v775 = vunpack.c.h.b16 %v449
          %v776 = vunpack.c.l.b16 %v450
          %v777 = vunpack.c.h.b16 %v450
          %v778 = vunpack.c.l.b16 %v451
          %v779 = vunpack.c.h.b16 %v451
          %v780 = vunpack.c.l.b16 %v452
          %v781 = vunpack.c.h.b16 %v452
          %v782 = vunpack.c.l.b16 %v453
          %v783 = vunpack.c.h.b16 %v453
          %v784 = vunpack.c.l.b16 %v454
          %v785 = vunpack.c.h.b16 %v454
          %v786 = vunpack.c.l.b16 %v455
          %v787 = vunpack.c.h.b16 %v455
          %v788 = vunpack.c.l.b16 %v456
          %v789 = vunpack.c.h.b16 %v456
          %v790 = vunpack.c.l.b16 %v457
          %v791 = vunpack.c.h.b16 %v457
          %v792 = vunpack.c.l.b16 %v458
          %v793 = vunpack.c.h.b16 %v458
          %v794 = vunpack.c.l.b16 %v459
          %v795 = vunpack.c.h.b16 %v459
          %v796 = vunpack.c.l.b16 %v460
          %v797 = vunpack.c.h.b16 %v460
          %v798 = vunpack.c.l.b16 %v461
          %v799 = vunpack.c.h.b16 %v461
          %v800 = vunpack.c.l.b16 %v462
          %v801 = vunpack.c.h.b16 %v462
          %v802 = vunpack.c.l.b16 %v463
          %v803 = vunpack.c.h.b16 %v463
          %v804 = vunpack.c.l.b16 %v464
          %v805 = vunpack.c.h.b16 %v464
          %v806 = vunpack.c.l.b16 %v465
          %v807 = vunpack.c.h.b16 %v465
          %v808 = vunpack.c.l.b16 %v466
          %v809 = vunpack.c.h.b16 %v466
          %v810 = vunpack.c.l.b16 %v467
          %v811 = vunpack.c.h.b16 %v467
          %v812 = vunpack.c.l.b16 %v468
          %v813 = vunpack.c.h.b16 %v468
          %v814 = vunpack.c.l.b16 %v469
          %v815 = vunpack.c.h.b16 %v469
          %v816 = vunpack.c.l.b16 %v470
          %v817 = vunpack.c.h.b16 %v470
          %v818 = vunpack.c.l.b16 %v471
          %v819 = vunpack.c.h.b16 %v471
          %v820 = vunpack.c.l.b16 %v472
          %v821 = vunpack.c.h.b16 %v472
          %v822 = vunpack.c.l.b16 %v473
          %v823 = vunpack.c.h.b16 %v473
          %v824 = vunpack.c.l.b16 %v474
          %v825 = vunpack.c.h.b16 %v474
          %v826 = vunpack.c.l.b16 %v475
          %v827 = vunpack.c.h.b16 %v475
          %v828 = vunpack.c.l.b16 %v476
          %v829 = vunpack.c.h.b16 %v476
          %v830 = vunpack.c.l.b16 %v477
          %v831 = vunpack.c.h.b16 %v477
          %v832 = vunpack.c.l.b16 %v478
          %v833 = vunpack.c.h.b16 %v478
          %v834 = vunpack.c.l.b16 %v479
          %v835 = vunpack.c.h.b16 %v479
          %v836 = vunpack.c.l.b16 %v480
          %v837 = vunpack.c.h.b16 %v480
          %v838 = vunpack.c.l.b16 %v481
          %v839 = vunpack.c.h.b16 %v481
          %v840 = vunpack.c.l.b16 %v482
          %v841 = vunpack.c.h.b16 %v482
          %v842 = vunpack.c.l.b16 %v483
          %v843 = vunpack.c.h.b16 %v483
          %v844 = vunpack.c.l.b16 %v484
          %v845 = vunpack.c.h.b16 %v484
          %v846 = vunpack.c.l.b16 %v485
          %v847 = vunpack.c.h.b16 %v485
          %v848 = vunpack.c.l.b16 %v486
          %v849 = vunpack.c.h.b16 %v486
          %v850 = vunpack.c.l.b16 %v487
          %v851 = vunpack.c.h.b16 %v487
          %v852 = vunpack.c.l.b16 %v488
          %v853 = vunpack.c.h.b16 %v488
          %v854 = vunpack.c.l.b16 %v489
          %v855 = vunpack.c.h.b16 %v489
          %v856 = vunpack.c.l.b16 %v490
          %v857 = vunpack.c.h.b16 %v490
          %v858 = vunpack.c.l.b16 %v491
          %v859 = vunpack.c.h.b16 %v491
          %v860 = vunpack.c.l.b16 %v492
          %v861 = vunpack.c.h.b16 %v492
          %v862 = vunpack.c.l.b16 %v493
          %v863 = vunpack.c.h.b16 %v493
          %v864 = vunpack.c.l.b16 %v494
          %v865 = vunpack.c.h.b16 %v494
          %v866 = vunpack.c.l.b16 %v495
          %v867 = vunpack.c.h.b16 %v495
          %v868 = vunpack.c.l.b16 %v496
          %v869 = vunpack.c.h.b16 %v496
          %v870 = vunpack.c.l.b16 %v497
          %v871 = vunpack.c.h.b16 %v497
          %v872 = vunpack.c.l.b16 %v498
          %v873 = vunpack.c.h.b16 %v498
          %v874 = vunpack.c.l.b16 %v499
          %v875 = vunpack.c.h.b16 %v499
          %v876 = vunpack.c.l.b16 %v500
          %v877 = vunpack.c.h.b16 %v500
          %v878 = vunpack.c.l.b16 %v501
          %v879 = vunpack.c.h.b16 %v501
          %v880 = vunpack.c.l.b16 %v502
          %v881 = vunpack.c.h.b16 %v502
          %v882 = vunpack.c.l.b16 %v503
          %v883 = vunpack.c.h.b16 %v503
          %v884 = vunpack.c.l.b16 %v504
          %v885 = vunpack.c.h.b16 %v504
          %v886 = vunpack.c.l.b16 %v505
          %v887 = vunpack.c.h.b16 %v505
          %v888 = vunpack.c.l.b16 %v506
          %v889 = vunpack.c.h.b16 %v506
          %v890 = vunpack.c.l.b16 %v507
          %v891 = vunpack.c.h.b16 %v507
          %v892 = vpack.c.b16 %v644, %v636
          %v893 = vpack.c.b16 %v645, %v637
          %v894 = vpack.c.b16 %v646, %v638
          %v895 = vpack.c.b16 %v647, %v639
          %v896 = vpack.c.b16 %v648, %v640
          %v897 = vpack.c.b16 %v649, %v641
          %v898 = vpack.c.b16 %v650, %v642
          %v899 = vpack.c.b16 %v651, %v643
          %v900 = vpack.c.b16 %v660, %v652
          %v901 = vpack.c.b16 %v661, %v653
          %v902 = vpack.c.b16 %v662, %v654
          %v903 = vpack.c.b16 %v663, %v655
          %v904 = vpack.c.b16 %v664, %v656
          %v905 = vpack.c.b16 %v665, %v657
          %v906 = vpack.c.b16 %v666, %v658
          %v907 = vpack.c.b16 %v667, %v659
          %v908 = vpack.c.b16 %v676, %v668
          %v909 = vpack.c.b16 %v677, %v669
          %v910 = vpack.c.b16 %v678, %v670
          %v911 = vpack.c.b16 %v679, %v671
          %v912 = vpack.c.b16 %v680, %v672
          %v913 = vpack.c.b16 %v681, %v673
          %v914 = vpack.c.b16 %v682, %v674
          %v915 = vpack.c.b16 %v683, %v675
          %v916 = vpack.c.b16 %v692, %v684
          %v917 = vpack.c.b16 %v693, %v685
          %v918 = vpack.c.b16 %v694, %v686
          %v919 = vpack.c.b16 %v695, %v687
          %v920 = vpack.c.b16 %v696, %v688
          %v921 = vpack.c.b16 %v697, %v689
          %v922 = vpack.c.b16 %v698, %v690
          %v923 = vpack.c.b16 %v699, %v691
          %v924 = vpack.c.b16 %v708, %v700
          %v925 = vpack.c.b16 %v709, %v701
          %v926 = vpack.c.b16 %v710, %v702
          %v927 = vpack.c.b16 %v711, %v703
          %v928 = vpack.c.b16 %v712, %v704
          %v929 = vpack.c.b16 %v713, %v705
          %v930 = vpack.c.b16 %v714, %v706
          %v931 = vpack.c.b16 %v715, %v707
          %v932 = vpack.c.b16 %v724, %v716
          %v933 = vpack.c.b16 %v725, %v717
          %v934 = vpack.c.b16 %v726, %v718
          %v935 = vpack.c.b16 %v727, %v719
          %v936 = vpack.c.b16 %v728, %v720
          %v937 = vpack.c.b16 %v729, %v721
          %v938 = vpack.c.b16 %v730, %v722
          %v939 = vpack.c.b16 %v731, %v723
          %v940 = vpack.c.b16 %v740, %v732
          %v941 = vpack.c.b16 %v741, %v733
          %v942 = vpack.c.b16 %v742, %v734
          %v943 = vpack.c.b16 %v743, %v735
          %v944 = vpack.c.b16 %v744, %v736
          %v945 = vpack.c.b16 %v745, %v737
          %v946 = vpack.c.b16 %v746, %v738
          %v947 = vpack.c.b16 %v747, %v739
          %v948 = vpack.c.b16 %v756, %v748
          %v949 = vpack.c.b16 %v757, %v749
          %v950 = vpack.c.b16 %v758, %v750
          %v951 = vpack.c.b16 %v759, %v751
          %v952 = vpack.c.b16 %v760, %v752
          %v953 = vpack.c.b16 %v761, %v753
          %v954 = vpack.c.b16 %v762, %v754
          %v955 = vpack.c.b16 %v763, %v755
          %v956 = vpack.c.b16 %v772, %v764
          %v957 = vpack.c.b16 %v773, %v765
          %v958 = vpack.c.b16 %v774, %v766
          %v959 = vpack.c.b16 %v775, %v767
          %v960 = vpack.c.b16 %v776, %v768
          %v961 = vpack.c.b16 %v777, %v769
          %v962 = vpack.c.b16 %v778, %v770
          %v963 = vpack.c.b16 %v779, %v771
          %v964 = vpack.c.b16 %v788, %v780
          %v965 = vpack.c.b16 %v789, %v781
          %v966 = vpack.c.b16 %v790, %v782
          %v967 = vpack.c.b16 %v791, %v783
          %v968 = vpack.c.b16 %v792, %v784
          %v969 = vpack.c.b16 %v793, %v785
          %v970 = vpack.c.b16 %v794, %v786
          %v971 = vpack.c.b16 %v795, %v787
          %v972 = vpack.c.b16 %v804, %v796
          %v973 = vpack.c.b16 %v805, %v797
          %v974 = vpack.c.b16 %v806, %v798
          %v975 = vpack.c.b16 %v807, %v799
          %v976 = vpack.c.b16 %v808, %v800
          %v977 = vpack.c.b16 %v809, %v801
          %v978 = vpack.c.b16 %v810, %v802
          %v979 = vpack.c.b16 %v811, %v803
          %v980 = vpack.c.b16 %v820, %v812
          %v981 = vpack.c.b16 %v821, %v813
          %v982 = vpack.c.b16 %v822, %v814
          %v983 = vpack.c.b16 %v823, %v815
          %v984 = vpack.c.b16 %v824, %v816
          %v985 = vpack.c.b16 %v825, %v817
          %v986 = vpack.c.b16 %v826, %v818
          %v987 = vpack.c.b16 %v827, %v819
          %v988 = vpack.c.b16 %v836, %v828
          %v989 = vpack.c.b16 %v837, %v829
          %v990 = vpack.c.b16 %v838, %v830
          %v991 = vpack.c.b16 %v839, %v831
          %v992 = vpack.c.b16 %v840, %v832
          %v993 = vpack.c.b16 %v841, %v833
          %v994 = vpack.c.b16 %v842, %v834
          %v995 = vpack.c.b16 %v843, %v835
          %v996 = vpack.c.b16 %v852, %v844
          %v997 = vpack.c.b16 %v853, %v845
          %v998 = vpack.c.b16 %v854, %v846
          %v999 = vpack.c.b16 %v855, %v847
          %v1000 = vpack.c.b16 %v856, %v848
          %v1001 = vpack.c.b16 %v857, %v849
          %v1002 = vpack.c.b16 %v858, %v850
          %v1003 = vpack.c.b16 %v859, %v851
          %v1004 = vpack.c.b16 %v868, %v860
          %v1005 = vpack.c.b16 %v869, %v861
          %v1006 = vpack.c.b16 %v870, %v862
          %v1007 = vpack.c.b16 %v871, %v863
          %v1008 = vpack.c.b16 %v872, %v864
          %v1009 = vpack.c.b16 %v873, %v865
          %v1010 = vpack.c.b16 %v874, %v866
          %v1011 = vpack.c.b16 %v875, %v867
          %v1012 = vpack.c.b16 %v884, %v876
          %v1013 = vpack.c.b16 %v885, %v877
          %v1014 = vpack.c.b16 %v886, %v878
          %v1015 = vpack.c.b16 %v887, %v879
          %v1016 = vpack.c.b16 %v888, %v880
          %v1017 = vpack.c.b16 %v889, %v881
          %v1018 = vpack.c.b16 %v890, %v882
          %v1019 = vpack.c.b16 %v891, %v883
          %1148 = vmatpush.bf16.msra.mxu0 %v948
          %1149 = vmatpush.bf16.msra.mxu0 %v940
          %1150 = vmatpush.bf16.msra.mxu0 %v932
          %1151 = vmatpush.bf16.msra.mxu0 %v924
          %1152 = vmatpush.bf16.msra.mxu0 %v916
          %1153 = vmatpush.bf16.msra.mxu0 %v908
          %1154 = vmatpush.bf16.msra.mxu0 %v900
          %1155 = vmatpush.bf16.msra.mxu0 %v892
          %1156 = vmatmul.bf16.gmra.mxu0 %v378
          %v1157 = vpop.f32.mrf.mxu0
          %v1158 = vadd.f32 0.0, %v1157
          %v1159 = vpop.f32.mrf.mxu0
          %1160 = vdwg.mxu0
          %1161 = vmatpush.bf16.msra.mxu0 %v1012
          %1162 = vmatpush.bf16.msra.mxu0 %v1004
          %1163 = vmatpush.bf16.msra.mxu0 %v996
          %1164 = vmatpush.bf16.msra.mxu0 %v988
          %1165 = vmatpush.bf16.msra.mxu0 %v980
          %1166 = vmatpush.bf16.msra.mxu0 %v972
          %1167 = vmatpush.bf16.msra.mxu0 %v964
          %1168 = vmatpush.bf16.msra.mxu0 %v956
          %1169 = vmatmul.bf16.gmra.mxu0 %v379
          %v1170 = vpop.f32.mrf.mxu0
          %v1171 = vadd.f32 %v1158, %v1170
          %v1172 = vpop.f32.mrf.mxu0
          %1173 = vdwg.mxu0
          %1174 = vmatpush.bf16.msra.mxu0 %v949
          %1175 = vmatpush.bf16.msra.mxu0 %v941
          %1176 = vmatpush.bf16.msra.mxu0 %v933
          %1177 = vmatpush.bf16.msra.mxu0 %v925
          %1178 = vmatpush.bf16.msra.mxu0 %v917
          %1179 = vmatpush.bf16.msra.mxu0 %v909
          %1180 = vmatpush.bf16.msra.mxu0 %v901
          %1181 = vmatpush.bf16.msra.mxu0 %v893
          %1182 = vmatmul.bf16.gmra.mxu0 %v378
          %v1183 = vpop.f32.mrf.mxu0
          %v1184 = vadd.f32 0.0, %v1183
          %v1185 = vpop.f32.mrf.mxu0
          %1186 = vdwg.mxu0
          %1187 = vmatpush.bf16.msra.mxu0 %v1013
          %1188 = vmatpush.bf16.msra.mxu0 %v1005
          %1189 = vmatpush.bf16.msra.mxu0 %v997
          %1190 = vmatpush.bf16.msra.mxu0 %v989
          %1191 = vmatpush.bf16.msra.mxu0 %v981
          %1192 = vmatpush.bf16.msra.mxu0 %v973
          %1193 = vmatpush.bf16.msra.mxu0 %v965
          %1194 = vmatpush.bf16.msra.mxu0 %v957
          %1195 = vmatmul.bf16.gmra.mxu0 %v379
          %v1196 = vpop.f32.mrf.mxu0
          %v1197 = vadd.f32 %v1184, %v1196
          %v1198 = vpop.f32.mrf.mxu0
          %1199 = vdwg.mxu0
          %1200 = vmatpush.bf16.msra.mxu0 %v950
          %1201 = vmatpush.bf16.msra.mxu0 %v942
          %1202 = vmatpush.bf16.msra.mxu0 %v934
          %1203 = vmatpush.bf16.msra.mxu0 %v926
          %1204 = vmatpush.bf16.msra.mxu0 %v918
          %1205 = vmatpush.bf16.msra.mxu0 %v910
          %1206 = vmatpush.bf16.msra.mxu0 %v902
          %1207 = vmatpush.bf16.msra.mxu0 %v894
          %1208 = vmatmul.bf16.gmra.mxu0 %v378
          %v1209 = vpop.f32.mrf.mxu0
          %v1210 = vadd.f32 0.0, %v1209
          %v1211 = vpop.f32.mrf.mxu0
          %1212 = vdwg.mxu0
          %1213 = vmatpush.bf16.msra.mxu0 %v1014
          %1214 = vmatpush.bf16.msra.mxu0 %v1006
          %1215 = vmatpush.bf16.msra.mxu0 %v998
          %1216 = vmatpush.bf16.msra.mxu0 %v990
          %1217 = vmatpush.bf16.msra.mxu0 %v982
          %1218 = vmatpush.bf16.msra.mxu0 %v974
          %1219 = vmatpush.bf16.msra.mxu0 %v966
          %1220 = vmatpush.bf16.msra.mxu0 %v958
          %1221 = vmatmul.bf16.gmra.mxu0 %v379
          %v1222 = vpop.f32.mrf.mxu0
          %v1223 = vadd.f32 %v1210, %v1222
          %v1224 = vpop.f32.mrf.mxu0
          %1225 = vdwg.mxu0
          %1226 = vmatpush.bf16.msra.mxu0 %v951
          %1227 = vmatpush.bf16.msra.mxu0 %v943
          %1228 = vmatpush.bf16.msra.mxu0 %v935
          %1229 = vmatpush.bf16.msra.mxu0 %v927
          %1230 = vmatpush.bf16.msra.mxu0 %v919
          %1231 = vmatpush.bf16.msra.mxu0 %v911
          %1232 = vmatpush.bf16.msra.mxu0 %v903
          %1233 = vmatpush.bf16.msra.mxu0 %v895
          %1234 = vmatmul.bf16.gmra.mxu0 %v378
          %v1235 = vpop.f32.mrf.mxu0
          %v1236 = vadd.f32 0.0, %v1235
          %v1237 = vpop.f32.mrf.mxu0
          %1238 = vdwg.mxu0
          %1239 = vmatpush.bf16.msra.mxu0 %v1015
          %1240 = vmatpush.bf16.msra.mxu0 %v1007
          %1241 = vmatpush.bf16.msra.mxu0 %v999
          %1242 = vmatpush.bf16.msra.mxu0 %v991
          %1243 = vmatpush.bf16.msra.mxu0 %v983
          %1244 = vmatpush.bf16.msra.mxu0 %v975
          %1245 = vmatpush.bf16.msra.mxu0 %v967
          %1246 = vmatpush.bf16.msra.mxu0 %v959
          %1247 = vmatmul.bf16.gmra.mxu0 %v379
          %v1248 = vpop.f32.mrf.mxu0
          %v1249 = vadd.f32 %v1236, %v1248
          %v1250 = vpop.f32.mrf.mxu0
          %1251 = vdwg.mxu0
          %1252 = vmatpush.bf16.msra.mxu0 %v952
          %1253 = vmatpush.bf16.msra.mxu0 %v944
          %1254 = vmatpush.bf16.msra.mxu0 %v936
          %1255 = vmatpush.bf16.msra.mxu0 %v928
          %1256 = vmatpush.bf16.msra.mxu0 %v920
          %1257 = vmatpush.bf16.msra.mxu0 %v912
          %1258 = vmatpush.bf16.msra.mxu0 %v904
          %1259 = vmatpush.bf16.msra.mxu0 %v896
          %1260 = vmatmul.bf16.gmra.mxu0 %v378
          %v1261 = vpop.f32.mrf.mxu0
          %v1262 = vadd.f32 0.0, %v1261
          %v1263 = vpop.f32.mrf.mxu0
          %1264 = vdwg.mxu0
          %1265 = vmatpush.bf16.msra.mxu0 %v1016
          %1266 = vmatpush.bf16.msra.mxu0 %v1008
          %1267 = vmatpush.bf16.msra.mxu0 %v1000
          %1268 = vmatpush.bf16.msra.mxu0 %v992
          %1269 = vmatpush.bf16.msra.mxu0 %v984
          %1270 = vmatpush.bf16.msra.mxu0 %v976
          %1271 = vmatpush.bf16.msra.mxu0 %v968
          %1272 = vmatpush.bf16.msra.mxu0 %v960
          %1273 = vmatmul.bf16.gmra.mxu0 %v379
          %v1274 = vpop.f32.mrf.mxu0
          %v1275 = vadd.f32 %v1262, %v1274
          %v1276 = vpop.f32.mrf.mxu0
          %1277 = vdwg.mxu0
          %1278 = vmatpush.bf16.msra.mxu0 %v953
          %1279 = vmatpush.bf16.msra.mxu0 %v945
          %1280 = vmatpush.bf16.msra.mxu0 %v937
          %1281 = vmatpush.bf16.msra.mxu0 %v929
          %1282 = vmatpush.bf16.msra.mxu0 %v921
          %1283 = vmatpush.bf16.msra.mxu0 %v913
          %1284 = vmatpush.bf16.msra.mxu0 %v905
          %1285 = vmatpush.bf16.msra.mxu0 %v897
          %1286 = vmatmul.bf16.gmra.mxu0 %v378
          %v1287 = vpop.f32.mrf.mxu0
          %v1288 = vadd.f32 0.0, %v1287
          %v1289 = vpop.f32.mrf.mxu0
          %1290 = vdwg.mxu0
          %1291 = vmatpush.bf16.msra.mxu0 %v1017
          %1292 = vmatpush.bf16.msra.mxu0 %v1009
          %1293 = vmatpush.bf16.msra.mxu0 %v1001
          %1294 = vmatpush.bf16.msra.mxu0 %v993
          %1295 = vmatpush.bf16.msra.mxu0 %v985
          %1296 = vmatpush.bf16.msra.mxu0 %v977
          %1297 = vmatpush.bf16.msra.mxu0 %v969
          %1298 = vmatpush.bf16.msra.mxu0 %v961
          %1299 = vmatmul.bf16.gmra.mxu0 %v379
          %v1300 = vpop.f32.mrf.mxu0
          %v1301 = vadd.f32 %v1288, %v1300
          %v1302 = vpop.f32.mrf.mxu0
          %1303 = vdwg.mxu0
          %1304 = vmatpush.bf16.msra.mxu0 %v954
          %1305 = vmatpush.bf16.msra.mxu0 %v946
          %1306 = vmatpush.bf16.msra.mxu0 %v938
          %1307 = vmatpush.bf16.msra.mxu0 %v930
          %1308 = vmatpush.bf16.msra.mxu0 %v922
          %1309 = vmatpush.bf16.msra.mxu0 %v914
          %1310 = vmatpush.bf16.msra.mxu0 %v906
          %1311 = vmatpush.bf16.msra.mxu0 %v898
          %1312 = vmatmul.bf16.gmra.mxu0 %v378
          %v1313 = vpop.f32.mrf.mxu0
          %v1314 = vadd.f32 0.0, %v1313
          %v1315 = vpop.f32.mrf.mxu0
          %1316 = vdwg.mxu0
          %1317 = vmatpush.bf16.msra.mxu0 %v1018
          %1318 = vmatpush.bf16.msra.mxu0 %v1010
          %1319 = vmatpush.bf16.msra.mxu0 %v1002
          %1320 = vmatpush.bf16.msra.mxu0 %v994
          %1321 = vmatpush.bf16.msra.mxu0 %v986
          %1322 = vmatpush.bf16.msra.mxu0 %v978
          %1323 = vmatpush.bf16.msra.mxu0 %v970
          %1324 = vmatpush.bf16.msra.mxu0 %v962
          %1325 = vmatmul.bf16.gmra.mxu0 %v379
          %v1326 = vpop.f32.mrf.mxu0
          %v1327 = vadd.f32 %v1314, %v1326
          %v1328 = vpop.f32.mrf.mxu0
          %1329 = vdwg.mxu0
          %1330 = vmatpush.bf16.msra.mxu0 %v955
          %1331 = vmatpush.bf16.msra.mxu0 %v947
          %1332 = vmatpush.bf16.msra.mxu0 %v939
          %1333 = vmatpush.bf16.msra.mxu0 %v931
          %1334 = vmatpush.bf16.msra.mxu0 %v923
          %1335 = vmatpush.bf16.msra.mxu0 %v915
          %1336 = vmatpush.bf16.msra.mxu0 %v907
          %1337 = vmatpush.bf16.msra.mxu0 %v899
          %1338 = vmatmul.bf16.gmra.mxu0 %v378
          %v1339 = vpop.f32.mrf.mxu0
          %v1340 = vadd.f32 0.0, %v1339
          %v1341 = vpop.f32.mrf.mxu0
          %1342 = vdwg.mxu0
          %1343 = vmatpush.bf16.msra.mxu0 %v1019
          %1344 = vmatpush.bf16.msra.mxu0 %v1011
          %1345 = vmatpush.bf16.msra.mxu0 %v1003
          %1346 = vmatpush.bf16.msra.mxu0 %v995
          %1347 = vmatpush.bf16.msra.mxu0 %v987
          %1348 = vmatpush.bf16.msra.mxu0 %v979
          %1349 = vmatpush.bf16.msra.mxu0 %v971
          %1350 = vmatpush.bf16.msra.mxu0 %v963
          %1351 = vmatmul.bf16.gmra.mxu0 %v379
          %v1352 = vpop.f32.mrf.mxu0
          %v1353 = vadd.f32 %v1340, %v1352
          %v1354 = vpop.f32.mrf.mxu0
          %1355 = vdwg.mxu0
          %v1357 = vperm.slane %v370, 0
          %v1358 = vperm.slane %v370, 1
          %v1359 = vperm.slane %v370, 2
          %v1360 = vperm.slane %v370, 3
          %v1361 = vperm.slane %v370, 4
          %v1362 = vperm.slane %v370, 5
          %v1363 = vperm.slane %v370, 6
          %v1364 = vperm.slane %v370, 7
          %v1373 = vadd.f32 %v1357, %v1171
          %v1374 = vadd.f32 %v1358, %v1197
          %v1375 = vadd.f32 %v1359, %v1223
          %v1376 = vadd.f32 %v1360, %v1249
          %v1377 = vadd.f32 %v1361, %v1275
          %v1378 = vadd.f32 %v1362, %v1301
          %v1379 = vadd.f32 %v1363, %v1327
          %v1380 = vadd.f32 %v1364, %v1353
          %v1389 = vrot.slane %v1374, 6
          %v1390 = vrot.slane %v1375, 4
          %v1391 = vrot.slane %v1376, 2
          %v1392 = vrot.slane %v1378, 6
          %v1393 = vrot.slane %v1379, 4
          %v1394 = vrot.slane %v1380, 2
          %vm1395 = vcmask 1041408
          %v1396 = vsel %vm1395, %v1373, %v1389
          %vm1397 = vcmask 1045508
          %v1398 = vsel %vm1397, %v1390, %v1391
          %vm1399 = vcmask 1043456
          %v1400 = vsel %vm1399, %v1396, %v1398
          %v1401 = vsel %vm1395, %v1377, %v1392
          %v1402 = vsel %vm1397, %v1393, %v1394
          %v1403 = vsel %vm1399, %v1401, %v1402
          %1406 = vst [vmem:[#allocation2] sm:$0xff] %v1400
          %1407 = vst [vmem:[#allocation2 + $0x8] sm:$0xff] %v1403
        $region56: #{mnih2016_forward.5} parent=51 // pred_fallthru
          _
        %v1408 = vld [vmem:[#allocation2] sm:$0xff]
        %v1409 = vld [vmem:[#allocation2 + $0x8] sm:$0xff]
        %v1410 = vld [vmem:[%s357] sm:$0x7f]
        %v1411 = vld [vmem:[%s364] sm:$0xff]
        %v1412 = vld [vmem:[%s364 + $0x8] sm:$0xff]
        %v1413 = vld [vmem:[%s364 + $0x10] sm:$0xff]
        %v1414 = vld [vmem:[%s364 + $0x18] sm:$0xff]
        %v1415 = vld [vmem:[%s364 + $0x20] sm:$0xff]
        %v1416 = vld [vmem:[%s364 + $0x28] sm:$0xff]
        %v1417 = vld [vmem:[%s364 + $0x30] sm:$0xff]
        %v1418 = vld [vmem:[%s364 + $0x38] sm:$0xff]
        %v1419 = vld [vmem:[%s364 + $0x40] sm:$0xff]
        %v1420 = vld [vmem:[%s364 + $0x48] sm:$0xff]
        %v1421 = vld [vmem:[%s364 + $0x50] sm:$0xff]
        %v1422 = vld [vmem:[%s364 + $0x58] sm:$0xff]
        %v1423 = vld [vmem:[%s364 + $0x60] sm:$0xff]
        %v1424 = vld [vmem:[%s364 + $0x68] sm:$0xff]
        %v1425 = vld [vmem:[%s364 + $0x70] sm:$0xff]
        %v1426 = vld [vmem:[%s364 + $0x78] sm:$0xff]
        %v1427 = vld [vmem:[%s364 + $0x80] sm:$0xff]
        %v1428 = vld [vmem:[%s364 + $0x88] sm:$0xff]
        %v1429 = vld [vmem:[%s364 + $0x90] sm:$0xff]
        %v1430 = vld [vmem:[%s364 + $0x98] sm:$0xff]
        %v1431 = vld [vmem:[%s364 + $0xa0] sm:$0xff]
        %v1432 = vld [vmem:[%s364 + $0xa8] sm:$0xff]
        %v1433 = vld [vmem:[%s364 + $0xb0] sm:$0xff]
        %v1434 = vld [vmem:[%s364 + $0xb8] sm:$0xff]
        %v1435 = vld [vmem:[%s364 + $0xc0] sm:$0xff]
        %v1436 = vld [vmem:[%s364 + $0xc8] sm:$0xff]
        %v1437 = vld [vmem:[%s364 + $0xd0] sm:$0xff]
        %v1438 = vld [vmem:[%s364 + $0xd8] sm:$0xff]
        %v1439 = vld [vmem:[%s364 + $0xe0] sm:$0xff]
        %v1440 = vld [vmem:[%s364 + $0xe8] sm:$0xff]
        %v1441 = vld [vmem:[%s364 + $0xf0] sm:$0xff]
        %v1442 = vld [vmem:[%s364 + $0xf8] sm:$0xff]
        %v1443 = vld [vmem:[%s364 + $0x100] sm:$0xff]
        %v1444 = vld [vmem:[%s364 + $0x108] sm:$0xff]
        %v1445 = vld [vmem:[%s364 + $0x110] sm:$0xff]
        %v1446 = vld [vmem:[%s364 + $0x118] sm:$0xff]
        %v1447 = vld [vmem:[%s364 + $0x120] sm:$0xff]
        %v1448 = vld [vmem:[%s364 + $0x128] sm:$0xff]
        %v1449 = vld [vmem:[%s364 + $0x130] sm:$0xff]
        %v1450 = vld [vmem:[%s364 + $0x138] sm:$0xff]
        %v1451 = vld [vmem:[%s364 + $0x140] sm:$0xff]
        %v1452 = vld [vmem:[%s364 + $0x148] sm:$0xff]
        %v1453 = vld [vmem:[%s364 + $0x150] sm:$0xff]
        %v1454 = vld [vmem:[%s364 + $0x158] sm:$0xff]
        %v1455 = vld [vmem:[%s364 + $0x160] sm:$0xff]
        %v1456 = vld [vmem:[%s364 + $0x168] sm:$0xff]
        %v1457 = vld [vmem:[%s364 + $0x170] sm:$0xff]
        %v1458 = vld [vmem:[%s364 + $0x178] sm:$0xff]
        %v1459 = vld [vmem:[%s364 + $0x180] sm:$0xff]
        %v1460 = vld [vmem:[%s364 + $0x188] sm:$0xff]
        %v1461 = vld [vmem:[%s364 + $0x190] sm:$0xff]
        %v1462 = vld [vmem:[%s364 + $0x198] sm:$0xff]
        %v1463 = vld [vmem:[%s364 + $0x1a0] sm:$0xff]
        %v1464 = vld [vmem:[%s364 + $0x1a8] sm:$0xff]
        %v1465 = vld [vmem:[%s364 + $0x1b0] sm:$0xff]
        %v1466 = vld [vmem:[%s364 + $0x1b8] sm:$0xff]
        %v1467 = vld [vmem:[%s364 + $0x1c0] sm:$0xff]
        %v1468 = vld [vmem:[%s364 + $0x1c8] sm:$0xff]
        %v1469 = vld [vmem:[%s364 + $0x1d0] sm:$0xff]
        %v1470 = vld [vmem:[%s364 + $0x1d8] sm:$0xff]
        %v1471 = vld [vmem:[%s364 + $0x1e0] sm:$0xff]
        %v1472 = vld [vmem:[%s364 + $0x1e8] sm:$0xff]
        %v1473 = vld [vmem:[%s364 + $0x1f0] sm:$0xff]
        %v1474 = vld [vmem:[%s364 + $0x1f8] sm:$0xff]
        %v1475 = vld [vmem:[%s364 + $0x200] sm:$0xff]
        %v1476 = vld [vmem:[%s364 + $0x208] sm:$0xff]
        %v1477 = vld [vmem:[%s364 + $0x210] sm:$0xff]
        %v1478 = vld [vmem:[%s364 + $0x218] sm:$0xff]
        %v1479 = vld [vmem:[%s364 + $0x220] sm:$0xff]
        %v1480 = vld [vmem:[%s364 + $0x228] sm:$0xff]
        %v1481 = vld [vmem:[%s364 + $0x230] sm:$0xff]
        %v1482 = vld [vmem:[%s364 + $0x238] sm:$0xff]
        %v1483 = vld [vmem:[%s364 + $0x240] sm:$0xff]
        %v1484 = vld [vmem:[%s364 + $0x248] sm:$0xff]
        %v1485 = vld [vmem:[%s364 + $0x250] sm:$0xff]
        %v1486 = vld [vmem:[%s364 + $0x258] sm:$0xff]
        %v1487 = vld [vmem:[%s364 + $0x260] sm:$0xff]
        %v1488 = vld [vmem:[%s364 + $0x268] sm:$0xff]
        %v1489 = vld [vmem:[%s364 + $0x270] sm:$0xff]
        %v1490 = vld [vmem:[%s364 + $0x278] sm:$0xff]
        %v1491 = vld [vmem:[%s364 + $0x280] sm:$0xff]
        %v1492 = vld [vmem:[%s364 + $0x288] sm:$0xff]
        %v1493 = vld [vmem:[%s364 + $0x290] sm:$0xff]
        %v1494 = vld [vmem:[%s364 + $0x298] sm:$0xff]
        %v1495 = vld [vmem:[%s364 + $0x2a0] sm:$0xff]
        %v1496 = vld [vmem:[%s364 + $0x2a8] sm:$0xff]
        %v1497 = vld [vmem:[%s364 + $0x2b0] sm:$0xff]
        %v1498 = vld [vmem:[%s364 + $0x2b8] sm:$0xff]
        %v1499 = vld [vmem:[%s364 + $0x2c0] sm:$0xff]
        %v1500 = vld [vmem:[%s364 + $0x2c8] sm:$0xff]
        %v1501 = vld [vmem:[%s364 + $0x2d0] sm:$0xff]
        %v1502 = vld [vmem:[%s364 + $0x2d8] sm:$0xff]
        %v1503 = vld [vmem:[%s364 + $0x2e0] sm:$0xff]
        %v1504 = vld [vmem:[%s364 + $0x2e8] sm:$0xff]
        %v1505 = vld [vmem:[%s364 + $0x2f0] sm:$0xff]
        %v1506 = vld [vmem:[%s364 + $0x2f8] sm:$0xff]
        %v1507 = vld [vmem:[%s364 + $0x300] sm:$0xff]
        %v1508 = vld [vmem:[%s364 + $0x308] sm:$0xff]
        %v1509 = vld [vmem:[%s364 + $0x310] sm:$0xff]
        %v1510 = vld [vmem:[%s364 + $0x318] sm:$0xff]
        %v1511 = vld [vmem:[%s364 + $0x320] sm:$0xff]
        %v1512 = vld [vmem:[%s364 + $0x328] sm:$0xff]
        %v1513 = vld [vmem:[%s364 + $0x330] sm:$0xff]
        %v1514 = vld [vmem:[%s364 + $0x338] sm:$0xff]
        %v1515 = vld [vmem:[%s364 + $0x340] sm:$0xff]
        %v1516 = vld [vmem:[%s364 + $0x348] sm:$0xff]
        %v1517 = vld [vmem:[%s364 + $0x350] sm:$0xff]
        %v1518 = vld [vmem:[%s364 + $0x358] sm:$0xff]
        %v1519 = vld [vmem:[%s364 + $0x360] sm:$0xff]
        %v1520 = vld [vmem:[%s364 + $0x368] sm:$0xff]
        %v1521 = vld [vmem:[%s364 + $0x370] sm:$0xff]
        %v1522 = vld [vmem:[%s364 + $0x378] sm:$0xff]
        %v1523 = vld [vmem:[%s364 + $0x380] sm:$0xff]
        %v1524 = vld [vmem:[%s364 + $0x388] sm:$0xff]
        %v1525 = vld [vmem:[%s364 + $0x390] sm:$0xff]
        %v1526 = vld [vmem:[%s364 + $0x398] sm:$0xff]
        %v1527 = vld [vmem:[%s364 + $0x3a0] sm:$0xff]
        %v1528 = vld [vmem:[%s364 + $0x3a8] sm:$0xff]
        %v1529 = vld [vmem:[%s364 + $0x3b0] sm:$0xff]
        %v1530 = vld [vmem:[%s364 + $0x3b8] sm:$0xff]
        %v1531 = vld [vmem:[%s364 + $0x3c0] sm:$0xff]
        %v1532 = vld [vmem:[%s364 + $0x3c8] sm:$0xff]
        %v1533 = vld [vmem:[%s364 + $0x3d0] sm:$0xff]
        %v1534 = vld [vmem:[%s364 + $0x3d8] sm:$0xff]
        %v1535 = vld [vmem:[%s364 + $0x3e0] sm:$0xff]
        %v1536 = vld [vmem:[%s364 + $0x3e8] sm:$0xff]
        %v1537 = vld [vmem:[%s364 + $0x3f0] sm:$0xff]
        %v1538 = vld [vmem:[%s364 + $0x3f8] sm:$0xff]
        %v1539 = vld [vmem:[%s364 + $0x400] sm:$0xff]
        %v1540 = vld [vmem:[%s364 + $0x408] sm:$0xff]
        %v1541 = vld [vmem:[%s364 + $0x410] sm:$0xff]
        %v1542 = vld [vmem:[%s364 + $0x418] sm:$0xff]
        %v1543 = vld [vmem:[%s364 + $0x420] sm:$0xff]
        %v1544 = vld [vmem:[%s364 + $0x428] sm:$0xff]
        %v1545 = vld [vmem:[%s364 + $0x430] sm:$0xff]
        %v1546 = vld [vmem:[%s364 + $0x438] sm:$0xff]
        %v1547 = vld [vmem:[%s364 + $0x440] sm:$0xff]
        %v1548 = vld [vmem:[%s364 + $0x448] sm:$0xff]
        %v1549 = vld [vmem:[%s364 + $0x450] sm:$0xff]
        %v1550 = vld [vmem:[%s364 + $0x458] sm:$0xff]
        %v1551 = vld [vmem:[%s364 + $0x460] sm:$0xff]
        %v1552 = vld [vmem:[%s364 + $0x468] sm:$0xff]
        %v1553 = vld [vmem:[%s364 + $0x470] sm:$0xff]
        %v1554 = vld [vmem:[%s364 + $0x478] sm:$0xff]
        %v1555 = vld [vmem:[%s364 + $0x480] sm:$0xff]
        %v1556 = vld [vmem:[%s364 + $0x488] sm:$0xff]
        %v1557 = vld [vmem:[%s364 + $0x490] sm:$0xff]
        %v1558 = vld [vmem:[%s364 + $0x498] sm:$0xff]
        %v1559 = vld [vmem:[%s364 + $0x4a0] sm:$0xff]
        %v1560 = vld [vmem:[%s364 + $0x4a8] sm:$0xff]
        %v1561 = vld [vmem:[%s364 + $0x4b0] sm:$0xff]
        %v1562 = vld [vmem:[%s364 + $0x4b8] sm:$0xff]
        %v1563 = vld [vmem:[%s364 + $0x4c0] sm:$0xff]
        %v1564 = vld [vmem:[%s364 + $0x4c8] sm:$0xff]
        %v1565 = vld [vmem:[%s364 + $0x4d0] sm:$0xff]
        %v1566 = vld [vmem:[%s364 + $0x4d8] sm:$0xff]
        %v1567 = vld [vmem:[%s364 + $0x4e0] sm:$0xff]
        %v1568 = vld [vmem:[%s364 + $0x4e8] sm:$0xff]
        %v1569 = vld [vmem:[%s364 + $0x4f0] sm:$0xff]
        %v1570 = vld [vmem:[%s364 + $0x4f8] sm:$0xff]
        %v1571 = vld [vmem:[%s364 + $0x500] sm:$0xff]
        %v1572 = vld [vmem:[%s364 + $0x508] sm:$0xff]
        %v1573 = vld [vmem:[%s364 + $0x510] sm:$0xff]
        %v1574 = vld [vmem:[%s364 + $0x518] sm:$0xff]
        %v1575 = vld [vmem:[%s364 + $0x520] sm:$0xff]
        %v1576 = vld [vmem:[%s364 + $0x528] sm:$0xff]
        %v1577 = vld [vmem:[%s364 + $0x530] sm:$0xff]
        %v1578 = vld [vmem:[%s364 + $0x538] sm:$0xff]
        %v1579 = vld [vmem:[%s364 + $0x540] sm:$0xff]
        %v1580 = vld [vmem:[%s364 + $0x548] sm:$0xff]
        %v1581 = vld [vmem:[%s364 + $0x550] sm:$0xff]
        %v1582 = vld [vmem:[%s364 + $0x558] sm:$0xff]
        %v1583 = vld [vmem:[%s364 + $0x560] sm:$0xff]
        %v1584 = vld [vmem:[%s364 + $0x568] sm:$0xff]
        %v1585 = vld [vmem:[%s364 + $0x570] sm:$0xff]
        %v1586 = vld [vmem:[%s364 + $0x578] sm:$0xff]
        %v1587 = vld [vmem:[%s364 + $0x580] sm:$0xff]
        %v1588 = vld [vmem:[%s364 + $0x588] sm:$0xff]
        %v1589 = vld [vmem:[%s364 + $0x590] sm:$0xff]
        %v1590 = vld [vmem:[%s364 + $0x598] sm:$0xff]
        %v1591 = vld [vmem:[%s364 + $0x5a0] sm:$0xff]
        %v1592 = vld [vmem:[%s364 + $0x5a8] sm:$0xff]
        %v1593 = vld [vmem:[%s364 + $0x5b0] sm:$0xff]
        %v1594 = vld [vmem:[%s364 + $0x5b8] sm:$0xff]
        %v1595 = vld [vmem:[%s364 + $0x5c0] sm:$0xff]
        %v1596 = vld [vmem:[%s364 + $0x5c8] sm:$0xff]
        %v1597 = vld [vmem:[%s364 + $0x5d0] sm:$0xff]
        %v1598 = vld [vmem:[%s364 + $0x5d8] sm:$0xff]
        %v1599 = vld [vmem:[%s364 + $0x5e0] sm:$0xff]
        %v1600 = vld [vmem:[%s364 + $0x5e8] sm:$0xff]
        %v1601 = vld [vmem:[%s364 + $0x5f0] sm:$0xff]
        %v1602 = vld [vmem:[%s364 + $0x5f8] sm:$0xff]
        %v1603 = vld [vmem:[%s364 + $0x600] sm:$0xff]
        %v1604 = vld [vmem:[%s364 + $0x608] sm:$0xff]
        %v1605 = vld [vmem:[%s364 + $0x610] sm:$0xff]
        %v1606 = vld [vmem:[%s364 + $0x618] sm:$0xff]
        %v1607 = vld [vmem:[%s364 + $0x620] sm:$0xff]
        %v1608 = vld [vmem:[%s364 + $0x628] sm:$0xff]
        %v1609 = vld [vmem:[%s364 + $0x630] sm:$0xff]
        %v1610 = vld [vmem:[%s364 + $0x638] sm:$0xff]
        %v1611 = vld [vmem:[%s364 + $0x640] sm:$0xff]
        %v1612 = vld [vmem:[%s364 + $0x648] sm:$0xff]
        %v1613 = vld [vmem:[%s364 + $0x650] sm:$0xff]
        %v1614 = vld [vmem:[%s364 + $0x658] sm:$0xff]
        %v1615 = vld [vmem:[%s364 + $0x660] sm:$0xff]
        %v1616 = vld [vmem:[%s364 + $0x668] sm:$0xff]
        %v1617 = vld [vmem:[%s364 + $0x670] sm:$0xff]
        %v1618 = vld [vmem:[%s364 + $0x678] sm:$0xff]
        %v1619 = vld [vmem:[%s364 + $0x680] sm:$0xff]
        %v1620 = vld [vmem:[%s364 + $0x688] sm:$0xff]
        %v1621 = vld [vmem:[%s364 + $0x690] sm:$0xff]
        %v1622 = vld [vmem:[%s364 + $0x698] sm:$0xff]
        %v1623 = vld [vmem:[%s364 + $0x6a0] sm:$0xff]
        %v1624 = vld [vmem:[%s364 + $0x6a8] sm:$0xff]
        %v1625 = vld [vmem:[%s364 + $0x6b0] sm:$0xff]
        %v1626 = vld [vmem:[%s364 + $0x6b8] sm:$0xff]
        %v1627 = vld [vmem:[%s364 + $0x6c0] sm:$0xff]
        %v1628 = vld [vmem:[%s364 + $0x6c8] sm:$0xff]
        %v1629 = vld [vmem:[%s364 + $0x6d0] sm:$0xff]
        %v1630 = vld [vmem:[%s364 + $0x6d8] sm:$0xff]
        %v1631 = vld [vmem:[%s364 + $0x6e0] sm:$0xff]
        %v1632 = vld [vmem:[%s364 + $0x6e8] sm:$0xff]
        %v1633 = vld [vmem:[%s364 + $0x6f0] sm:$0xff]
        %v1634 = vld [vmem:[%s364 + $0x6f8] sm:$0xff]
        %v1635 = vld [vmem:[%s364 + $0x700] sm:$0xff]
        %v1636 = vld [vmem:[%s364 + $0x708] sm:$0xff]
        %v1637 = vld [vmem:[%s364 + $0x710] sm:$0xff]
        %v1638 = vld [vmem:[%s364 + $0x718] sm:$0xff]
        %v1639 = vld [vmem:[%s364 + $0x720] sm:$0xff]
        %v1640 = vld [vmem:[%s364 + $0x728] sm:$0xff]
        %v1641 = vld [vmem:[%s364 + $0x730] sm:$0xff]
        %v1642 = vld [vmem:[%s364 + $0x738] sm:$0xff]
        %v1643 = vld [vmem:[%s364 + $0x740] sm:$0xff]
        %v1644 = vld [vmem:[%s364 + $0x748] sm:$0xff]
        %v1645 = vld [vmem:[%s364 + $0x750] sm:$0xff]
        %v1646 = vld [vmem:[%s364 + $0x758] sm:$0xff]
        %v1647 = vld [vmem:[%s364 + $0x760] sm:$0xff]
        %v1648 = vld [vmem:[%s364 + $0x768] sm:$0xff]
        %v1649 = vld [vmem:[%s364 + $0x770] sm:$0xff]
        %v1650 = vld [vmem:[%s364 + $0x778] sm:$0xff]
        %v1651 = vld [vmem:[%s364 + $0x780] sm:$0xff]
        %v1652 = vld [vmem:[%s364 + $0x788] sm:$0xff]
        %v1653 = vld [vmem:[%s364 + $0x790] sm:$0xff]
        %v1654 = vld [vmem:[%s364 + $0x798] sm:$0xff]
        %v1655 = vld [vmem:[%s364 + $0x7a0] sm:$0xff]
        %v1656 = vld [vmem:[%s364 + $0x7a8] sm:$0xff]
        %v1657 = vld [vmem:[%s364 + $0x7b0] sm:$0xff]
        %v1658 = vld [vmem:[%s364 + $0x7b8] sm:$0xff]
        %v1659 = vld [vmem:[%s364 + $0x7c0] sm:$0xff]
        %v1660 = vld [vmem:[%s364 + $0x7c8] sm:$0xff]
        %v1661 = vld [vmem:[%s364 + $0x7d0] sm:$0xff]
        %v1662 = vld [vmem:[%s364 + $0x7d8] sm:$0xff]
        %v1663 = vld [vmem:[%s364 + $0x7e0] sm:$0xff]
        %v1664 = vld [vmem:[%s364 + $0x7e8] sm:$0xff]
        %v1665 = vld [vmem:[%s364 + $0x7f0] sm:$0xff]
        %v1666 = vld [vmem:[%s364 + $0x7f8] sm:$0xff]
        %v1667 = vld [vmem:[%s364 + $0x800] sm:$0xff]
        %v1668 = vld [vmem:[%s364 + $0x808] sm:$0xff]
        %v1669 = vld [vmem:[%s364 + $0x810] sm:$0xff]
        %v1670 = vld [vmem:[%s364 + $0x818] sm:$0xff]
        %v1671 = vld [vmem:[%s364 + $0x820] sm:$0xff]
        %v1672 = vld [vmem:[%s364 + $0x828] sm:$0xff]
        %v1673 = vld [vmem:[%s364 + $0x830] sm:$0xff]
        %v1674 = vld [vmem:[%s364 + $0x838] sm:$0xff]
        %v1675 = vld [vmem:[%s364 + $0x840] sm:$0xff]
        %v1676 = vld [vmem:[%s364 + $0x848] sm:$0xff]
        %v1677 = vld [vmem:[%s364 + $0x850] sm:$0xff]
        %v1678 = vld [vmem:[%s364 + $0x858] sm:$0xff]
        %v1679 = vld [vmem:[%s364 + $0x860] sm:$0xff]
        %v1680 = vld [vmem:[%s364 + $0x868] sm:$0xff]
        %v1681 = vld [vmem:[%s364 + $0x870] sm:$0xff]
        %v1682 = vld [vmem:[%s364 + $0x878] sm:$0xff]
        %v1683 = vld [vmem:[%s364 + $0x880] sm:$0xff]
        %v1684 = vld [vmem:[%s364 + $0x888] sm:$0xff]
        %v1685 = vld [vmem:[%s364 + $0x890] sm:$0xff]
        %v1686 = vld [vmem:[%s364 + $0x898] sm:$0xff]
        %v1687 = vld [vmem:[%s364 + $0x8a0] sm:$0xff]
        %v1688 = vld [vmem:[%s364 + $0x8a8] sm:$0xff]
        %v1689 = vld [vmem:[%s364 + $0x8b0] sm:$0xff]
        %v1690 = vld [vmem:[%s364 + $0x8b8] sm:$0xff]
        %v1691 = vld [vmem:[%s364 + $0x8c0] sm:$0xff]
        %v1692 = vld [vmem:[%s364 + $0x8c8] sm:$0xff]
        %v1693 = vld [vmem:[%s364 + $0x8d0] sm:$0xff]
        %v1694 = vld [vmem:[%s364 + $0x8d8] sm:$0xff]
        %v1695 = vld [vmem:[%s364 + $0x8e0] sm:$0xff]
        %v1696 = vld [vmem:[%s364 + $0x8e8] sm:$0xff]
        %v1697 = vld [vmem:[%s364 + $0x8f0] sm:$0xff]
        %v1698 = vld [vmem:[%s364 + $0x8f8] sm:$0xff]
        %v1699 = vld [vmem:[%s364 + $0x900] sm:$0xff]
        %v1700 = vld [vmem:[%s364 + $0x908] sm:$0xff]
        %v1701 = vld [vmem:[%s364 + $0x910] sm:$0xff]
        %v1702 = vld [vmem:[%s364 + $0x918] sm:$0xff]
        %v1703 = vld [vmem:[%s364 + $0x920] sm:$0xff]
        %v1704 = vld [vmem:[%s364 + $0x928] sm:$0xff]
        %v1705 = vld [vmem:[%s364 + $0x930] sm:$0xff]
        %v1706 = vld [vmem:[%s364 + $0x938] sm:$0xff]
        %v1707 = vld [vmem:[%s364 + $0x940] sm:$0xff]
        %v1708 = vld [vmem:[%s364 + $0x948] sm:$0xff]
        %v1709 = vld [vmem:[%s364 + $0x950] sm:$0xff]
        %v1710 = vld [vmem:[%s364 + $0x958] sm:$0xff]
        %v1711 = vld [vmem:[%s364 + $0x960] sm:$0xff]
        %v1712 = vld [vmem:[%s364 + $0x968] sm:$0xff]
        %v1713 = vld [vmem:[%s364 + $0x970] sm:$0xff]
        %v1714 = vld [vmem:[%s364 + $0x978] sm:$0xff]
        %v1715 = vld [vmem:[%s364 + $0x980] sm:$0xff]
        %v1716 = vld [vmem:[%s364 + $0x988] sm:$0xff]
        %v1717 = vld [vmem:[%s364 + $0x990] sm:$0xff]
        %v1718 = vld [vmem:[%s364 + $0x998] sm:$0xff]
        %v1719 = vld [vmem:[%s364 + $0x9a0] sm:$0xff]
        %v1720 = vld [vmem:[%s364 + $0x9a8] sm:$0xff]
        %v1721 = vld [vmem:[%s364 + $0x9b0] sm:$0xff]
        %v1722 = vld [vmem:[%s364 + $0x9b8] sm:$0xff]
        %v1723 = vld [vmem:[%s364 + $0x9c0] sm:$0xff]
        %v1724 = vld [vmem:[%s364 + $0x9c8] sm:$0xff]
        %v1725 = vld [vmem:[%s364 + $0x9d0] sm:$0xff]
        %v1726 = vld [vmem:[%s364 + $0x9d8] sm:$0xff]
        %v1727 = vld [vmem:[%s364 + $0x9e0] sm:$0xff]
        %v1728 = vld [vmem:[%s364 + $0x9e8] sm:$0xff]
        %v1729 = vld [vmem:[%s364 + $0x9f0] sm:$0xff]
        %v1730 = vld [vmem:[%s364 + $0x9f8] sm:$0xff]
        %v1731 = vld [vmem:[%s364 + $0xa00] sm:$0xff]
        %v1732 = vld [vmem:[%s364 + $0xa08] sm:$0xff]
        %v1733 = vld [vmem:[%s364 + $0xa10] sm:$0xff]
        %v1734 = vld [vmem:[%s364 + $0xa18] sm:$0xff]
        %v1735 = vld [vmem:[%s364 + $0xa20] sm:$0xff]
        %v1736 = vld [vmem:[%s364 + $0xa28] sm:$0xff]
        %v1737 = vld [vmem:[%s364 + $0xa30] sm:$0xff]
        %v1738 = vld [vmem:[%s364 + $0xa38] sm:$0xff]
        %v1739 = vld [vmem:[%s364 + $0xa40] sm:$0xff]
        %v1740 = vld [vmem:[%s364 + $0xa48] sm:$0xff]
        %v1741 = vld [vmem:[%s364 + $0xa50] sm:$0xff]
        %v1742 = vld [vmem:[%s364 + $0xa58] sm:$0xff]
        %v1743 = vld [vmem:[%s364 + $0xa60] sm:$0xff]
        %v1744 = vld [vmem:[%s364 + $0xa68] sm:$0xff]
        %v1745 = vld [vmem:[%s364 + $0xa70] sm:$0xff]
        %v1746 = vld [vmem:[%s364 + $0xa78] sm:$0xff]
        %v1747 = vld [vmem:[%s364 + $0xa80] sm:$0xff]
        %v1748 = vld [vmem:[%s364 + $0xa88] sm:$0xff]
        %v1749 = vld [vmem:[%s364 + $0xa90] sm:$0xff]
        %v1750 = vld [vmem:[%s364 + $0xa98] sm:$0xff]
        %v1751 = vld [vmem:[%s364 + $0xaa0] sm:$0xff]
        %v1752 = vld [vmem:[%s364 + $0xaa8] sm:$0xff]
        %v1753 = vld [vmem:[%s364 + $0xab0] sm:$0xff]
        %v1754 = vld [vmem:[%s364 + $0xab8] sm:$0xff]
        %v1755 = vld [vmem:[%s364 + $0xac0] sm:$0xff]
        %v1756 = vld [vmem:[%s364 + $0xac8] sm:$0xff]
        %v1757 = vld [vmem:[%s364 + $0xad0] sm:$0xff]
        %v1758 = vld [vmem:[%s364 + $0xad8] sm:$0xff]
        %v1759 = vld [vmem:[%s364 + $0xae0] sm:$0xff]
        %v1760 = vld [vmem:[%s364 + $0xae8] sm:$0xff]
        %v1761 = vld [vmem:[%s364 + $0xaf0] sm:$0xff]
        %v1762 = vld [vmem:[%s364 + $0xaf8] sm:$0xff]
        %v1763 = vld [vmem:[%s364 + $0xb00] sm:$0xff]
        %v1764 = vld [vmem:[%s364 + $0xb08] sm:$0xff]
        %v1765 = vld [vmem:[%s364 + $0xb10] sm:$0xff]
        %v1766 = vld [vmem:[%s364 + $0xb18] sm:$0xff]
        %v1767 = vld [vmem:[%s364 + $0xb20] sm:$0xff]
        %v1768 = vld [vmem:[%s364 + $0xb28] sm:$0xff]
        %v1769 = vld [vmem:[%s364 + $0xb30] sm:$0xff]
        %v1770 = vld [vmem:[%s364 + $0xb38] sm:$0xff]
        %v1771 = vld [vmem:[%s364 + $0xb40] sm:$0xff]
        %v1772 = vld [vmem:[%s364 + $0xb48] sm:$0xff]
        %v1773 = vld [vmem:[%s364 + $0xb50] sm:$0xff]
        %v1774 = vld [vmem:[%s364 + $0xb58] sm:$0xff]
        %v1775 = vld [vmem:[%s364 + $0xb60] sm:$0xff]
        %v1776 = vld [vmem:[%s364 + $0xb68] sm:$0xff]
        %v1777 = vld [vmem:[%s364 + $0xb70] sm:$0xff]
        %v1778 = vld [vmem:[%s364 + $0xb78] sm:$0xff]
        %v1779 = vld [vmem:[%s364 + $0xb80] sm:$0xff]
        %v1780 = vld [vmem:[%s364 + $0xb88] sm:$0xff]
        %v1781 = vld [vmem:[%s364 + $0xb90] sm:$0xff]
        %v1782 = vld [vmem:[%s364 + $0xb98] sm:$0xff]
        %v1783 = vld [vmem:[%s364 + $0xba0] sm:$0xff]
        %v1784 = vld [vmem:[%s364 + $0xba8] sm:$0xff]
        %v1785 = vld [vmem:[%s364 + $0xbb0] sm:$0xff]
        %v1786 = vld [vmem:[%s364 + $0xbb8] sm:$0xff]
        %v1787 = vld [vmem:[%s364 + $0xbc0] sm:$0xff]
        %v1788 = vld [vmem:[%s364 + $0xbc8] sm:$0xff]
        %v1789 = vld [vmem:[%s364 + $0xbd0] sm:$0xff]
        %v1790 = vld [vmem:[%s364 + $0xbd8] sm:$0xff]
        %v1791 = vld [vmem:[%s364 + $0xbe0] sm:$0xff]
        %v1792 = vld [vmem:[%s364 + $0xbe8] sm:$0xff]
        %v1793 = vld [vmem:[%s364 + $0xbf0] sm:$0xff]
        %v1794 = vld [vmem:[%s364 + $0xbf8] sm:$0xff]
        %v1795 = vld [vmem:[%s364 + $0xc00] sm:$0xff]
        %v1796 = vld [vmem:[%s364 + $0xc08] sm:$0xff]
        %v1797 = vld [vmem:[%s364 + $0xc10] sm:$0xff]
        %v1798 = vld [vmem:[%s364 + $0xc18] sm:$0xff]
        %v1799 = vld [vmem:[%s364 + $0xc20] sm:$0xff]
        %v1800 = vld [vmem:[%s364 + $0xc28] sm:$0xff]
        %v1801 = vld [vmem:[%s364 + $0xc30] sm:$0xff]
        %v1802 = vld [vmem:[%s364 + $0xc38] sm:$0xff]
        %v1803 = vld [vmem:[%s364 + $0xc40] sm:$0xff]
        %v1804 = vld [vmem:[%s364 + $0xc48] sm:$0xff]
        %v1805 = vld [vmem:[%s364 + $0xc50] sm:$0xff]
        %v1806 = vld [vmem:[%s364 + $0xc58] sm:$0xff]
        %v1807 = vld [vmem:[%s364 + $0xc60] sm:$0xff]
        %v1808 = vld [vmem:[%s364 + $0xc68] sm:$0xff]
        %v1809 = vld [vmem:[%s364 + $0xc70] sm:$0xff]
        %v1810 = vld [vmem:[%s364 + $0xc78] sm:$0xff]
        %v1811 = vld [vmem:[%s364 + $0xc80] sm:$0xff]
        %v1812 = vld [vmem:[%s364 + $0xc88] sm:$0xff]
        %v1813 = vld [vmem:[%s364 + $0xc90] sm:$0xff]
        %v1814 = vld [vmem:[%s364 + $0xc98] sm:$0xff]
        %v1815 = vld [vmem:[%s364 + $0xca0] sm:$0xff]
        %v1816 = vld [vmem:[%s364 + $0xca8] sm:$0xff]
        %v1817 = vld [vmem:[%s364 + $0xcb0] sm:$0xff]
        %v1818 = vld [vmem:[%s364 + $0xcb8] sm:$0xff]
        %v1819 = vld [vmem:[%s364 + $0xcc0] sm:$0xff]
        %v1820 = vld [vmem:[%s364 + $0xcc8] sm:$0xff]
        %v1821 = vld [vmem:[%s364 + $0xcd0] sm:$0xff]
        %v1822 = vld [vmem:[%s364 + $0xcd8] sm:$0xff]
        %v1823 = vld [vmem:[%s364 + $0xce0] sm:$0xff]
        %v1824 = vld [vmem:[%s364 + $0xce8] sm:$0xff]
        %v1825 = vld [vmem:[%s364 + $0xcf0] sm:$0xff]
        %v1826 = vld [vmem:[%s364 + $0xcf8] sm:$0xff]
        %v1827 = vld [vmem:[%s364 + $0xd00] sm:$0xff]
        %v1828 = vld [vmem:[%s364 + $0xd08] sm:$0xff]
        %v1829 = vld [vmem:[%s364 + $0xd10] sm:$0xff]
        %v1830 = vld [vmem:[%s364 + $0xd18] sm:$0xff]
        %v1831 = vld [vmem:[%s364 + $0xd20] sm:$0xff]
        %v1832 = vld [vmem:[%s364 + $0xd28] sm:$0xff]
        %v1833 = vld [vmem:[%s364 + $0xd30] sm:$0xff]
        %v1834 = vld [vmem:[%s364 + $0xd38] sm:$0xff]
        %v1835 = vld [vmem:[%s364 + $0xd40] sm:$0xff]
        %v1836 = vld [vmem:[%s364 + $0xd48] sm:$0xff]
        %v1837 = vld [vmem:[%s364 + $0xd50] sm:$0xff]
        %v1838 = vld [vmem:[%s364 + $0xd58] sm:$0xff]
        %v1839 = vld [vmem:[%s364 + $0xd60] sm:$0xff]
        %v1840 = vld [vmem:[%s364 + $0xd68] sm:$0xff]
        %v1841 = vld [vmem:[%s364 + $0xd70] sm:$0xff]
        %v1842 = vld [vmem:[%s364 + $0xd78] sm:$0xff]
        %v1843 = vld [vmem:[%s364 + $0xd80] sm:$0xff]
        %v1844 = vld [vmem:[%s364 + $0xd88] sm:$0xff]
        %v1845 = vld [vmem:[%s364 + $0xd90] sm:$0xff]
        %v1846 = vld [vmem:[%s364 + $0xd98] sm:$0xff]
        %v1847 = vld [vmem:[%s364 + $0xda0] sm:$0xff]
        %v1848 = vld [vmem:[%s364 + $0xda8] sm:$0xff]
        %v1849 = vld [vmem:[%s364 + $0xdb0] sm:$0xff]
        %v1850 = vld [vmem:[%s364 + $0xdb8] sm:$0xff]
        %v1851 = vld [vmem:[%s364 + $0xdc0] sm:$0xff]
        %v1852 = vld [vmem:[%s364 + $0xdc8] sm:$0xff]
        %v1853 = vld [vmem:[%s364 + $0xdd0] sm:$0xff]
        %v1854 = vld [vmem:[%s364 + $0xdd8] sm:$0xff]
        %v1855 = vld [vmem:[%s364 + $0xde0] sm:$0xff]
        %v1856 = vld [vmem:[%s364 + $0xde8] sm:$0xff]
        %v1857 = vld [vmem:[%s364 + $0xdf0] sm:$0xff]
        %v1858 = vld [vmem:[%s364 + $0xdf8] sm:$0xff]
        %1860 = vst [vmem:[#allocation1] ss:$9 sm:$0xff] %v1410
        %v1861 = vld [vmem:[#allocation1] sm:$0xff]
        %v1862 = vld [vmem:[#allocation1 + $0x9] sm:$0xff]
        %v1863 = vld [vmem:[#allocation1 + $0x12] sm:$0xff]
        %v1864 = vld [vmem:[#allocation1 + $0x1b] sm:$0xff]
        %v1865 = vld [vmem:[#allocation1 + $0x24] sm:$0xff]
        %v1866 = vld [vmem:[#allocation1 + $0x2d] sm:$0xff]
        %v1867 = vld [vmem:[#allocation1 + $0x36] sm:$0xff]
        %v2323 = vunpack.c.l.b16 %v1411
        %v2324 = vunpack.c.h.b16 %v1411
        %v2325 = vunpack.c.l.b16 %v1412
        %v2326 = vunpack.c.h.b16 %v1412
        %v2327 = vunpack.c.l.b16 %v1413
        %v2328 = vunpack.c.h.b16 %v1413
        %v2329 = vunpack.c.l.b16 %v1414
        %v2330 = vunpack.c.h.b16 %v1414
        %v2331 = vunpack.c.l.b16 %v1415
        %v2332 = vunpack.c.h.b16 %v1415
        %v2333 = vunpack.c.l.b16 %v1416
        %v2334 = vunpack.c.h.b16 %v1416
        %v2335 = vunpack.c.l.b16 %v1417
        %v2336 = vunpack.c.h.b16 %v1417
        %v2337 = vunpack.c.l.b16 %v1418
        %v2338 = vunpack.c.h.b16 %v1418
        %v2339 = vunpack.c.l.b16 %v1419
        %v2340 = vunpack.c.h.b16 %v1419
        %v2341 = vunpack.c.l.b16 %v1420
        %v2342 = vunpack.c.h.b16 %v1420
        %v2343 = vunpack.c.l.b16 %v1421
        %v2344 = vunpack.c.h.b16 %v1421
        %v2345 = vunpack.c.l.b16 %v1422
        %v2346 = vunpack.c.h.b16 %v1422
        %v2347 = vunpack.c.l.b16 %v1423
        %v2348 = vunpack.c.h.b16 %v1423
        %v2349 = vunpack.c.l.b16 %v1424
        %v2350 = vunpack.c.h.b16 %v1424
        %v2351 = vunpack.c.l.b16 %v1425
        %v2352 = vunpack.c.h.b16 %v1425
        %v2353 = vunpack.c.l.b16 %v1426
        %v2354 = vunpack.c.h.b16 %v1426
        %v2355 = vunpack.c.l.b16 %v1427
        %v2356 = vunpack.c.h.b16 %v1427
        %v2357 = vunpack.c.l.b16 %v1428
        %v2358 = vunpack.c.h.b16 %v1428
        %v2359 = vunpack.c.l.b16 %v1429
        %v2360 = vunpack.c.h.b16 %v1429
        %v2361 = vunpack.c.l.b16 %v1430
        %v2362 = vunpack.c.h.b16 %v1430
        %v2363 = vunpack.c.l.b16 %v1431
        %v2364 = vunpack.c.h.b16 %v1431
        %v2365 = vunpack.c.l.b16 %v1432
        %v2366 = vunpack.c.h.b16 %v1432
        %v2367 = vunpack.c.l.b16 %v1433
        %v2368 = vunpack.c.h.b16 %v1433
        %v2369 = vunpack.c.l.b16 %v1434
        %v2370 = vunpack.c.h.b16 %v1434
        %v2371 = vunpack.c.l.b16 %v1435
        %v2372 = vunpack.c.h.b16 %v1435
        %v2373 = vunpack.c.l.b16 %v1436
        %v2374 = vunpack.c.h.b16 %v1436
        %v2375 = vunpack.c.l.b16 %v1437
        %v2376 = vunpack.c.h.b16 %v1437
        %v2377 = vunpack.c.l.b16 %v1438
        %v2378 = vunpack.c.h.b16 %v1438
        %v2379 = vunpack.c.l.b16 %v1439
        %v2380 = vunpack.c.h.b16 %v1439
        %v2381 = vunpack.c.l.b16 %v1440
        %v2382 = vunpack.c.h.b16 %v1440
        %v2383 = vunpack.c.l.b16 %v1441
        %v2384 = vunpack.c.h.b16 %v1441
        %v2385 = vunpack.c.l.b16 %v1442
        %v2386 = vunpack.c.h.b16 %v1442
        %v2387 = vunpack.c.l.b16 %v1443
        %v2388 = vunpack.c.h.b16 %v1443
        %v2389 = vunpack.c.l.b16 %v1444
        %v2390 = vunpack.c.h.b16 %v1444
        %v2391 = vunpack.c.l.b16 %v1445
        %v2392 = vunpack.c.h.b16 %v1445
        %v2393 = vunpack.c.l.b16 %v1446
        %v2394 = vunpack.c.h.b16 %v1446
        %v2395 = vunpack.c.l.b16 %v1447
        %v2396 = vunpack.c.h.b16 %v1447
        %v2397 = vunpack.c.l.b16 %v1448
        %v2398 = vunpack.c.h.b16 %v1448
        %v2399 = vunpack.c.l.b16 %v1449
        %v2400 = vunpack.c.h.b16 %v1449
        %v2401 = vunpack.c.l.b16 %v1450
        %v2402 = vunpack.c.h.b16 %v1450
        %v2403 = vunpack.c.l.b16 %v1451
        %v2404 = vunpack.c.h.b16 %v1451
        %v2405 = vunpack.c.l.b16 %v1452
        %v2406 = vunpack.c.h.b16 %v1452
        %v2407 = vunpack.c.l.b16 %v1453
        %v2408 = vunpack.c.h.b16 %v1453
        %v2409 = vunpack.c.l.b16 %v1454
        %v2410 = vunpack.c.h.b16 %v1454
        %v2411 = vunpack.c.l.b16 %v1455
        %v2412 = vunpack.c.h.b16 %v1455
        %v2413 = vunpack.c.l.b16 %v1456
        %v2414 = vunpack.c.h.b16 %v1456
        %v2415 = vunpack.c.l.b16 %v1457
        %v2416 = vunpack.c.h.b16 %v1457
        %v2417 = vunpack.c.l.b16 %v1458
        %v2418 = vunpack.c.h.b16 %v1458
        %v2419 = vunpack.c.l.b16 %v1459
        %v2420 = vunpack.c.h.b16 %v1459
        %v2421 = vunpack.c.l.b16 %v1460
        %v2422 = vunpack.c.h.b16 %v1460
        %v2423 = vunpack.c.l.b16 %v1461
        %v2424 = vunpack.c.h.b16 %v1461
        %v2425 = vunpack.c.l.b16 %v1462
        %v2426 = vunpack.c.h.b16 %v1462
        %v2427 = vunpack.c.l.b16 %v1463
        %v2428 = vunpack.c.h.b16 %v1463
        %v2429 = vunpack.c.l.b16 %v1464
        %v2430 = vunpack.c.h.b16 %v1464
        %v2431 = vunpack.c.l.b16 %v1465
        %v2432 = vunpack.c.h.b16 %v1465
        %v2433 = vunpack.c.l.b16 %v1466
        %v2434 = vunpack.c.h.b16 %v1466
        %v2435 = vunpack.c.l.b16 %v1467
        %v2436 = vunpack.c.h.b16 %v1467
        %v2437 = vunpack.c.l.b16 %v1468
        %v2438 = vunpack.c.h.b16 %v1468
        %v2439 = vunpack.c.l.b16 %v1469
        %v2440 = vunpack.c.h.b16 %v1469
        %v2441 = vunpack.c.l.b16 %v1470
        %v2442 = vunpack.c.h.b16 %v1470
        %v2443 = vunpack.c.l.b16 %v1471
        %v2444 = vunpack.c.h.b16 %v1471
        %v2445 = vunpack.c.l.b16 %v1472
        %v2446 = vunpack.c.h.b16 %v1472
        %v2447 = vunpack.c.l.b16 %v1473
        %v2448 = vunpack.c.h.b16 %v1473
        %v2449 = vunpack.c.l.b16 %v1474
        %v2450 = vunpack.c.h.b16 %v1474
        %v2451 = vunpack.c.l.b16 %v1475
        %v2452 = vunpack.c.h.b16 %v1475
        %v2453 = vunpack.c.l.b16 %v1476
        %v2454 = vunpack.c.h.b16 %v1476
        %v2455 = vunpack.c.l.b16 %v1477
        %v2456 = vunpack.c.h.b16 %v1477
        %v2457 = vunpack.c.l.b16 %v1478
        %v2458 = vunpack.c.h.b16 %v1478
        %v2459 = vunpack.c.l.b16 %v1479
        %v2460 = vunpack.c.h.b16 %v1479
        %v2461 = vunpack.c.l.b16 %v1480
        %v2462 = vunpack.c.h.b16 %v1480
        %v2463 = vunpack.c.l.b16 %v1481
        %v2464 = vunpack.c.h.b16 %v1481
        %v2465 = vunpack.c.l.b16 %v1482
        %v2466 = vunpack.c.h.b16 %v1482
        %v2467 = vunpack.c.l.b16 %v1483
        %v2468 = vunpack.c.h.b16 %v1483
        %v2469 = vunpack.c.l.b16 %v1484
        %v2470 = vunpack.c.h.b16 %v1484
        %v2471 = vunpack.c.l.b16 %v1485
        %v2472 = vunpack.c.h.b16 %v1485
        %v2473 = vunpack.c.l.b16 %v1486
        %v2474 = vunpack.c.h.b16 %v1486
        %v2475 = vunpack.c.l.b16 %v1487
        %v2476 = vunpack.c.h.b16 %v1487
        %v2477 = vunpack.c.l.b16 %v1488
        %v2478 = vunpack.c.h.b16 %v1488
        %v2479 = vunpack.c.l.b16 %v1489
        %v2480 = vunpack.c.h.b16 %v1489
        %v2481 = vunpack.c.l.b16 %v1490
        %v2482 = vunpack.c.h.b16 %v1490
        %v2483 = vunpack.c.l.b16 %v1491
        %v2484 = vunpack.c.h.b16 %v1491
        %v2485 = vunpack.c.l.b16 %v1492
        %v2486 = vunpack.c.h.b16 %v1492
        %v2487 = vunpack.c.l.b16 %v1493
        %v2488 = vunpack.c.h.b16 %v1493
        %v2489 = vunpack.c.l.b16 %v1494
        %v2490 = vunpack.c.h.b16 %v1494
        %v2491 = vunpack.c.l.b16 %v1495
        %v2492 = vunpack.c.h.b16 %v1495
        %v2493 = vunpack.c.l.b16 %v1496
        %v2494 = vunpack.c.h.b16 %v1496
        %v2495 = vunpack.c.l.b16 %v1497
        %v2496 = vunpack.c.h.b16 %v1497
        %v2497 = vunpack.c.l.b16 %v1498
        %v2498 = vunpack.c.h.b16 %v1498
        %v2499 = vunpack.c.l.b16 %v1499
        %v2500 = vunpack.c.h.b16 %v1499
        %v2501 = vunpack.c.l.b16 %v1500
        %v2502 = vunpack.c.h.b16 %v1500
        %v2503 = vunpack.c.l.b16 %v1501
        %v2504 = vunpack.c.h.b16 %v1501
        %v2505 = vunpack.c.l.b16 %v1502
        %v2506 = vunpack.c.h.b16 %v1502
        %v2507 = vunpack.c.l.b16 %v1503
        %v2508 = vunpack.c.h.b16 %v1503
        %v2509 = vunpack.c.l.b16 %v1504
        %v2510 = vunpack.c.h.b16 %v1504
        %v2511 = vunpack.c.l.b16 %v1505
        %v2512 = vunpack.c.h.b16 %v1505
        %v2513 = vunpack.c.l.b16 %v1506
        %v2514 = vunpack.c.h.b16 %v1506
        %v2515 = vunpack.c.l.b16 %v1507
        %v2516 = vunpack.c.h.b16 %v1507
        %v2517 = vunpack.c.l.b16 %v1508
        %v2518 = vunpack.c.h.b16 %v1508
        %v2519 = vunpack.c.l.b16 %v1509
        %v2520 = vunpack.c.h.b16 %v1509
        %v2521 = vunpack.c.l.b16 %v1510
        %v2522 = vunpack.c.h.b16 %v1510
        %v2523 = vunpack.c.l.b16 %v1511
        %v2524 = vunpack.c.h.b16 %v1511
        %v2525 = vunpack.c.l.b16 %v1512
        %v2526 = vunpack.c.h.b16 %v1512
        %v2527 = vunpack.c.l.b16 %v1513
        %v2528 = vunpack.c.h.b16 %v1513
        %v2529 = vunpack.c.l.b16 %v1514
        %v2530 = vunpack.c.h.b16 %v1514
        %v2531 = vunpack.c.l.b16 %v1515
        %v2532 = vunpack.c.h.b16 %v1515
        %v2533 = vunpack.c.l.b16 %v1516
        %v2534 = vunpack.c.h.b16 %v1516
        %v2535 = vunpack.c.l.b16 %v1517
        %v2536 = vunpack.c.h.b16 %v1517
        %v2537 = vunpack.c.l.b16 %v1518
        %v2538 = vunpack.c.h.b16 %v1518
        %v2539 = vunpack.c.l.b16 %v1519
        %v2540 = vunpack.c.h.b16 %v1519
        %v2541 = vunpack.c.l.b16 %v1520
        %v2542 = vunpack.c.h.b16 %v1520
        %v2543 = vunpack.c.l.b16 %v1521
        %v2544 = vunpack.c.h.b16 %v1521
        %v2545 = vunpack.c.l.b16 %v1522
        %v2546 = vunpack.c.h.b16 %v1522
        %v2547 = vunpack.c.l.b16 %v1523
        %v2548 = vunpack.c.h.b16 %v1523
        %v2549 = vunpack.c.l.b16 %v1524
        %v2550 = vunpack.c.h.b16 %v1524
        %v2551 = vunpack.c.l.b16 %v1525
        %v2552 = vunpack.c.h.b16 %v1525
        %v2553 = vunpack.c.l.b16 %v1526
        %v2554 = vunpack.c.h.b16 %v1526
        %v2555 = vunpack.c.l.b16 %v1527
        %v2556 = vunpack.c.h.b16 %v1527
        %v2557 = vunpack.c.l.b16 %v1528
        %v2558 = vunpack.c.h.b16 %v1528
        %v2559 = vunpack.c.l.b16 %v1529
        %v2560 = vunpack.c.h.b16 %v1529
        %v2561 = vunpack.c.l.b16 %v1530
        %v2562 = vunpack.c.h.b16 %v1530
        %v2563 = vunpack.c.l.b16 %v1531
        %v2564 = vunpack.c.h.b16 %v1531
        %v2565 = vunpack.c.l.b16 %v1532
        %v2566 = vunpack.c.h.b16 %v1532
        %v2567 = vunpack.c.l.b16 %v1533
        %v2568 = vunpack.c.h.b16 %v1533
        %v2569 = vunpack.c.l.b16 %v1534
        %v2570 = vunpack.c.h.b16 %v1534
        %v2571 = vunpack.c.l.b16 %v1535
        %v2572 = vunpack.c.h.b16 %v1535
        %v2573 = vunpack.c.l.b16 %v1536
        %v2574 = vunpack.c.h.b16 %v1536
        %v2575 = vunpack.c.l.b16 %v1537
        %v2576 = vunpack.c.h.b16 %v1537
        %v2577 = vunpack.c.l.b16 %v1538
        %v2578 = vunpack.c.h.b16 %v1538
        %v2579 = vunpack.c.l.b16 %v1539
        %v2580 = vunpack.c.h.b16 %v1539
        %v2581 = vunpack.c.l.b16 %v1540
        %v2582 = vunpack.c.h.b16 %v1540
        %v2583 = vunpack.c.l.b16 %v1541
        %v2584 = vunpack.c.h.b16 %v1541
        %v2585 = vunpack.c.l.b16 %v1542
        %v2586 = vunpack.c.h.b16 %v1542
        %v2587 = vunpack.c.l.b16 %v1543
        %v2588 = vunpack.c.h.b16 %v1543
        %v2589 = vunpack.c.l.b16 %v1544
        %v2590 = vunpack.c.h.b16 %v1544
        %v2591 = vunpack.c.l.b16 %v1545
        %v2592 = vunpack.c.h.b16 %v1545
        %v2593 = vunpack.c.l.b16 %v1546
        %v2594 = vunpack.c.h.b16 %v1546
        %v2595 = vunpack.c.l.b16 %v1547
        %v2596 = vunpack.c.h.b16 %v1547
        %v2597 = vunpack.c.l.b16 %v1548
        %v2598 = vunpack.c.h.b16 %v1548
        %v2599 = vunpack.c.l.b16 %v1549
        %v2600 = vunpack.c.h.b16 %v1549
        %v2601 = vunpack.c.l.b16 %v1550
        %v2602 = vunpack.c.h.b16 %v1550
        %v2603 = vunpack.c.l.b16 %v1551
        %v2604 = vunpack.c.h.b16 %v1551
        %v2605 = vunpack.c.l.b16 %v1552
        %v2606 = vunpack.c.h.b16 %v1552
        %v2607 = vunpack.c.l.b16 %v1553
        %v2608 = vunpack.c.h.b16 %v1553
        %v2609 = vunpack.c.l.b16 %v1554
        %v2610 = vunpack.c.h.b16 %v1554
        %v2611 = vunpack.c.l.b16 %v1555
        %v2612 = vunpack.c.h.b16 %v1555
        %v2613 = vunpack.c.l.b16 %v1556
        %v2614 = vunpack.c.h.b16 %v1556
        %v2615 = vunpack.c.l.b16 %v1557
        %v2616 = vunpack.c.h.b16 %v1557
        %v2617 = vunpack.c.l.b16 %v1558
        %v2618 = vunpack.c.h.b16 %v1558
        %v2619 = vunpack.c.l.b16 %v1559
        %v2620 = vunpack.c.h.b16 %v1559
        %v2621 = vunpack.c.l.b16 %v1560
        %v2622 = vunpack.c.h.b16 %v1560
        %v2623 = vunpack.c.l.b16 %v1561
        %v2624 = vunpack.c.h.b16 %v1561
        %v2625 = vunpack.c.l.b16 %v1562
        %v2626 = vunpack.c.h.b16 %v1562
        %v2627 = vunpack.c.l.b16 %v1563
        %v2628 = vunpack.c.h.b16 %v1563
        %v2629 = vunpack.c.l.b16 %v1564
        %v2630 = vunpack.c.h.b16 %v1564
        %v2631 = vunpack.c.l.b16 %v1565
        %v2632 = vunpack.c.h.b16 %v1565
        %v2633 = vunpack.c.l.b16 %v1566
        %v2634 = vunpack.c.h.b16 %v1566
        %v2635 = vunpack.c.l.b16 %v1567
        %v2636 = vunpack.c.h.b16 %v1567
        %v2637 = vunpack.c.l.b16 %v1568
        %v2638 = vunpack.c.h.b16 %v1568
        %v2639 = vunpack.c.l.b16 %v1569
        %v2640 = vunpack.c.h.b16 %v1569
        %v2641 = vunpack.c.l.b16 %v1570
        %v2642 = vunpack.c.h.b16 %v1570
        %v2643 = vunpack.c.l.b16 %v1571
        %v2644 = vunpack.c.h.b16 %v1571
        %v2645 = vunpack.c.l.b16 %v1572
        %v2646 = vunpack.c.h.b16 %v1572
        %v2647 = vunpack.c.l.b16 %v1573
        %v2648 = vunpack.c.h.b16 %v1573
        %v2649 = vunpack.c.l.b16 %v1574
        %v2650 = vunpack.c.h.b16 %v1574
        %v2651 = vunpack.c.l.b16 %v1575
        %v2652 = vunpack.c.h.b16 %v1575
        %v2653 = vunpack.c.l.b16 %v1576
        %v2654 = vunpack.c.h.b16 %v1576
        %v2655 = vunpack.c.l.b16 %v1577
        %v2656 = vunpack.c.h.b16 %v1577
        %v2657 = vunpack.c.l.b16 %v1578
        %v2658 = vunpack.c.h.b16 %v1578
        %v2659 = vunpack.c.l.b16 %v1579
        %v2660 = vunpack.c.h.b16 %v1579
        %v2661 = vunpack.c.l.b16 %v1580
        %v2662 = vunpack.c.h.b16 %v1580
        %v2663 = vunpack.c.l.b16 %v1581
        %v2664 = vunpack.c.h.b16 %v1581
        %v2665 = vunpack.c.l.b16 %v1582
        %v2666 = vunpack.c.h.b16 %v1582
        %v2667 = vunpack.c.l.b16 %v1583
        %v2668 = vunpack.c.h.b16 %v1583
        %v2669 = vunpack.c.l.b16 %v1584
        %v2670 = vunpack.c.h.b16 %v1584
        %v2671 = vunpack.c.l.b16 %v1585
        %v2672 = vunpack.c.h.b16 %v1585
        %v2673 = vunpack.c.l.b16 %v1586
        %v2674 = vunpack.c.h.b16 %v1586
        %v2675 = vunpack.c.l.b16 %v1587
        %v2676 = vunpack.c.h.b16 %v1587
        %v2677 = vunpack.c.l.b16 %v1588
        %v2678 = vunpack.c.h.b16 %v1588
        %v2679 = vunpack.c.l.b16 %v1589
        %v2680 = vunpack.c.h.b16 %v1589
        %v2681 = vunpack.c.l.b16 %v1590
        %v2682 = vunpack.c.h.b16 %v1590
        %v2683 = vunpack.c.l.b16 %v1591
        %v2684 = vunpack.c.h.b16 %v1591
        %v2685 = vunpack.c.l.b16 %v1592
        %v2686 = vunpack.c.h.b16 %v1592
        %v2687 = vunpack.c.l.b16 %v1593
        %v2688 = vunpack.c.h.b16 %v1593
        %v2689 = vunpack.c.l.b16 %v1594
        %v2690 = vunpack.c.h.b16 %v1594
        %v2691 = vunpack.c.l.b16 %v1595
        %v2692 = vunpack.c.h.b16 %v1595
        %v2693 = vunpack.c.l.b16 %v1596
        %v2694 = vunpack.c.h.b16 %v1596
        %v2695 = vunpack.c.l.b16 %v1597
        %v2696 = vunpack.c.h.b16 %v1597
        %v2697 = vunpack.c.l.b16 %v1598
        %v2698 = vunpack.c.h.b16 %v1598
        %v2699 = vunpack.c.l.b16 %v1599
        %v2700 = vunpack.c.h.b16 %v1599
        %v2701 = vunpack.c.l.b16 %v1600
        %v2702 = vunpack.c.h.b16 %v1600
        %v2703 = vunpack.c.l.b16 %v1601
        %v2704 = vunpack.c.h.b16 %v1601
        %v2705 = vunpack.c.l.b16 %v1602
        %v2706 = vunpack.c.h.b16 %v1602
        %v2707 = vunpack.c.l.b16 %v1603
        %v2708 = vunpack.c.h.b16 %v1603
        %v2709 = vunpack.c.l.b16 %v1604
        %v2710 = vunpack.c.h.b16 %v1604
        %v2711 = vunpack.c.l.b16 %v1605
        %v2712 = vunpack.c.h.b16 %v1605
        %v2713 = vunpack.c.l.b16 %v1606
        %v2714 = vunpack.c.h.b16 %v1606
        %v2715 = vunpack.c.l.b16 %v1607
        %v2716 = vunpack.c.h.b16 %v1607
        %v2717 = vunpack.c.l.b16 %v1608
        %v2718 = vunpack.c.h.b16 %v1608
        %v2719 = vunpack.c.l.b16 %v1609
        %v2720 = vunpack.c.h.b16 %v1609
        %v2721 = vunpack.c.l.b16 %v1610
        %v2722 = vunpack.c.h.b16 %v1610
        %v2723 = vunpack.c.l.b16 %v1611
        %v2724 = vunpack.c.h.b16 %v1611
        %v2725 = vunpack.c.l.b16 %v1612
        %v2726 = vunpack.c.h.b16 %v1612
        %v2727 = vunpack.c.l.b16 %v1613
        %v2728 = vunpack.c.h.b16 %v1613
        %v2729 = vunpack.c.l.b16 %v1614
        %v2730 = vunpack.c.h.b16 %v1614
        %v2731 = vunpack.c.l.b16 %v1615
        %v2732 = vunpack.c.h.b16 %v1615
        %v2733 = vunpack.c.l.b16 %v1616
        %v2734 = vunpack.c.h.b16 %v1616
        %v2735 = vunpack.c.l.b16 %v1617
        %v2736 = vunpack.c.h.b16 %v1617
        %v2737 = vunpack.c.l.b16 %v1618
        %v2738 = vunpack.c.h.b16 %v1618
        %v2739 = vunpack.c.l.b16 %v1619
        %v2740 = vunpack.c.h.b16 %v1619
        %v2741 = vunpack.c.l.b16 %v1620
        %v2742 = vunpack.c.h.b16 %v1620
        %v2743 = vunpack.c.l.b16 %v1621
        %v2744 = vunpack.c.h.b16 %v1621
        %v2745 = vunpack.c.l.b16 %v1622
        %v2746 = vunpack.c.h.b16 %v1622
        %v2747 = vunpack.c.l.b16 %v1623
        %v2748 = vunpack.c.h.b16 %v1623
        %v2749 = vunpack.c.l.b16 %v1624
        %v2750 = vunpack.c.h.b16 %v1624
        %v2751 = vunpack.c.l.b16 %v1625
        %v2752 = vunpack.c.h.b16 %v1625
        %v2753 = vunpack.c.l.b16 %v1626
        %v2754 = vunpack.c.h.b16 %v1626
        %v2755 = vunpack.c.l.b16 %v1627
        %v2756 = vunpack.c.h.b16 %v1627
        %v2757 = vunpack.c.l.b16 %v1628
        %v2758 = vunpack.c.h.b16 %v1628
        %v2759 = vunpack.c.l.b16 %v1629
        %v2760 = vunpack.c.h.b16 %v1629
        %v2761 = vunpack.c.l.b16 %v1630
        %v2762 = vunpack.c.h.b16 %v1630
        %v2763 = vunpack.c.l.b16 %v1631
        %v2764 = vunpack.c.h.b16 %v1631
        %v2765 = vunpack.c.l.b16 %v1632
        %v2766 = vunpack.c.h.b16 %v1632
        %v2767 = vunpack.c.l.b16 %v1633
        %v2768 = vunpack.c.h.b16 %v1633
        %v2769 = vunpack.c.l.b16 %v1634
        %v2770 = vunpack.c.h.b16 %v1634
        %v2771 = vunpack.c.l.b16 %v1635
        %v2772 = vunpack.c.h.b16 %v1635
        %v2773 = vunpack.c.l.b16 %v1636
        %v2774 = vunpack.c.h.b16 %v1636
        %v2775 = vunpack.c.l.b16 %v1637
        %v2776 = vunpack.c.h.b16 %v1637
        %v2777 = vunpack.c.l.b16 %v1638
        %v2778 = vunpack.c.h.b16 %v1638
        %v2779 = vunpack.c.l.b16 %v1639
        %v2780 = vunpack.c.h.b16 %v1639
        %v2781 = vunpack.c.l.b16 %v1640
        %v2782 = vunpack.c.h.b16 %v1640
        %v2783 = vunpack.c.l.b16 %v1641
        %v2784 = vunpack.c.h.b16 %v1641
        %v2785 = vunpack.c.l.b16 %v1642
        %v2786 = vunpack.c.h.b16 %v1642
        %v2787 = vunpack.c.l.b16 %v1643
        %v2788 = vunpack.c.h.b16 %v1643
        %v2789 = vunpack.c.l.b16 %v1644
        %v2790 = vunpack.c.h.b16 %v1644
        %v2791 = vunpack.c.l.b16 %v1645
        %v2792 = vunpack.c.h.b16 %v1645
        %v2793 = vunpack.c.l.b16 %v1646
        %v2794 = vunpack.c.h.b16 %v1646
        %v2795 = vunpack.c.l.b16 %v1647
        %v2796 = vunpack.c.h.b16 %v1647
        %v2797 = vunpack.c.l.b16 %v1648
        %v2798 = vunpack.c.h.b16 %v1648
        %v2799 = vunpack.c.l.b16 %v1649
        %v2800 = vunpack.c.h.b16 %v1649
        %v2801 = vunpack.c.l.b16 %v1650
        %v2802 = vunpack.c.h.b16 %v1650
        %v2803 = vunpack.c.l.b16 %v1651
        %v2804 = vunpack.c.h.b16 %v1651
        %v2805 = vunpack.c.l.b16 %v1652
        %v2806 = vunpack.c.h.b16 %v1652
        %v2807 = vunpack.c.l.b16 %v1653
        %v2808 = vunpack.c.h.b16 %v1653
        %v2809 = vunpack.c.l.b16 %v1654
        %v2810 = vunpack.c.h.b16 %v1654
        %v2811 = vunpack.c.l.b16 %v1655
        %v2812 = vunpack.c.h.b16 %v1655
        %v2813 = vunpack.c.l.b16 %v1656
        %v2814 = vunpack.c.h.b16 %v1656
        %v2815 = vunpack.c.l.b16 %v1657
        %v2816 = vunpack.c.h.b16 %v1657
        %v2817 = vunpack.c.l.b16 %v1658
        %v2818 = vunpack.c.h.b16 %v1658
        %v2819 = vunpack.c.l.b16 %v1659
        %v2820 = vunpack.c.h.b16 %v1659
        %v2821 = vunpack.c.l.b16 %v1660
        %v2822 = vunpack.c.h.b16 %v1660
        %v2823 = vunpack.c.l.b16 %v1661
        %v2824 = vunpack.c.h.b16 %v1661
        %v2825 = vunpack.c.l.b16 %v1662
        %v2826 = vunpack.c.h.b16 %v1662
        %v2827 = vunpack.c.l.b16 %v1663
        %v2828 = vunpack.c.h.b16 %v1663
        %v2829 = vunpack.c.l.b16 %v1664
        %v2830 = vunpack.c.h.b16 %v1664
        %v2831 = vunpack.c.l.b16 %v1665
        %v2832 = vunpack.c.h.b16 %v1665
        %v2833 = vunpack.c.l.b16 %v1666
        %v2834 = vunpack.c.h.b16 %v1666
        %v2835 = vunpack.c.l.b16 %v1667
        %v2836 = vunpack.c.h.b16 %v1667
        %v2837 = vunpack.c.l.b16 %v1668
        %v2838 = vunpack.c.h.b16 %v1668
        %v2839 = vunpack.c.l.b16 %v1669
        %v2840 = vunpack.c.h.b16 %v1669
        %v2841 = vunpack.c.l.b16 %v1670
        %v2842 = vunpack.c.h.b16 %v1670
        %v2843 = vunpack.c.l.b16 %v1671
        %v2844 = vunpack.c.h.b16 %v1671
        %v2845 = vunpack.c.l.b16 %v1672
        %v2846 = vunpack.c.h.b16 %v1672
        %v2847 = vunpack.c.l.b16 %v1673
        %v2848 = vunpack.c.h.b16 %v1673
        %v2849 = vunpack.c.l.b16 %v1674
        %v2850 = vunpack.c.h.b16 %v1674
        %v2851 = vunpack.c.l.b16 %v1675
        %v2852 = vunpack.c.h.b16 %v1675
        %v2853 = vunpack.c.l.b16 %v1676
        %v2854 = vunpack.c.h.b16 %v1676
        %v2855 = vunpack.c.l.b16 %v1677
        %v2856 = vunpack.c.h.b16 %v1677
        %v2857 = vunpack.c.l.b16 %v1678
        %v2858 = vunpack.c.h.b16 %v1678
        %v2859 = vunpack.c.l.b16 %v1679
        %v2860 = vunpack.c.h.b16 %v1679
        %v2861 = vunpack.c.l.b16 %v1680
        %v2862 = vunpack.c.h.b16 %v1680
        %v2863 = vunpack.c.l.b16 %v1681
        %v2864 = vunpack.c.h.b16 %v1681
        %v2865 = vunpack.c.l.b16 %v1682
        %v2866 = vunpack.c.h.b16 %v1682
        %v2867 = vunpack.c.l.b16 %v1683
        %v2868 = vunpack.c.h.b16 %v1683
        %v2869 = vunpack.c.l.b16 %v1684
        %v2870 = vunpack.c.h.b16 %v1684
        %v2871 = vunpack.c.l.b16 %v1685
        %v2872 = vunpack.c.h.b16 %v1685
        %v2873 = vunpack.c.l.b16 %v1686
        %v2874 = vunpack.c.h.b16 %v1686
        %v2875 = vunpack.c.l.b16 %v1687
        %v2876 = vunpack.c.h.b16 %v1687
        %v2877 = vunpack.c.l.b16 %v1688
        %v2878 = vunpack.c.h.b16 %v1688
        %v2879 = vunpack.c.l.b16 %v1689
        %v2880 = vunpack.c.h.b16 %v1689
        %v2881 = vunpack.c.l.b16 %v1690
        %v2882 = vunpack.c.h.b16 %v1690
        %v2883 = vunpack.c.l.b16 %v1691
        %v2884 = vunpack.c.h.b16 %v1691
        %v2885 = vunpack.c.l.b16 %v1692
        %v2886 = vunpack.c.h.b16 %v1692
        %v2887 = vunpack.c.l.b16 %v1693
        %v2888 = vunpack.c.h.b16 %v1693
        %v2889 = vunpack.c.l.b16 %v1694
        %v2890 = vunpack.c.h.b16 %v1694
        %v2891 = vunpack.c.l.b16 %v1695
        %v2892 = vunpack.c.h.b16 %v1695
        %v2893 = vunpack.c.l.b16 %v1696
        %v2894 = vunpack.c.h.b16 %v1696
        %v2895 = vunpack.c.l.b16 %v1697
        %v2896 = vunpack.c.h.b16 %v1697
        %v2897 = vunpack.c.l.b16 %v1698
        %v2898 = vunpack.c.h.b16 %v1698
        %v2899 = vunpack.c.l.b16 %v1699
        %v2900 = vunpack.c.h.b16 %v1699
        %v2901 = vunpack.c.l.b16 %v1700
        %v2902 = vunpack.c.h.b16 %v1700
        %v2903 = vunpack.c.l.b16 %v1701
        %v2904 = vunpack.c.h.b16 %v1701
        %v2905 = vunpack.c.l.b16 %v1702
        %v2906 = vunpack.c.h.b16 %v1702
        %v2907 = vunpack.c.l.b16 %v1703
        %v2908 = vunpack.c.h.b16 %v1703
        %v2909 = vunpack.c.l.b16 %v1704
        %v2910 = vunpack.c.h.b16 %v1704
        %v2911 = vunpack.c.l.b16 %v1705
        %v2912 = vunpack.c.h.b16 %v1705
        %v2913 = vunpack.c.l.b16 %v1706
        %v2914 = vunpack.c.h.b16 %v1706
        %v2915 = vunpack.c.l.b16 %v1707
        %v2916 = vunpack.c.h.b16 %v1707
        %v2917 = vunpack.c.l.b16 %v1708
        %v2918 = vunpack.c.h.b16 %v1708
        %v2919 = vunpack.c.l.b16 %v1709
        %v2920 = vunpack.c.h.b16 %v1709
        %v2921 = vunpack.c.l.b16 %v1710
        %v2922 = vunpack.c.h.b16 %v1710
        %v2923 = vunpack.c.l.b16 %v1711
        %v2924 = vunpack.c.h.b16 %v1711
        %v2925 = vunpack.c.l.b16 %v1712
        %v2926 = vunpack.c.h.b16 %v1712
        %v2927 = vunpack.c.l.b16 %v1713
        %v2928 = vunpack.c.h.b16 %v1713
        %v2929 = vunpack.c.l.b16 %v1714
        %v2930 = vunpack.c.h.b16 %v1714
        %v2931 = vunpack.c.l.b16 %v1715
        %v2932 = vunpack.c.h.b16 %v1715
        %v2933 = vunpack.c.l.b16 %v1716
        %v2934 = vunpack.c.h.b16 %v1716
        %v2935 = vunpack.c.l.b16 %v1717
        %v2936 = vunpack.c.h.b16 %v1717
        %v2937 = vunpack.c.l.b16 %v1718
        %v2938 = vunpack.c.h.b16 %v1718
        %v2939 = vunpack.c.l.b16 %v1719
        %v2940 = vunpack.c.h.b16 %v1719
        %v2941 = vunpack.c.l.b16 %v1720
        %v2942 = vunpack.c.h.b16 %v1720
        %v2943 = vunpack.c.l.b16 %v1721
        %v2944 = vunpack.c.h.b16 %v1721
        %v2945 = vunpack.c.l.b16 %v1722
        %v2946 = vunpack.c.h.b16 %v1722
        %v2947 = vunpack.c.l.b16 %v1723
        %v2948 = vunpack.c.h.b16 %v1723
        %v2949 = vunpack.c.l.b16 %v1724
        %v2950 = vunpack.c.h.b16 %v1724
        %v2951 = vunpack.c.l.b16 %v1725
        %v2952 = vunpack.c.h.b16 %v1725
        %v2953 = vunpack.c.l.b16 %v1726
        %v2954 = vunpack.c.h.b16 %v1726
        %v2955 = vunpack.c.l.b16 %v1727
        %v2956 = vunpack.c.h.b16 %v1727
        %v2957 = vunpack.c.l.b16 %v1728
        %v2958 = vunpack.c.h.b16 %v1728
        %v2959 = vunpack.c.l.b16 %v1729
        %v2960 = vunpack.c.h.b16 %v1729
        %v2961 = vunpack.c.l.b16 %v1730
        %v2962 = vunpack.c.h.b16 %v1730
        %v2963 = vunpack.c.l.b16 %v1731
        %v2964 = vunpack.c.h.b16 %v1731
        %v2965 = vunpack.c.l.b16 %v1732
        %v2966 = vunpack.c.h.b16 %v1732
        %v2967 = vunpack.c.l.b16 %v1733
        %v2968 = vunpack.c.h.b16 %v1733
        %v2969 = vunpack.c.l.b16 %v1734
        %v2970 = vunpack.c.h.b16 %v1734
        %v2971 = vunpack.c.l.b16 %v1735
        %v2972 = vunpack.c.h.b16 %v1735
        %v2973 = vunpack.c.l.b16 %v1736
        %v2974 = vunpack.c.h.b16 %v1736
        %v2975 = vunpack.c.l.b16 %v1737
        %v2976 = vunpack.c.h.b16 %v1737
        %v2977 = vunpack.c.l.b16 %v1738
        %v2978 = vunpack.c.h.b16 %v1738
        %v2979 = vunpack.c.l.b16 %v1739
        %v2980 = vunpack.c.h.b16 %v1739
        %v2981 = vunpack.c.l.b16 %v1740
        %v2982 = vunpack.c.h.b16 %v1740
        %v2983 = vunpack.c.l.b16 %v1741
        %v2984 = vunpack.c.h.b16 %v1741
        %v2985 = vunpack.c.l.b16 %v1742
        %v2986 = vunpack.c.h.b16 %v1742
        %v2987 = vunpack.c.l.b16 %v1743
        %v2988 = vunpack.c.h.b16 %v1743
        %v2989 = vunpack.c.l.b16 %v1744
        %v2990 = vunpack.c.h.b16 %v1744
        %v2991 = vunpack.c.l.b16 %v1745
        %v2992 = vunpack.c.h.b16 %v1745
        %v2993 = vunpack.c.l.b16 %v1746
        %v2994 = vunpack.c.h.b16 %v1746
        %v2995 = vunpack.c.l.b16 %v1747
        %v2996 = vunpack.c.h.b16 %v1747
        %v2997 = vunpack.c.l.b16 %v1748
        %v2998 = vunpack.c.h.b16 %v1748
        %v2999 = vunpack.c.l.b16 %v1749
        %v3000 = vunpack.c.h.b16 %v1749
        %v3001 = vunpack.c.l.b16 %v1750
        %v3002 = vunpack.c.h.b16 %v1750
        %v3003 = vunpack.c.l.b16 %v1751
        %v3004 = vunpack.c.h.b16 %v1751
        %v3005 = vunpack.c.l.b16 %v1752
        %v3006 = vunpack.c.h.b16 %v1752
        %v3007 = vunpack.c.l.b16 %v1753
        %v3008 = vunpack.c.h.b16 %v1753
        %v3009 = vunpack.c.l.b16 %v1754
        %v3010 = vunpack.c.h.b16 %v1754
        %v3011 = vunpack.c.l.b16 %v1755
        %v3012 = vunpack.c.h.b16 %v1755
        %v3013 = vunpack.c.l.b16 %v1756
        %v3014 = vunpack.c.h.b16 %v1756
        %v3015 = vunpack.c.l.b16 %v1757
        %v3016 = vunpack.c.h.b16 %v1757
        %v3017 = vunpack.c.l.b16 %v1758
        %v3018 = vunpack.c.h.b16 %v1758
        %v3019 = vunpack.c.l.b16 %v1759
        %v3020 = vunpack.c.h.b16 %v1759
        %v3021 = vunpack.c.l.b16 %v1760
        %v3022 = vunpack.c.h.b16 %v1760
        %v3023 = vunpack.c.l.b16 %v1761
        %v3024 = vunpack.c.h.b16 %v1761
        %v3025 = vunpack.c.l.b16 %v1762
        %v3026 = vunpack.c.h.b16 %v1762
        %v3027 = vunpack.c.l.b16 %v1763
        %v3028 = vunpack.c.h.b16 %v1763
        %v3029 = vunpack.c.l.b16 %v1764
        %v3030 = vunpack.c.h.b16 %v1764
        %v3031 = vunpack.c.l.b16 %v1765
        %v3032 = vunpack.c.h.b16 %v1765
        %v3033 = vunpack.c.l.b16 %v1766
        %v3034 = vunpack.c.h.b16 %v1766
        %v3035 = vunpack.c.l.b16 %v1767
        %v3036 = vunpack.c.h.b16 %v1767
        %v3037 = vunpack.c.l.b16 %v1768
        %v3038 = vunpack.c.h.b16 %v1768
        %v3039 = vunpack.c.l.b16 %v1769
        %v3040 = vunpack.c.h.b16 %v1769
        %v3041 = vunpack.c.l.b16 %v1770
        %v3042 = vunpack.c.h.b16 %v1770
        %v3043 = vunpack.c.l.b16 %v1771
        %v3044 = vunpack.c.h.b16 %v1771
        %v3045 = vunpack.c.l.b16 %v1772
        %v3046 = vunpack.c.h.b16 %v1772
        %v3047 = vunpack.c.l.b16 %v1773
        %v3048 = vunpack.c.h.b16 %v1773
        %v3049 = vunpack.c.l.b16 %v1774
        %v3050 = vunpack.c.h.b16 %v1774
        %v3051 = vunpack.c.l.b16 %v1775
        %v3052 = vunpack.c.h.b16 %v1775
        %v3053 = vunpack.c.l.b16 %v1776
        %v3054 = vunpack.c.h.b16 %v1776
        %v3055 = vunpack.c.l.b16 %v1777
        %v3056 = vunpack.c.h.b16 %v1777
        %v3057 = vunpack.c.l.b16 %v1778
        %v3058 = vunpack.c.h.b16 %v1778
        %v3059 = vunpack.c.l.b16 %v1779
        %v3060 = vunpack.c.h.b16 %v1779
        %v3061 = vunpack.c.l.b16 %v1780
        %v3062 = vunpack.c.h.b16 %v1780
        %v3063 = vunpack.c.l.b16 %v1781
        %v3064 = vunpack.c.h.b16 %v1781
        %v3065 = vunpack.c.l.b16 %v1782
        %v3066 = vunpack.c.h.b16 %v1782
        %v3067 = vunpack.c.l.b16 %v1783
        %v3068 = vunpack.c.h.b16 %v1783
        %v3069 = vunpack.c.l.b16 %v1784
        %v3070 = vunpack.c.h.b16 %v1784
        %v3071 = vunpack.c.l.b16 %v1785
        %v3072 = vunpack.c.h.b16 %v1785
        %v3073 = vunpack.c.l.b16 %v1786
        %v3074 = vunpack.c.h.b16 %v1786
        %v3075 = vunpack.c.l.b16 %v1787
        %v3076 = vunpack.c.h.b16 %v1787
        %v3077 = vunpack.c.l.b16 %v1788
        %v3078 = vunpack.c.h.b16 %v1788
        %v3079 = vunpack.c.l.b16 %v1789
        %v3080 = vunpack.c.h.b16 %v1789
        %v3081 = vunpack.c.l.b16 %v1790
        %v3082 = vunpack.c.h.b16 %v1790
        %v3083 = vunpack.c.l.b16 %v1791
        %v3084 = vunpack.c.h.b16 %v1791
        %v3085 = vunpack.c.l.b16 %v1792
        %v3086 = vunpack.c.h.b16 %v1792
        %v3087 = vunpack.c.l.b16 %v1793
        %v3088 = vunpack.c.h.b16 %v1793
        %v3089 = vunpack.c.l.b16 %v1794
        %v3090 = vunpack.c.h.b16 %v1794
        %v3091 = vunpack.c.l.b16 %v1795
        %v3092 = vunpack.c.h.b16 %v1795
        %v3093 = vunpack.c.l.b16 %v1796
        %v3094 = vunpack.c.h.b16 %v1796
        %v3095 = vunpack.c.l.b16 %v1797
        %v3096 = vunpack.c.h.b16 %v1797
        %v3097 = vunpack.c.l.b16 %v1798
        %v3098 = vunpack.c.h.b16 %v1798
        %v3099 = vunpack.c.l.b16 %v1799
        %v3100 = vunpack.c.h.b16 %v1799
        %v3101 = vunpack.c.l.b16 %v1800
        %v3102 = vunpack.c.h.b16 %v1800
        %v3103 = vunpack.c.l.b16 %v1801
        %v3104 = vunpack.c.h.b16 %v1801
        %v3105 = vunpack.c.l.b16 %v1802
        %v3106 = vunpack.c.h.b16 %v1802
        %v3107 = vunpack.c.l.b16 %v1803
        %v3108 = vunpack.c.h.b16 %v1803
        %v3109 = vunpack.c.l.b16 %v1804
        %v3110 = vunpack.c.h.b16 %v1804
        %v3111 = vunpack.c.l.b16 %v1805
        %v3112 = vunpack.c.h.b16 %v1805
        %v3113 = vunpack.c.l.b16 %v1806
        %v3114 = vunpack.c.h.b16 %v1806
        %v3115 = vunpack.c.l.b16 %v1807
        %v3116 = vunpack.c.h.b16 %v1807
        %v3117 = vunpack.c.l.b16 %v1808
        %v3118 = vunpack.c.h.b16 %v1808
        %v3119 = vunpack.c.l.b16 %v1809
        %v3120 = vunpack.c.h.b16 %v1809
        %v3121 = vunpack.c.l.b16 %v1810
        %v3122 = vunpack.c.h.b16 %v1810
        %v3123 = vunpack.c.l.b16 %v1811
        %v3124 = vunpack.c.h.b16 %v1811
        %v3125 = vunpack.c.l.b16 %v1812
        %v3126 = vunpack.c.h.b16 %v1812
        %v3127 = vunpack.c.l.b16 %v1813
        %v3128 = vunpack.c.h.b16 %v1813
        %v3129 = vunpack.c.l.b16 %v1814
        %v3130 = vunpack.c.h.b16 %v1814
        %v3131 = vunpack.c.l.b16 %v1815
        %v3132 = vunpack.c.h.b16 %v1815
        %v3133 = vunpack.c.l.b16 %v1816
        %v3134 = vunpack.c.h.b16 %v1816
        %v3135 = vunpack.c.l.b16 %v1817
        %v3136 = vunpack.c.h.b16 %v1817
        %v3137 = vunpack.c.l.b16 %v1818
        %v3138 = vunpack.c.h.b16 %v1818
        %v3139 = vunpack.c.l.b16 %v1819
        %v3140 = vunpack.c.h.b16 %v1819
        %v3141 = vunpack.c.l.b16 %v1820
        %v3142 = vunpack.c.h.b16 %v1820
        %v3143 = vunpack.c.l.b16 %v1821
        %v3144 = vunpack.c.h.b16 %v1821
        %v3145 = vunpack.c.l.b16 %v1822
        %v3146 = vunpack.c.h.b16 %v1822
        %v3147 = vunpack.c.l.b16 %v1823
        %v3148 = vunpack.c.h.b16 %v1823
        %v3149 = vunpack.c.l.b16 %v1824
        %v3150 = vunpack.c.h.b16 %v1824
        %v3151 = vunpack.c.l.b16 %v1825
        %v3152 = vunpack.c.h.b16 %v1825
        %v3153 = vunpack.c.l.b16 %v1826
        %v3154 = vunpack.c.h.b16 %v1826
        %v3155 = vunpack.c.l.b16 %v1827
        %v3156 = vunpack.c.h.b16 %v1827
        %v3157 = vunpack.c.l.b16 %v1828
        %v3158 = vunpack.c.h.b16 %v1828
        %v3159 = vunpack.c.l.b16 %v1829
        %v3160 = vunpack.c.h.b16 %v1829
        %v3161 = vunpack.c.l.b16 %v1830
        %v3162 = vunpack.c.h.b16 %v1830
        %v3163 = vunpack.c.l.b16 %v1831
        %v3164 = vunpack.c.h.b16 %v1831
        %v3165 = vunpack.c.l.b16 %v1832
        %v3166 = vunpack.c.h.b16 %v1832
        %v3167 = vunpack.c.l.b16 %v1833
        %v3168 = vunpack.c.h.b16 %v1833
        %v3169 = vunpack.c.l.b16 %v1834
        %v3170 = vunpack.c.h.b16 %v1834
        %v3171 = vunpack.c.l.b16 %v1835
        %v3172 = vunpack.c.h.b16 %v1835
        %v3173 = vunpack.c.l.b16 %v1836
        %v3174 = vunpack.c.h.b16 %v1836
        %v3175 = vunpack.c.l.b16 %v1837
        %v3176 = vunpack.c.h.b16 %v1837
        %v3177 = vunpack.c.l.b16 %v1838
        %v3178 = vunpack.c.h.b16 %v1838
        %v3179 = vunpack.c.l.b16 %v1839
        %v3180 = vunpack.c.h.b16 %v1839
        %v3181 = vunpack.c.l.b16 %v1840
        %v3182 = vunpack.c.h.b16 %v1840
        %v3183 = vunpack.c.l.b16 %v1841
        %v3184 = vunpack.c.h.b16 %v1841
        %v3185 = vunpack.c.l.b16 %v1842
        %v3186 = vunpack.c.h.b16 %v1842
        %v3187 = vunpack.c.l.b16 %v1843
        %v3188 = vunpack.c.h.b16 %v1843
        %v3189 = vunpack.c.l.b16 %v1844
        %v3190 = vunpack.c.h.b16 %v1844
        %v3191 = vunpack.c.l.b16 %v1845
        %v3192 = vunpack.c.h.b16 %v1845
        %v3193 = vunpack.c.l.b16 %v1846
        %v3194 = vunpack.c.h.b16 %v1846
        %v3195 = vunpack.c.l.b16 %v1847
        %v3196 = vunpack.c.h.b16 %v1847
        %v3197 = vunpack.c.l.b16 %v1848
        %v3198 = vunpack.c.h.b16 %v1848
        %v3199 = vunpack.c.l.b16 %v1849
        %v3200 = vunpack.c.h.b16 %v1849
        %v3201 = vunpack.c.l.b16 %v1850
        %v3202 = vunpack.c.h.b16 %v1850
        %v3203 = vunpack.c.l.b16 %v1851
        %v3204 = vunpack.c.h.b16 %v1851
        %v3205 = vunpack.c.l.b16 %v1852
        %v3206 = vunpack.c.h.b16 %v1852
        %v3207 = vunpack.c.l.b16 %v1853
        %v3208 = vunpack.c.h.b16 %v1853
        %v3209 = vunpack.c.l.b16 %v1854
        %v3210 = vunpack.c.h.b16 %v1854
        %v3211 = vunpack.c.l.b16 %v1855
        %v3212 = vunpack.c.h.b16 %v1855
        %v3213 = vunpack.c.l.b16 %v1856
        %v3214 = vunpack.c.h.b16 %v1856
        %v3215 = vunpack.c.l.b16 %v1857
        %v3216 = vunpack.c.h.b16 %v1857
        %v3217 = vunpack.c.l.b16 %v1858
        %v3218 = vunpack.c.h.b16 %v1858
        %v3219 = vpack.c.b16 %v2331, %v2323
        %v3220 = vpack.c.b16 %v2332, %v2324
        %v3221 = vpack.c.b16 %v2333, %v2325
        %v3222 = vpack.c.b16 %v2334, %v2326
        %v3223 = vpack.c.b16 %v2335, %v2327
        %v3224 = vpack.c.b16 %v2336, %v2328
        %v3225 = vpack.c.b16 %v2337, %v2329
        %v3226 = vpack.c.b16 %v2338, %v2330
        %v3227 = vpack.c.b16 %v2347, %v2339
        %v3228 = vpack.c.b16 %v2348, %v2340
        %v3229 = vpack.c.b16 %v2349, %v2341
        %v3230 = vpack.c.b16 %v2350, %v2342
        %v3231 = vpack.c.b16 %v2351, %v2343
        %v3232 = vpack.c.b16 %v2352, %v2344
        %v3233 = vpack.c.b16 %v2353, %v2345
        %v3234 = vpack.c.b16 %v2354, %v2346
        %v3235 = vpack.c.b16 %v2363, %v2355
        %v3236 = vpack.c.b16 %v2364, %v2356
        %v3237 = vpack.c.b16 %v2365, %v2357
        %v3238 = vpack.c.b16 %v2366, %v2358
        %v3239 = vpack.c.b16 %v2367, %v2359
        %v3240 = vpack.c.b16 %v2368, %v2360
        %v3241 = vpack.c.b16 %v2369, %v2361
        %v3242 = vpack.c.b16 %v2370, %v2362
        %v3243 = vpack.c.b16 %v2379, %v2371
        %v3244 = vpack.c.b16 %v2380, %v2372
        %v3245 = vpack.c.b16 %v2381, %v2373
        %v3246 = vpack.c.b16 %v2382, %v2374
        %v3247 = vpack.c.b16 %v2383, %v2375
        %v3248 = vpack.c.b16 %v2384, %v2376
        %v3249 = vpack.c.b16 %v2385, %v2377
        %v3250 = vpack.c.b16 %v2386, %v2378
        %v3251 = vpack.c.b16 %v2395, %v2387
        %v3252 = vpack.c.b16 %v2396, %v2388
        %v3253 = vpack.c.b16 %v2397, %v2389
        %v3254 = vpack.c.b16 %v2398, %v2390
        %v3255 = vpack.c.b16 %v2399, %v2391
        %v3256 = vpack.c.b16 %v2400, %v2392
        %v3257 = vpack.c.b16 %v2401, %v2393
        %v3258 = vpack.c.b16 %v2402, %v2394
        %v3259 = vpack.c.b16 %v2411, %v2403
        %v3260 = vpack.c.b16 %v2412, %v2404
        %v3261 = vpack.c.b16 %v2413, %v2405
        %v3262 = vpack.c.b16 %v2414, %v2406
        %v3263 = vpack.c.b16 %v2415, %v2407
        %v3264 = vpack.c.b16 %v2416, %v2408
        %v3265 = vpack.c.b16 %v2417, %v2409
        %v3266 = vpack.c.b16 %v2418, %v2410
        %v3267 = vpack.c.b16 %v2427, %v2419
        %v3268 = vpack.c.b16 %v2428, %v2420
        %v3269 = vpack.c.b16 %v2429, %v2421
        %v3270 = vpack.c.b16 %v2430, %v2422
        %v3271 = vpack.c.b16 %v2431, %v2423
        %v3272 = vpack.c.b16 %v2432, %v2424
        %v3273 = vpack.c.b16 %v2433, %v2425
        %v3274 = vpack.c.b16 %v2434, %v2426
        %v3275 = vpack.c.b16 %v2443, %v2435
        %v3276 = vpack.c.b16 %v2444, %v2436
        %v3277 = vpack.c.b16 %v2445, %v2437
        %v3278 = vpack.c.b16 %v2446, %v2438
        %v3279 = vpack.c.b16 %v2447, %v2439
        %v3280 = vpack.c.b16 %v2448, %v2440
        %v3281 = vpack.c.b16 %v2449, %v2441
        %v3282 = vpack.c.b16 %v2450, %v2442
        %v3283 = vpack.c.b16 %v2459, %v2451
        %v3284 = vpack.c.b16 %v2460, %v2452
        %v3285 = vpack.c.b16 %v2461, %v2453
        %v3286 = vpack.c.b16 %v2462, %v2454
        %v3287 = vpack.c.b16 %v2463, %v2455
        %v3288 = vpack.c.b16 %v2464, %v2456
        %v3289 = vpack.c.b16 %v2465, %v2457
        %v3290 = vpack.c.b16 %v2466, %v2458
        %v3291 = vpack.c.b16 %v2475, %v2467
        %v3292 = vpack.c.b16 %v2476, %v2468
        %v3293 = vpack.c.b16 %v2477, %v2469
        %v3294 = vpack.c.b16 %v2478, %v2470
        %v3295 = vpack.c.b16 %v2479, %v2471
        %v3296 = vpack.c.b16 %v2480, %v2472
        %v3297 = vpack.c.b16 %v2481, %v2473
        %v3298 = vpack.c.b16 %v2482, %v2474
        %v3299 = vpack.c.b16 %v2491, %v2483
        %v3300 = vpack.c.b16 %v2492, %v2484
        %v3301 = vpack.c.b16 %v2493, %v2485
        %v3302 = vpack.c.b16 %v2494, %v2486
        %v3303 = vpack.c.b16 %v2495, %v2487
        %v3304 = vpack.c.b16 %v2496, %v2488
        %v3305 = vpack.c.b16 %v2497, %v2489
        %v3306 = vpack.c.b16 %v2498, %v2490
        %v3307 = vpack.c.b16 %v2507, %v2499
        %v3308 = vpack.c.b16 %v2508, %v2500
        %v3309 = vpack.c.b16 %v2509, %v2501
        %v3310 = vpack.c.b16 %v2510, %v2502
        %v3311 = vpack.c.b16 %v2511, %v2503
        %v3312 = vpack.c.b16 %v2512, %v2504
        %v3313 = vpack.c.b16 %v2513, %v2505
        %v3314 = vpack.c.b16 %v2514, %v2506
        %v3315 = vpack.c.b16 %v2523, %v2515
        %v3316 = vpack.c.b16 %v2524, %v2516
        %v3317 = vpack.c.b16 %v2525, %v2517
        %v3318 = vpack.c.b16 %v2526, %v2518
        %v3319 = vpack.c.b16 %v2527, %v2519
        %v3320 = vpack.c.b16 %v2528, %v2520
        %v3321 = vpack.c.b16 %v2529, %v2521
        %v3322 = vpack.c.b16 %v2530, %v2522
        %v3323 = vpack.c.b16 %v2539, %v2531
        %v3324 = vpack.c.b16 %v2540, %v2532
        %v3325 = vpack.c.b16 %v2541, %v2533
        %v3326 = vpack.c.b16 %v2542, %v2534
        %v3327 = vpack.c.b16 %v2543, %v2535
        %v3328 = vpack.c.b16 %v2544, %v2536
        %v3329 = vpack.c.b16 %v2545, %v2537
        %v3330 = vpack.c.b16 %v2546, %v2538
        %v3331 = vpack.c.b16 %v2555, %v2547
        %v3332 = vpack.c.b16 %v2556, %v2548
        %v3333 = vpack.c.b16 %v2557, %v2549
        %v3334 = vpack.c.b16 %v2558, %v2550
        %v3335 = vpack.c.b16 %v2559, %v2551
        %v3336 = vpack.c.b16 %v2560, %v2552
        %v3337 = vpack.c.b16 %v2561, %v2553
        %v3338 = vpack.c.b16 %v2562, %v2554
        %v3339 = vpack.c.b16 %v2571, %v2563
        %v3340 = vpack.c.b16 %v2572, %v2564
        %v3341 = vpack.c.b16 %v2573, %v2565
        %v3342 = vpack.c.b16 %v2574, %v2566
        %v3343 = vpack.c.b16 %v2575, %v2567
        %v3344 = vpack.c.b16 %v2576, %v2568
        %v3345 = vpack.c.b16 %v2577, %v2569
        %v3346 = vpack.c.b16 %v2578, %v2570
        %v3347 = vpack.c.b16 %v2587, %v2579
        %v3348 = vpack.c.b16 %v2588, %v2580
        %v3349 = vpack.c.b16 %v2589, %v2581
        %v3350 = vpack.c.b16 %v2590, %v2582
        %v3351 = vpack.c.b16 %v2591, %v2583
        %v3352 = vpack.c.b16 %v2592, %v2584
        %v3353 = vpack.c.b16 %v2593, %v2585
        %v3354 = vpack.c.b16 %v2594, %v2586
        %v3355 = vpack.c.b16 %v2603, %v2595
        %v3356 = vpack.c.b16 %v2604, %v2596
        %v3357 = vpack.c.b16 %v2605, %v2597
        %v3358 = vpack.c.b16 %v2606, %v2598
        %v3359 = vpack.c.b16 %v2607, %v2599
        %v3360 = vpack.c.b16 %v2608, %v2600
        %v3361 = vpack.c.b16 %v2609, %v2601
        %v3362 = vpack.c.b16 %v2610, %v2602
        %v3363 = vpack.c.b16 %v2619, %v2611
        %v3364 = vpack.c.b16 %v2620, %v2612
        %v3365 = vpack.c.b16 %v2621, %v2613
        %v3366 = vpack.c.b16 %v2622, %v2614
        %v3367 = vpack.c.b16 %v2623, %v2615
        %v3368 = vpack.c.b16 %v2624, %v2616
        %v3369 = vpack.c.b16 %v2625, %v2617
        %v3370 = vpack.c.b16 %v2626, %v2618
        %v3371 = vpack.c.b16 %v2635, %v2627
        %v3372 = vpack.c.b16 %v2636, %v2628
        %v3373 = vpack.c.b16 %v2637, %v2629
        %v3374 = vpack.c.b16 %v2638, %v2630
        %v3375 = vpack.c.b16 %v2639, %v2631
        %v3376 = vpack.c.b16 %v2640, %v2632
        %v3377 = vpack.c.b16 %v2641, %v2633
        %v3378 = vpack.c.b16 %v2642, %v2634
        %v3379 = vpack.c.b16 %v2651, %v2643
        %v3380 = vpack.c.b16 %v2652, %v2644
        %v3381 = vpack.c.b16 %v2653, %v2645
        %v3382 = vpack.c.b16 %v2654, %v2646
        %v3383 = vpack.c.b16 %v2655, %v2647
        %v3384 = vpack.c.b16 %v2656, %v2648
        %v3385 = vpack.c.b16 %v2657, %v2649
        %v3386 = vpack.c.b16 %v2658, %v2650
        %v3387 = vpack.c.b16 %v2667, %v2659
        %v3388 = vpack.c.b16 %v2668, %v2660
        %v3389 = vpack.c.b16 %v2669, %v2661
        %v3390 = vpack.c.b16 %v2670, %v2662
        %v3391 = vpack.c.b16 %v2671, %v2663
        %v3392 = vpack.c.b16 %v2672, %v2664
        %v3393 = vpack.c.b16 %v2673, %v2665
        %v3394 = vpack.c.b16 %v2674, %v2666
        %v3395 = vpack.c.b16 %v2683, %v2675
        %v3396 = vpack.c.b16 %v2684, %v2676
        %v3397 = vpack.c.b16 %v2685, %v2677
        %v3398 = vpack.c.b16 %v2686, %v2678
        %v3399 = vpack.c.b16 %v2687, %v2679
        %v3400 = vpack.c.b16 %v2688, %v2680
        %v3401 = vpack.c.b16 %v2689, %v2681
        %v3402 = vpack.c.b16 %v2690, %v2682
        %v3403 = vpack.c.b16 %v2699, %v2691
        %v3404 = vpack.c.b16 %v2700, %v2692
        %v3405 = vpack.c.b16 %v2701, %v2693
        %v3406 = vpack.c.b16 %v2702, %v2694
        %v3407 = vpack.c.b16 %v2703, %v2695
        %v3408 = vpack.c.b16 %v2704, %v2696
        %v3409 = vpack.c.b16 %v2705, %v2697
        %v3410 = vpack.c.b16 %v2706, %v2698
        %v3411 = vpack.c.b16 %v2715, %v2707
        %v3412 = vpack.c.b16 %v2716, %v2708
        %v3413 = vpack.c.b16 %v2717, %v2709
        %v3414 = vpack.c.b16 %v2718, %v2710
        %v3415 = vpack.c.b16 %v2719, %v2711
        %v3416 = vpack.c.b16 %v2720, %v2712
        %v3417 = vpack.c.b16 %v2721, %v2713
        %v3418 = vpack.c.b16 %v2722, %v2714
        %v3419 = vpack.c.b16 %v2731, %v2723
        %v3420 = vpack.c.b16 %v2732, %v2724
        %v3421 = vpack.c.b16 %v2733, %v2725
        %v3422 = vpack.c.b16 %v2734, %v2726
        %v3423 = vpack.c.b16 %v2735, %v2727
        %v3424 = vpack.c.b16 %v2736, %v2728
        %v3425 = vpack.c.b16 %v2737, %v2729
        %v3426 = vpack.c.b16 %v2738, %v2730
        %v3427 = vpack.c.b16 %v2747, %v2739
        %v3428 = vpack.c.b16 %v2748, %v2740
        %v3429 = vpack.c.b16 %v2749, %v2741
        %v3430 = vpack.c.b16 %v2750, %v2742
        %v3431 = vpack.c.b16 %v2751, %v2743
        %v3432 = vpack.c.b16 %v2752, %v2744
        %v3433 = vpack.c.b16 %v2753, %v2745
        %v3434 = vpack.c.b16 %v2754, %v2746
        %v3435 = vpack.c.b16 %v2763, %v2755
        %v3436 = vpack.c.b16 %v2764, %v2756
        %v3437 = vpack.c.b16 %v2765, %v2757
        %v3438 = vpack.c.b16 %v2766, %v2758
        %v3439 = vpack.c.b16 %v2767, %v2759
        %v3440 = vpack.c.b16 %v2768, %v2760
        %v3441 = vpack.c.b16 %v2769, %v2761
        %v3442 = vpack.c.b16 %v2770, %v2762
        %v3443 = vpack.c.b16 %v2779, %v2771
        %v3444 = vpack.c.b16 %v2780, %v2772
        %v3445 = vpack.c.b16 %v2781, %v2773
        %v3446 = vpack.c.b16 %v2782, %v2774
        %v3447 = vpack.c.b16 %v2783, %v2775
        %v3448 = vpack.c.b16 %v2784, %v2776
        %v3449 = vpack.c.b16 %v2785, %v2777
        %v3450 = vpack.c.b16 %v2786, %v2778
        %v3451 = vpack.c.b16 %v2795, %v2787
        %v3452 = vpack.c.b16 %v2796, %v2788
        %v3453 = vpack.c.b16 %v2797, %v2789
        %v3454 = vpack.c.b16 %v2798, %v2790
        %v3455 = vpack.c.b16 %v2799, %v2791
        %v3456 = vpack.c.b16 %v2800, %v2792
        %v3457 = vpack.c.b16 %v2801, %v2793
        %v3458 = vpack.c.b16 %v2802, %v2794
        %v3459 = vpack.c.b16 %v2811, %v2803
        %v3460 = vpack.c.b16 %v2812, %v2804
        %v3461 = vpack.c.b16 %v2813, %v2805
        %v3462 = vpack.c.b16 %v2814, %v2806
        %v3463 = vpack.c.b16 %v2815, %v2807
        %v3464 = vpack.c.b16 %v2816, %v2808
        %v3465 = vpack.c.b16 %v2817, %v2809
        %v3466 = vpack.c.b16 %v2818, %v2810
        %v3467 = vpack.c.b16 %v2827, %v2819
        %v3468 = vpack.c.b16 %v2828, %v2820
        %v3469 = vpack.c.b16 %v2829, %v2821
        %v3470 = vpack.c.b16 %v2830, %v2822
        %v3471 = vpack.c.b16 %v2831, %v2823
        %v3472 = vpack.c.b16 %v2832, %v2824
        %v3473 = vpack.c.b16 %v2833, %v2825
        %v3474 = vpack.c.b16 %v2834, %v2826
        %v3475 = vpack.c.b16 %v2843, %v2835
        %v3476 = vpack.c.b16 %v2844, %v2836
        %v3477 = vpack.c.b16 %v2845, %v2837
        %v3478 = vpack.c.b16 %v2846, %v2838
        %v3479 = vpack.c.b16 %v2847, %v2839
        %v3480 = vpack.c.b16 %v2848, %v2840
        %v3481 = vpack.c.b16 %v2849, %v2841
        %v3482 = vpack.c.b16 %v2850, %v2842
        %v3483 = vpack.c.b16 %v2859, %v2851
        %v3484 = vpack.c.b16 %v2860, %v2852
        %v3485 = vpack.c.b16 %v2861, %v2853
        %v3486 = vpack.c.b16 %v2862, %v2854
        %v3487 = vpack.c.b16 %v2863, %v2855
        %v3488 = vpack.c.b16 %v2864, %v2856
        %v3489 = vpack.c.b16 %v2865, %v2857
        %v3490 = vpack.c.b16 %v2866, %v2858
        %v3491 = vpack.c.b16 %v2875, %v2867
        %v3492 = vpack.c.b16 %v2876, %v2868
        %v3493 = vpack.c.b16 %v2877, %v2869
        %v3494 = vpack.c.b16 %v2878, %v2870
        %v3495 = vpack.c.b16 %v2879, %v2871
        %v3496 = vpack.c.b16 %v2880, %v2872
        %v3497 = vpack.c.b16 %v2881, %v2873
        %v3498 = vpack.c.b16 %v2882, %v2874
        %v3499 = vpack.c.b16 %v2891, %v2883
        %v3500 = vpack.c.b16 %v2892, %v2884
        %v3501 = vpack.c.b16 %v2893, %v2885
        %v3502 = vpack.c.b16 %v2894, %v2886
        %v3503 = vpack.c.b16 %v2895, %v2887
        %v3504 = vpack.c.b16 %v2896, %v2888
        %v3505 = vpack.c.b16 %v2897, %v2889
        %v3506 = vpack.c.b16 %v2898, %v2890
        %v3507 = vpack.c.b16 %v2907, %v2899
        %v3508 = vpack.c.b16 %v2908, %v2900
        %v3509 = vpack.c.b16 %v2909, %v2901
        %v3510 = vpack.c.b16 %v2910, %v2902
        %v3511 = vpack.c.b16 %v2911, %v2903
        %v3512 = vpack.c.b16 %v2912, %v2904
        %v3513 = vpack.c.b16 %v2913, %v2905
        %v3514 = vpack.c.b16 %v2914, %v2906
        %v3515 = vpack.c.b16 %v2923, %v2915
        %v3516 = vpack.c.b16 %v2924, %v2916
        %v3517 = vpack.c.b16 %v2925, %v2917
        %v3518 = vpack.c.b16 %v2926, %v2918
        %v3519 = vpack.c.b16 %v2927, %v2919
        %v3520 = vpack.c.b16 %v2928, %v2920
        %v3521 = vpack.c.b16 %v2929, %v2921
        %v3522 = vpack.c.b16 %v2930, %v2922
        %v3523 = vpack.c.b16 %v2939, %v2931
        %v3524 = vpack.c.b16 %v2940, %v2932
        %v3525 = vpack.c.b16 %v2941, %v2933
        %v3526 = vpack.c.b16 %v2942, %v2934
        %v3527 = vpack.c.b16 %v2943, %v2935
        %v3528 = vpack.c.b16 %v2944, %v2936
        %v3529 = vpack.c.b16 %v2945, %v2937
        %v3530 = vpack.c.b16 %v2946, %v2938
        %v3531 = vpack.c.b16 %v2955, %v2947
        %v3532 = vpack.c.b16 %v2956, %v2948
        %v3533 = vpack.c.b16 %v2957, %v2949
        %v3534 = vpack.c.b16 %v2958, %v2950
        %v3535 = vpack.c.b16 %v2959, %v2951
        %v3536 = vpack.c.b16 %v2960, %v2952
        %v3537 = vpack.c.b16 %v2961, %v2953
        %v3538 = vpack.c.b16 %v2962, %v2954
        %v3539 = vpack.c.b16 %v2971, %v2963
        %v3540 = vpack.c.b16 %v2972, %v2964
        %v3541 = vpack.c.b16 %v2973, %v2965
        %v3542 = vpack.c.b16 %v2974, %v2966
        %v3543 = vpack.c.b16 %v2975, %v2967
        %v3544 = vpack.c.b16 %v2976, %v2968
        %v3545 = vpack.c.b16 %v2977, %v2969
        %v3546 = vpack.c.b16 %v2978, %v2970
        %v3547 = vpack.c.b16 %v2987, %v2979
        %v3548 = vpack.c.b16 %v2988, %v2980
        %v3549 = vpack.c.b16 %v2989, %v2981
        %v3550 = vpack.c.b16 %v2990, %v2982
        %v3551 = vpack.c.b16 %v2991, %v2983
        %v3552 = vpack.c.b16 %v2992, %v2984
        %v3553 = vpack.c.b16 %v2993, %v2985
        %v3554 = vpack.c.b16 %v2994, %v2986
        %v3555 = vpack.c.b16 %v3003, %v2995
        %v3556 = vpack.c.b16 %v3004, %v2996
        %v3557 = vpack.c.b16 %v3005, %v2997
        %v3558 = vpack.c.b16 %v3006, %v2998
        %v3559 = vpack.c.b16 %v3007, %v2999
        %v3560 = vpack.c.b16 %v3008, %v3000
        %v3561 = vpack.c.b16 %v3009, %v3001
        %v3562 = vpack.c.b16 %v3010, %v3002
        %v3563 = vpack.c.b16 %v3019, %v3011
        %v3564 = vpack.c.b16 %v3020, %v3012
        %v3565 = vpack.c.b16 %v3021, %v3013
        %v3566 = vpack.c.b16 %v3022, %v3014
        %v3567 = vpack.c.b16 %v3023, %v3015
        %v3568 = vpack.c.b16 %v3024, %v3016
        %v3569 = vpack.c.b16 %v3025, %v3017
        %v3570 = vpack.c.b16 %v3026, %v3018
        %v3571 = vpack.c.b16 %v3035, %v3027
        %v3572 = vpack.c.b16 %v3036, %v3028
        %v3573 = vpack.c.b16 %v3037, %v3029
        %v3574 = vpack.c.b16 %v3038, %v3030
        %v3575 = vpack.c.b16 %v3039, %v3031
        %v3576 = vpack.c.b16 %v3040, %v3032
        %v3577 = vpack.c.b16 %v3041, %v3033
        %v3578 = vpack.c.b16 %v3042, %v3034
        %v3579 = vpack.c.b16 %v3051, %v3043
        %v3580 = vpack.c.b16 %v3052, %v3044
        %v3581 = vpack.c.b16 %v3053, %v3045
        %v3582 = vpack.c.b16 %v3054, %v3046
        %v3583 = vpack.c.b16 %v3055, %v3047
        %v3584 = vpack.c.b16 %v3056, %v3048
        %v3585 = vpack.c.b16 %v3057, %v3049
        %v3586 = vpack.c.b16 %v3058, %v3050
        %v3587 = vpack.c.b16 %v3067, %v3059
        %v3588 = vpack.c.b16 %v3068, %v3060
        %v3589 = vpack.c.b16 %v3069, %v3061
        %v3590 = vpack.c.b16 %v3070, %v3062
        %v3591 = vpack.c.b16 %v3071, %v3063
        %v3592 = vpack.c.b16 %v3072, %v3064
        %v3593 = vpack.c.b16 %v3073, %v3065
        %v3594 = vpack.c.b16 %v3074, %v3066
        %v3595 = vpack.c.b16 %v3083, %v3075
        %v3596 = vpack.c.b16 %v3084, %v3076
        %v3597 = vpack.c.b16 %v3085, %v3077
        %v3598 = vpack.c.b16 %v3086, %v3078
        %v3599 = vpack.c.b16 %v3087, %v3079
        %v3600 = vpack.c.b16 %v3088, %v3080
        %v3601 = vpack.c.b16 %v3089, %v3081
        %v3602 = vpack.c.b16 %v3090, %v3082
        %v3603 = vpack.c.b16 %v3099, %v3091
        %v3604 = vpack.c.b16 %v3100, %v3092
        %v3605 = vpack.c.b16 %v3101, %v3093
        %v3606 = vpack.c.b16 %v3102, %v3094
        %v3607 = vpack.c.b16 %v3103, %v3095
        %v3608 = vpack.c.b16 %v3104, %v3096
        %v3609 = vpack.c.b16 %v3105, %v3097
        %v3610 = vpack.c.b16 %v3106, %v3098
        %v3611 = vpack.c.b16 %v3115, %v3107
        %v3612 = vpack.c.b16 %v3116, %v3108
        %v3613 = vpack.c.b16 %v3117, %v3109
        %v3614 = vpack.c.b16 %v3118, %v3110
        %v3615 = vpack.c.b16 %v3119, %v3111
        %v3616 = vpack.c.b16 %v3120, %v3112
        %v3617 = vpack.c.b16 %v3121, %v3113
        %v3618 = vpack.c.b16 %v3122, %v3114
        %v3619 = vpack.c.b16 %v3131, %v3123
        %v3620 = vpack.c.b16 %v3132, %v3124
        %v3621 = vpack.c.b16 %v3133, %v3125
        %v3622 = vpack.c.b16 %v3134, %v3126
        %v3623 = vpack.c.b16 %v3135, %v3127
        %v3624 = vpack.c.b16 %v3136, %v3128
        %v3625 = vpack.c.b16 %v3137, %v3129
        %v3626 = vpack.c.b16 %v3138, %v3130
        %v3627 = vpack.c.b16 %v3147, %v3139
        %v3628 = vpack.c.b16 %v3148, %v3140
        %v3629 = vpack.c.b16 %v3149, %v3141
        %v3630 = vpack.c.b16 %v3150, %v3142
        %v3631 = vpack.c.b16 %v3151, %v3143
        %v3632 = vpack.c.b16 %v3152, %v3144
        %v3633 = vpack.c.b16 %v3153, %v3145
        %v3634 = vpack.c.b16 %v3154, %v3146
        %v3635 = vpack.c.b16 %v3163, %v3155
        %v3636 = vpack.c.b16 %v3164, %v3156
        %v3637 = vpack.c.b16 %v3165, %v3157
        %v3638 = vpack.c.b16 %v3166, %v3158
        %v3639 = vpack.c.b16 %v3167, %v3159
        %v3640 = vpack.c.b16 %v3168, %v3160
        %v3641 = vpack.c.b16 %v3169, %v3161
        %v3642 = vpack.c.b16 %v3170, %v3162
        %v3643 = vpack.c.b16 %v3179, %v3171
        %v3644 = vpack.c.b16 %v3180, %v3172
        %v3645 = vpack.c.b16 %v3181, %v3173
        %v3646 = vpack.c.b16 %v3182, %v3174
        %v3647 = vpack.c.b16 %v3183, %v3175
        %v3648 = vpack.c.b16 %v3184, %v3176
        %v3649 = vpack.c.b16 %v3185, %v3177
        %v3650 = vpack.c.b16 %v3186, %v3178
        %v3651 = vpack.c.b16 %v3195, %v3187
        %v3652 = vpack.c.b16 %v3196, %v3188
        %v3653 = vpack.c.b16 %v3197, %v3189
        %v3654 = vpack.c.b16 %v3198, %v3190
        %v3655 = vpack.c.b16 %v3199, %v3191
        %v3656 = vpack.c.b16 %v3200, %v3192
        %v3657 = vpack.c.b16 %v3201, %v3193
        %v3658 = vpack.c.b16 %v3202, %v3194
        %v3659 = vpack.c.b16 %v3211, %v3203
        %v3660 = vpack.c.b16 %v3212, %v3204
        %v3661 = vpack.c.b16 %v3213, %v3205
        %v3662 = vpack.c.b16 %v3214, %v3206
        %v3663 = vpack.c.b16 %v3215, %v3207
        %v3664 = vpack.c.b16 %v3216, %v3208
        %v3665 = vpack.c.b16 %v3217, %v3209
        %v3666 = vpack.c.b16 %v3218, %v3210
        %4115 = vmatpush.bf16.msra.mxu0 %v3275
        %4116 = vmatpush.bf16.msra.mxu0 %v3267
        %4117 = vmatpush.bf16.msra.mxu0 %v3259
        %4118 = vmatpush.bf16.msra.mxu0 %v3251
        %4119 = vmatpush.bf16.msra.mxu0 %v3243
        %4120 = vmatpush.bf16.msra.mxu0 %v3235
        %4121 = vmatpush.bf16.msra.mxu0 %v3227
        %4122 = vmatpush.bf16.msra.mxu0 %v3219
        %4123 = vmatmul.bf16.gmra.mxu0 %v1861
        %v4124 = vpop.f32.mrf.mxu0
        %v4125 = vadd.f32 0.0, %v4124
        %v4126 = vpop.f32.mrf.mxu0
        %4127 = vdwg.mxu0
        %4128 = vmatpush.bf16.msra.mxu0 %v3339
        %4129 = vmatpush.bf16.msra.mxu0 %v3331
        %4130 = vmatpush.bf16.msra.mxu0 %v3323
        %4131 = vmatpush.bf16.msra.mxu0 %v3315
        %4132 = vmatpush.bf16.msra.mxu0 %v3307
        %4133 = vmatpush.bf16.msra.mxu0 %v3299
        %4134 = vmatpush.bf16.msra.mxu0 %v3291
        %4135 = vmatpush.bf16.msra.mxu0 %v3283
        %4136 = vmatmul.bf16.gmra.mxu0 %v1862
        %v4137 = vpop.f32.mrf.mxu0
        %v4138 = vadd.f32 %v4125, %v4137
        %v4139 = vpop.f32.mrf.mxu0
        %4140 = vdwg.mxu0
        %4141 = vmatpush.bf16.msra.mxu0 %v3403
        %4142 = vmatpush.bf16.msra.mxu0 %v3395
        %4143 = vmatpush.bf16.msra.mxu0 %v3387
        %4144 = vmatpush.bf16.msra.mxu0 %v3379
        %4145 = vmatpush.bf16.msra.mxu0 %v3371
        %4146 = vmatpush.bf16.msra.mxu0 %v3363
        %4147 = vmatpush.bf16.msra.mxu0 %v3355
        %4148 = vmatpush.bf16.msra.mxu0 %v3347
        %4149 = vmatmul.bf16.gmra.mxu0 %v1863
        %v4150 = vpop.f32.mrf.mxu0
        %v4151 = vadd.f32 %v4138, %v4150
        %v4152 = vpop.f32.mrf.mxu0
        %4153 = vdwg.mxu0
        %4154 = vmatpush.bf16.msra.mxu0 %v3467
        %4155 = vmatpush.bf16.msra.mxu0 %v3459
        %4156 = vmatpush.bf16.msra.mxu0 %v3451
        %4157 = vmatpush.bf16.msra.mxu0 %v3443
        %4158 = vmatpush.bf16.msra.mxu0 %v3435
        %4159 = vmatpush.bf16.msra.mxu0 %v3427
        %4160 = vmatpush.bf16.msra.mxu0 %v3419
        %4161 = vmatpush.bf16.msra.mxu0 %v3411
        %4162 = vmatmul.bf16.gmra.mxu0 %v1864
        %v4163 = vpop.f32.mrf.mxu0
        %v4164 = vadd.f32 %v4151, %v4163
        %v4165 = vpop.f32.mrf.mxu0
        %4166 = vdwg.mxu0
        %4167 = vmatpush.bf16.msra.mxu0 %v3531
        %4168 = vmatpush.bf16.msra.mxu0 %v3523
        %4169 = vmatpush.bf16.msra.mxu0 %v3515
        %4170 = vmatpush.bf16.msra.mxu0 %v3507
        %4171 = vmatpush.bf16.msra.mxu0 %v3499
        %4172 = vmatpush.bf16.msra.mxu0 %v3491
        %4173 = vmatpush.bf16.msra.mxu0 %v3483
        %4174 = vmatpush.bf16.msra.mxu0 %v3475
        %4175 = vmatmul.bf16.gmra.mxu0 %v1865
        %v4176 = vpop.f32.mrf.mxu0
        %v4177 = vadd.f32 %v4164, %v4176
        %v4178 = vpop.f32.mrf.mxu0
        %4179 = vdwg.mxu0
        %4180 = vmatpush.bf16.msra.mxu0 %v3595
        %4181 = vmatpush.bf16.msra.mxu0 %v3587
        %4182 = vmatpush.bf16.msra.mxu0 %v3579
        %4183 = vmatpush.bf16.msra.mxu0 %v3571
        %4184 = vmatpush.bf16.msra.mxu0 %v3563
        %4185 = vmatpush.bf16.msra.mxu0 %v3555
        %4186 = vmatpush.bf16.msra.mxu0 %v3547
        %4187 = vmatpush.bf16.msra.mxu0 %v3539
        %4188 = vmatmul.bf16.gmra.mxu0 %v1866
        %v4189 = vpop.f32.mrf.mxu0
        %v4190 = vadd.f32 %v4177, %v4189
        %v4191 = vpop.f32.mrf.mxu0
        %4192 = vdwg.mxu0
        %4193 = vmatpush.bf16.msra.mxu0 %v3659
        %4194 = vmatpush.bf16.msra.mxu0 %v3651
        %4195 = vmatpush.bf16.msra.mxu0 %v3643
        %4196 = vmatpush.bf16.msra.mxu0 %v3635
        %4197 = vmatpush.bf16.msra.mxu0 %v3627
        %4198 = vmatpush.bf16.msra.mxu0 %v3619
        %4199 = vmatpush.bf16.msra.mxu0 %v3611
        %4200 = vmatpush.bf16.msra.mxu0 %v3603
        %4201 = vmatmul.bf16.gmra.mxu0 %v1867
        %v4202 = vpop.f32.mrf.mxu0
        %v4203 = vadd.f32 %v4190, %v4202
        %v4204 = vpop.f32.mrf.mxu0
        %4205 = vdwg.mxu0
        %4206 = vmatpush.bf16.msra.mxu0 %v3276
        %4207 = vmatpush.bf16.msra.mxu0 %v3268
        %4208 = vmatpush.bf16.msra.mxu0 %v3260
        %4209 = vmatpush.bf16.msra.mxu0 %v3252
        %4210 = vmatpush.bf16.msra.mxu0 %v3244
        %4211 = vmatpush.bf16.msra.mxu0 %v3236
        %4212 = vmatpush.bf16.msra.mxu0 %v3228
        %4213 = vmatpush.bf16.msra.mxu0 %v3220
        %4214 = vmatmul.bf16.gmra.mxu0 %v1861
        %v4215 = vpop.f32.mrf.mxu0
        %v4216 = vadd.f32 0.0, %v4215
        %v4217 = vpop.f32.mrf.mxu0
        %4218 = vdwg.mxu0
        %4219 = vmatpush.bf16.msra.mxu0 %v3340
        %4220 = vmatpush.bf16.msra.mxu0 %v3332
        %4221 = vmatpush.bf16.msra.mxu0 %v3324
        %4222 = vmatpush.bf16.msra.mxu0 %v3316
        %4223 = vmatpush.bf16.msra.mxu0 %v3308
        %4224 = vmatpush.bf16.msra.mxu0 %v3300
        %4225 = vmatpush.bf16.msra.mxu0 %v3292
        %4226 = vmatpush.bf16.msra.mxu0 %v3284
        %4227 = vmatmul.bf16.gmra.mxu0 %v1862
        %v4228 = vpop.f32.mrf.mxu0
        %v4229 = vadd.f32 %v4216, %v4228
        %v4230 = vpop.f32.mrf.mxu0
        %4231 = vdwg.mxu0
        %4232 = vmatpush.bf16.msra.mxu0 %v3404
        %4233 = vmatpush.bf16.msra.mxu0 %v3396
        %4234 = vmatpush.bf16.msra.mxu0 %v3388
        %4235 = vmatpush.bf16.msra.mxu0 %v3380
        %4236 = vmatpush.bf16.msra.mxu0 %v3372
        %4237 = vmatpush.bf16.msra.mxu0 %v3364
        %4238 = vmatpush.bf16.msra.mxu0 %v3356
        %4239 = vmatpush.bf16.msra.mxu0 %v3348
        %4240 = vmatmul.bf16.gmra.mxu0 %v1863
        %v4241 = vpop.f32.mrf.mxu0
        %v4242 = vadd.f32 %v4229, %v4241
        %v4243 = vpop.f32.mrf.mxu0
        %4244 = vdwg.mxu0
        %4245 = vmatpush.bf16.msra.mxu0 %v3468
        %4246 = vmatpush.bf16.msra.mxu0 %v3460
        %4247 = vmatpush.bf16.msra.mxu0 %v3452
        %4248 = vmatpush.bf16.msra.mxu0 %v3444
        %4249 = vmatpush.bf16.msra.mxu0 %v3436
        %4250 = vmatpush.bf16.msra.mxu0 %v3428
        %4251 = vmatpush.bf16.msra.mxu0 %v3420
        %4252 = vmatpush.bf16.msra.mxu0 %v3412
        %4253 = vmatmul.bf16.gmra.mxu0 %v1864
        %v4254 = vpop.f32.mrf.mxu0
        %v4255 = vadd.f32 %v4242, %v4254
        %v4256 = vpop.f32.mrf.mxu0
        %4257 = vdwg.mxu0
        %4258 = vmatpush.bf16.msra.mxu0 %v3532
        %4259 = vmatpush.bf16.msra.mxu0 %v3524
        %4260 = vmatpush.bf16.msra.mxu0 %v3516
        %4261 = vmatpush.bf16.msra.mxu0 %v3508
        %4262 = vmatpush.bf16.msra.mxu0 %v3500
        %4263 = vmatpush.bf16.msra.mxu0 %v3492
        %4264 = vmatpush.bf16.msra.mxu0 %v3484
        %4265 = vmatpush.bf16.msra.mxu0 %v3476
        %4266 = vmatmul.bf16.gmra.mxu0 %v1865
        %v4267 = vpop.f32.mrf.mxu0
        %v4268 = vadd.f32 %v4255, %v4267
        %v4269 = vpop.f32.mrf.mxu0
        %4270 = vdwg.mxu0
        %4271 = vmatpush.bf16.msra.mxu0 %v3596
        %4272 = vmatpush.bf16.msra.mxu0 %v3588
        %4273 = vmatpush.bf16.msra.mxu0 %v3580
        %4274 = vmatpush.bf16.msra.mxu0 %v3572
        %4275 = vmatpush.bf16.msra.mxu0 %v3564
        %4276 = vmatpush.bf16.msra.mxu0 %v3556
        %4277 = vmatpush.bf16.msra.mxu0 %v3548
        %4278 = vmatpush.bf16.msra.mxu0 %v3540
        %4279 = vmatmul.bf16.gmra.mxu0 %v1866
        %v4280 = vpop.f32.mrf.mxu0
        %v4281 = vadd.f32 %v4268, %v4280
        %v4282 = vpop.f32.mrf.mxu0
        %4283 = vdwg.mxu0
        %4284 = vmatpush.bf16.msra.mxu0 %v3660
        %4285 = vmatpush.bf16.msra.mxu0 %v3652
        %4286 = vmatpush.bf16.msra.mxu0 %v3644
        %4287 = vmatpush.bf16.msra.mxu0 %v3636
        %4288 = vmatpush.bf16.msra.mxu0 %v3628
        %4289 = vmatpush.bf16.msra.mxu0 %v3620
        %4290 = vmatpush.bf16.msra.mxu0 %v3612
        %4291 = vmatpush.bf16.msra.mxu0 %v3604
        %4292 = vmatmul.bf16.gmra.mxu0 %v1867
        %v4293 = vpop.f32.mrf.mxu0
        %v4294 = vadd.f32 %v4281, %v4293
        %v4295 = vpop.f32.mrf.mxu0
        %4296 = vdwg.mxu0
        %4297 = vmatpush.bf16.msra.mxu0 %v3277
        %4298 = vmatpush.bf16.msra.mxu0 %v3269
        %4299 = vmatpush.bf16.msra.mxu0 %v3261
        %4300 = vmatpush.bf16.msra.mxu0 %v3253
        %4301 = vmatpush.bf16.msra.mxu0 %v3245
        %4302 = vmatpush.bf16.msra.mxu0 %v3237
        %4303 = vmatpush.bf16.msra.mxu0 %v3229
        %4304 = vmatpush.bf16.msra.mxu0 %v3221
        %4305 = vmatmul.bf16.gmra.mxu0 %v1861
        %v4306 = vpop.f32.mrf.mxu0
        %v4307 = vadd.f32 0.0, %v4306
        %v4308 = vpop.f32.mrf.mxu0
        %4309 = vdwg.mxu0
        %4310 = vmatpush.bf16.msra.mxu0 %v3341
        %4311 = vmatpush.bf16.msra.mxu0 %v3333
        %4312 = vmatpush.bf16.msra.mxu0 %v3325
        %4313 = vmatpush.bf16.msra.mxu0 %v3317
        %4314 = vmatpush.bf16.msra.mxu0 %v3309
        %4315 = vmatpush.bf16.msra.mxu0 %v3301
        %4316 = vmatpush.bf16.msra.mxu0 %v3293
        %4317 = vmatpush.bf16.msra.mxu0 %v3285
        %4318 = vmatmul.bf16.gmra.mxu0 %v1862
        %v4319 = vpop.f32.mrf.mxu0
        %v4320 = vadd.f32 %v4307, %v4319
        %v4321 = vpop.f32.mrf.mxu0
        %4322 = vdwg.mxu0
        %4323 = vmatpush.bf16.msra.mxu0 %v3405
        %4324 = vmatpush.bf16.msra.mxu0 %v3397
        %4325 = vmatpush.bf16.msra.mxu0 %v3389
        %4326 = vmatpush.bf16.msra.mxu0 %v3381
        %4327 = vmatpush.bf16.msra.mxu0 %v3373
        %4328 = vmatpush.bf16.msra.mxu0 %v3365
        %4329 = vmatpush.bf16.msra.mxu0 %v3357
        %4330 = vmatpush.bf16.msra.mxu0 %v3349
        %4331 = vmatmul.bf16.gmra.mxu0 %v1863
        %v4332 = vpop.f32.mrf.mxu0
        %v4333 = vadd.f32 %v4320, %v4332
        %v4334 = vpop.f32.mrf.mxu0
        %4335 = vdwg.mxu0
        %4336 = vmatpush.bf16.msra.mxu0 %v3469
        %4337 = vmatpush.bf16.msra.mxu0 %v3461
        %4338 = vmatpush.bf16.msra.mxu0 %v3453
        %4339 = vmatpush.bf16.msra.mxu0 %v3445
        %4340 = vmatpush.bf16.msra.mxu0 %v3437
        %4341 = vmatpush.bf16.msra.mxu0 %v3429
        %4342 = vmatpush.bf16.msra.mxu0 %v3421
        %4343 = vmatpush.bf16.msra.mxu0 %v3413
        %4344 = vmatmul.bf16.gmra.mxu0 %v1864
        %v4345 = vpop.f32.mrf.mxu0
        %v4346 = vadd.f32 %v4333, %v4345
        %v4347 = vpop.f32.mrf.mxu0
        %4348 = vdwg.mxu0
        %4349 = vmatpush.bf16.msra.mxu0 %v3533
        %4350 = vmatpush.bf16.msra.mxu0 %v3525
        %4351 = vmatpush.bf16.msra.mxu0 %v3517
        %4352 = vmatpush.bf16.msra.mxu0 %v3509
        %4353 = vmatpush.bf16.msra.mxu0 %v3501
        %4354 = vmatpush.bf16.msra.mxu0 %v3493
        %4355 = vmatpush.bf16.msra.mxu0 %v3485
        %4356 = vmatpush.bf16.msra.mxu0 %v3477
        %4357 = vmatmul.bf16.gmra.mxu0 %v1865
        %v4358 = vpop.f32.mrf.mxu0
        %v4359 = vadd.f32 %v4346, %v4358
        %v4360 = vpop.f32.mrf.mxu0
        %4361 = vdwg.mxu0
        %4362 = vmatpush.bf16.msra.mxu0 %v3597
        %4363 = vmatpush.bf16.msra.mxu0 %v3589
        %4364 = vmatpush.bf16.msra.mxu0 %v3581
        %4365 = vmatpush.bf16.msra.mxu0 %v3573
        %4366 = vmatpush.bf16.msra.mxu0 %v3565
        %4367 = vmatpush.bf16.msra.mxu0 %v3557
        %4368 = vmatpush.bf16.msra.mxu0 %v3549
        %4369 = vmatpush.bf16.msra.mxu0 %v3541
        %4370 = vmatmul.bf16.gmra.mxu0 %v1866
        %v4371 = vpop.f32.mrf.mxu0
        %v4372 = vadd.f32 %v4359, %v4371
        %v4373 = vpop.f32.mrf.mxu0
        %4374 = vdwg.mxu0
        %4375 = vmatpush.bf16.msra.mxu0 %v3661
        %4376 = vmatpush.bf16.msra.mxu0 %v3653
        %4377 = vmatpush.bf16.msra.mxu0 %v3645
        %4378 = vmatpush.bf16.msra.mxu0 %v3637
        %4379 = vmatpush.bf16.msra.mxu0 %v3629
        %4380 = vmatpush.bf16.msra.mxu0 %v3621
        %4381 = vmatpush.bf16.msra.mxu0 %v3613
        %4382 = vmatpush.bf16.msra.mxu0 %v3605
        %4383 = vmatmul.bf16.gmra.mxu0 %v1867
        %v4384 = vpop.f32.mrf.mxu0
        %v4385 = vadd.f32 %v4372, %v4384
        %v4386 = vpop.f32.mrf.mxu0
        %4387 = vdwg.mxu0
        %4388 = vmatpush.bf16.msra.mxu0 %v3278
        %4389 = vmatpush.bf16.msra.mxu0 %v3270
        %4390 = vmatpush.bf16.msra.mxu0 %v3262
        %4391 = vmatpush.bf16.msra.mxu0 %v3254
        %4392 = vmatpush.bf16.msra.mxu0 %v3246
        %4393 = vmatpush.bf16.msra.mxu0 %v3238
        %4394 = vmatpush.bf16.msra.mxu0 %v3230
        %4395 = vmatpush.bf16.msra.mxu0 %v3222
        %4396 = vmatmul.bf16.gmra.mxu0 %v1861
        %v4397 = vpop.f32.mrf.mxu0
        %v4398 = vadd.f32 0.0, %v4397
        %v4399 = vpop.f32.mrf.mxu0
        %4400 = vdwg.mxu0
        %4401 = vmatpush.bf16.msra.mxu0 %v3342
        %4402 = vmatpush.bf16.msra.mxu0 %v3334
        %4403 = vmatpush.bf16.msra.mxu0 %v3326
        %4404 = vmatpush.bf16.msra.mxu0 %v3318
        %4405 = vmatpush.bf16.msra.mxu0 %v3310
        %4406 = vmatpush.bf16.msra.mxu0 %v3302
        %4407 = vmatpush.bf16.msra.mxu0 %v3294
        %4408 = vmatpush.bf16.msra.mxu0 %v3286
        %4409 = vmatmul.bf16.gmra.mxu0 %v1862
        %v4410 = vpop.f32.mrf.mxu0
        %v4411 = vadd.f32 %v4398, %v4410
        %v4412 = vpop.f32.mrf.mxu0
        %4413 = vdwg.mxu0
        %4414 = vmatpush.bf16.msra.mxu0 %v3406
        %4415 = vmatpush.bf16.msra.mxu0 %v3398
        %4416 = vmatpush.bf16.msra.mxu0 %v3390
        %4417 = vmatpush.bf16.msra.mxu0 %v3382
        %4418 = vmatpush.bf16.msra.mxu0 %v3374
        %4419 = vmatpush.bf16.msra.mxu0 %v3366
        %4420 = vmatpush.bf16.msra.mxu0 %v3358
        %4421 = vmatpush.bf16.msra.mxu0 %v3350
        %4422 = vmatmul.bf16.gmra.mxu0 %v1863
        %v4423 = vpop.f32.mrf.mxu0
        %v4424 = vadd.f32 %v4411, %v4423
        %v4425 = vpop.f32.mrf.mxu0
        %4426 = vdwg.mxu0
        %4427 = vmatpush.bf16.msra.mxu0 %v3470
        %4428 = vmatpush.bf16.msra.mxu0 %v3462
        %4429 = vmatpush.bf16.msra.mxu0 %v3454
        %4430 = vmatpush.bf16.msra.mxu0 %v3446
        %4431 = vmatpush.bf16.msra.mxu0 %v3438
        %4432 = vmatpush.bf16.msra.mxu0 %v3430
        %4433 = vmatpush.bf16.msra.mxu0 %v3422
        %4434 = vmatpush.bf16.msra.mxu0 %v3414
        %4435 = vmatmul.bf16.gmra.mxu0 %v1864
        %v4436 = vpop.f32.mrf.mxu0
        %v4437 = vadd.f32 %v4424, %v4436
        %v4438 = vpop.f32.mrf.mxu0
        %4439 = vdwg.mxu0
        %4440 = vmatpush.bf16.msra.mxu0 %v3534
        %4441 = vmatpush.bf16.msra.mxu0 %v3526
        %4442 = vmatpush.bf16.msra.mxu0 %v3518
        %4443 = vmatpush.bf16.msra.mxu0 %v3510
        %4444 = vmatpush.bf16.msra.mxu0 %v3502
        %4445 = vmatpush.bf16.msra.mxu0 %v3494
        %4446 = vmatpush.bf16.msra.mxu0 %v3486
        %4447 = vmatpush.bf16.msra.mxu0 %v3478
        %4448 = vmatmul.bf16.gmra.mxu0 %v1865
        %v4449 = vpop.f32.mrf.mxu0
        %v4450 = vadd.f32 %v4437, %v4449
        %v4451 = vpop.f32.mrf.mxu0
        %4452 = vdwg.mxu0
        %4453 = vmatpush.bf16.msra.mxu0 %v3598
        %4454 = vmatpush.bf16.msra.mxu0 %v3590
        %4455 = vmatpush.bf16.msra.mxu0 %v3582
        %4456 = vmatpush.bf16.msra.mxu0 %v3574
        %4457 = vmatpush.bf16.msra.mxu0 %v3566
        %4458 = vmatpush.bf16.msra.mxu0 %v3558
        %4459 = vmatpush.bf16.msra.mxu0 %v3550
        %4460 = vmatpush.bf16.msra.mxu0 %v3542
        %4461 = vmatmul.bf16.gmra.mxu0 %v1866
        %v4462 = vpop.f32.mrf.mxu0
        %v4463 = vadd.f32 %v4450, %v4462
        %v4464 = vpop.f32.mrf.mxu0
        %4465 = vdwg.mxu0
        %4466 = vmatpush.bf16.msra.mxu0 %v3662
        %4467 = vmatpush.bf16.msra.mxu0 %v3654
        %4468 = vmatpush.bf16.msra.mxu0 %v3646
        %4469 = vmatpush.bf16.msra.mxu0 %v3638
        %4470 = vmatpush.bf16.msra.mxu0 %v3630
        %4471 = vmatpush.bf16.msra.mxu0 %v3622
        %4472 = vmatpush.bf16.msra.mxu0 %v3614
        %4473 = vmatpush.bf16.msra.mxu0 %v3606
        %4474 = vmatmul.bf16.gmra.mxu0 %v1867
        %v4475 = vpop.f32.mrf.mxu0
        %v4476 = vadd.f32 %v4463, %v4475
        %v4477 = vpop.f32.mrf.mxu0
        %4478 = vdwg.mxu0
        %4479 = vmatpush.bf16.msra.mxu0 %v3279
        %4480 = vmatpush.bf16.msra.mxu0 %v3271
        %4481 = vmatpush.bf16.msra.mxu0 %v3263
        %4482 = vmatpush.bf16.msra.mxu0 %v3255
        %4483 = vmatpush.bf16.msra.mxu0 %v3247
        %4484 = vmatpush.bf16.msra.mxu0 %v3239
        %4485 = vmatpush.bf16.msra.mxu0 %v3231
        %4486 = vmatpush.bf16.msra.mxu0 %v3223
        %4487 = vmatmul.bf16.gmra.mxu0 %v1861
        %v4488 = vpop.f32.mrf.mxu0
        %v4489 = vadd.f32 0.0, %v4488
        %v4490 = vpop.f32.mrf.mxu0
        %4491 = vdwg.mxu0
        %4492 = vmatpush.bf16.msra.mxu0 %v3343
        %4493 = vmatpush.bf16.msra.mxu0 %v3335
        %4494 = vmatpush.bf16.msra.mxu0 %v3327
        %4495 = vmatpush.bf16.msra.mxu0 %v3319
        %4496 = vmatpush.bf16.msra.mxu0 %v3311
        %4497 = vmatpush.bf16.msra.mxu0 %v3303
        %4498 = vmatpush.bf16.msra.mxu0 %v3295
        %4499 = vmatpush.bf16.msra.mxu0 %v3287
        %4500 = vmatmul.bf16.gmra.mxu0 %v1862
        %v4501 = vpop.f32.mrf.mxu0
        %v4502 = vadd.f32 %v4489, %v4501
        %v4503 = vpop.f32.mrf.mxu0
        %4504 = vdwg.mxu0
        %4505 = vmatpush.bf16.msra.mxu0 %v3407
        %4506 = vmatpush.bf16.msra.mxu0 %v3399
        %4507 = vmatpush.bf16.msra.mxu0 %v3391
        %4508 = vmatpush.bf16.msra.mxu0 %v3383
        %4509 = vmatpush.bf16.msra.mxu0 %v3375
        %4510 = vmatpush.bf16.msra.mxu0 %v3367
        %4511 = vmatpush.bf16.msra.mxu0 %v3359
        %4512 = vmatpush.bf16.msra.mxu0 %v3351
        %4513 = vmatmul.bf16.gmra.mxu0 %v1863
        %v4514 = vpop.f32.mrf.mxu0
        %v4515 = vadd.f32 %v4502, %v4514
        %v4516 = vpop.f32.mrf.mxu0
        %4517 = vdwg.mxu0
        %4518 = vmatpush.bf16.msra.mxu0 %v3471
        %4519 = vmatpush.bf16.msra.mxu0 %v3463
        %4520 = vmatpush.bf16.msra.mxu0 %v3455
        %4521 = vmatpush.bf16.msra.mxu0 %v3447
        %4522 = vmatpush.bf16.msra.mxu0 %v3439
        %4523 = vmatpush.bf16.msra.mxu0 %v3431
        %4524 = vmatpush.bf16.msra.mxu0 %v3423
        %4525 = vmatpush.bf16.msra.mxu0 %v3415
        %4526 = vmatmul.bf16.gmra.mxu0 %v1864
        %v4527 = vpop.f32.mrf.mxu0
        %v4528 = vadd.f32 %v4515, %v4527
        %v4529 = vpop.f32.mrf.mxu0
        %4530 = vdwg.mxu0
        %4531 = vmatpush.bf16.msra.mxu0 %v3535
        %4532 = vmatpush.bf16.msra.mxu0 %v3527
        %4533 = vmatpush.bf16.msra.mxu0 %v3519
        %4534 = vmatpush.bf16.msra.mxu0 %v3511
        %4535 = vmatpush.bf16.msra.mxu0 %v3503
        %4536 = vmatpush.bf16.msra.mxu0 %v3495
        %4537 = vmatpush.bf16.msra.mxu0 %v3487
        %4538 = vmatpush.bf16.msra.mxu0 %v3479
        %4539 = vmatmul.bf16.gmra.mxu0 %v1865
        %v4540 = vpop.f32.mrf.mxu0
        %v4541 = vadd.f32 %v4528, %v4540
        %v4542 = vpop.f32.mrf.mxu0
        %4543 = vdwg.mxu0
        %4544 = vmatpush.bf16.msra.mxu0 %v3599
        %4545 = vmatpush.bf16.msra.mxu0 %v3591
        %4546 = vmatpush.bf16.msra.mxu0 %v3583
        %4547 = vmatpush.bf16.msra.mxu0 %v3575
        %4548 = vmatpush.bf16.msra.mxu0 %v3567
        %4549 = vmatpush.bf16.msra.mxu0 %v3559
        %4550 = vmatpush.bf16.msra.mxu0 %v3551
        %4551 = vmatpush.bf16.msra.mxu0 %v3543
        %4552 = vmatmul.bf16.gmra.mxu0 %v1866
        %v4553 = vpop.f32.mrf.mxu0
        %v4554 = vadd.f32 %v4541, %v4553
        %v4555 = vpop.f32.mrf.mxu0
        %4556 = vdwg.mxu0
        %4557 = vmatpush.bf16.msra.mxu0 %v3663
        %4558 = vmatpush.bf16.msra.mxu0 %v3655
        %4559 = vmatpush.bf16.msra.mxu0 %v3647
        %4560 = vmatpush.bf16.msra.mxu0 %v3639
        %4561 = vmatpush.bf16.msra.mxu0 %v3631
        %4562 = vmatpush.bf16.msra.mxu0 %v3623
        %4563 = vmatpush.bf16.msra.mxu0 %v3615
        %4564 = vmatpush.bf16.msra.mxu0 %v3607
        %4565 = vmatmul.bf16.gmra.mxu0 %v1867
        %v4566 = vpop.f32.mrf.mxu0
        %v4567 = vadd.f32 %v4554, %v4566
        %v4568 = vpop.f32.mrf.mxu0
        %4569 = vdwg.mxu0
        %4570 = vmatpush.bf16.msra.mxu0 %v3280
        %4571 = vmatpush.bf16.msra.mxu0 %v3272
        %4572 = vmatpush.bf16.msra.mxu0 %v3264
        %4573 = vmatpush.bf16.msra.mxu0 %v3256
        %4574 = vmatpush.bf16.msra.mxu0 %v3248
        %4575 = vmatpush.bf16.msra.mxu0 %v3240
        %4576 = vmatpush.bf16.msra.mxu0 %v3232
        %4577 = vmatpush.bf16.msra.mxu0 %v3224
        %4578 = vmatmul.bf16.gmra.mxu0 %v1861
        %v4579 = vpop.f32.mrf.mxu0
        %v4580 = vadd.f32 0.0, %v4579
        %v4581 = vpop.f32.mrf.mxu0
        %4582 = vdwg.mxu0
        %4583 = vmatpush.bf16.msra.mxu0 %v3344
        %4584 = vmatpush.bf16.msra.mxu0 %v3336
        %4585 = vmatpush.bf16.msra.mxu0 %v3328
        %4586 = vmatpush.bf16.msra.mxu0 %v3320
        %4587 = vmatpush.bf16.msra.mxu0 %v3312
        %4588 = vmatpush.bf16.msra.mxu0 %v3304
        %4589 = vmatpush.bf16.msra.mxu0 %v3296
        %4590 = vmatpush.bf16.msra.mxu0 %v3288
        %4591 = vmatmul.bf16.gmra.mxu0 %v1862
        %v4592 = vpop.f32.mrf.mxu0
        %v4593 = vadd.f32 %v4580, %v4592
        %v4594 = vpop.f32.mrf.mxu0
        %4595 = vdwg.mxu0
        %4596 = vmatpush.bf16.msra.mxu0 %v3408
        %4597 = vmatpush.bf16.msra.mxu0 %v3400
        %4598 = vmatpush.bf16.msra.mxu0 %v3392
        %4599 = vmatpush.bf16.msra.mxu0 %v3384
        %4600 = vmatpush.bf16.msra.mxu0 %v3376
        %4601 = vmatpush.bf16.msra.mxu0 %v3368
        %4602 = vmatpush.bf16.msra.mxu0 %v3360
        %4603 = vmatpush.bf16.msra.mxu0 %v3352
        %4604 = vmatmul.bf16.gmra.mxu0 %v1863
        %v4605 = vpop.f32.mrf.mxu0
        %v4606 = vadd.f32 %v4593, %v4605
        %v4607 = vpop.f32.mrf.mxu0
        %4608 = vdwg.mxu0
        %4609 = vmatpush.bf16.msra.mxu0 %v3472
        %4610 = vmatpush.bf16.msra.mxu0 %v3464
        %4611 = vmatpush.bf16.msra.mxu0 %v3456
        %4612 = vmatpush.bf16.msra.mxu0 %v3448
        %4613 = vmatpush.bf16.msra.mxu0 %v3440
        %4614 = vmatpush.bf16.msra.mxu0 %v3432
        %4615 = vmatpush.bf16.msra.mxu0 %v3424
        %4616 = vmatpush.bf16.msra.mxu0 %v3416
        %4617 = vmatmul.bf16.gmra.mxu0 %v1864
        %v4618 = vpop.f32.mrf.mxu0
        %v4619 = vadd.f32 %v4606, %v4618
        %v4620 = vpop.f32.mrf.mxu0
        %4621 = vdwg.mxu0
        %4622 = vmatpush.bf16.msra.mxu0 %v3536
        %4623 = vmatpush.bf16.msra.mxu0 %v3528
        %4624 = vmatpush.bf16.msra.mxu0 %v3520
        %4625 = vmatpush.bf16.msra.mxu0 %v3512
        %4626 = vmatpush.bf16.msra.mxu0 %v3504
        %4627 = vmatpush.bf16.msra.mxu0 %v3496
        %4628 = vmatpush.bf16.msra.mxu0 %v3488
        %4629 = vmatpush.bf16.msra.mxu0 %v3480
        %4630 = vmatmul.bf16.gmra.mxu0 %v1865
        %v4631 = vpop.f32.mrf.mxu0
        %v4632 = vadd.f32 %v4619, %v4631
        %v4633 = vpop.f32.mrf.mxu0
        %4634 = vdwg.mxu0
        %4635 = vmatpush.bf16.msra.mxu0 %v3600
        %4636 = vmatpush.bf16.msra.mxu0 %v3592
        %4637 = vmatpush.bf16.msra.mxu0 %v3584
        %4638 = vmatpush.bf16.msra.mxu0 %v3576
        %4639 = vmatpush.bf16.msra.mxu0 %v3568
        %4640 = vmatpush.bf16.msra.mxu0 %v3560
        %4641 = vmatpush.bf16.msra.mxu0 %v3552
        %4642 = vmatpush.bf16.msra.mxu0 %v3544
        %4643 = vmatmul.bf16.gmra.mxu0 %v1866
        %v4644 = vpop.f32.mrf.mxu0
        %v4645 = vadd.f32 %v4632, %v4644
        %v4646 = vpop.f32.mrf.mxu0
        %4647 = vdwg.mxu0
        %4648 = vmatpush.bf16.msra.mxu0 %v3664
        %4649 = vmatpush.bf16.msra.mxu0 %v3656
        %4650 = vmatpush.bf16.msra.mxu0 %v3648
        %4651 = vmatpush.bf16.msra.mxu0 %v3640
        %4652 = vmatpush.bf16.msra.mxu0 %v3632
        %4653 = vmatpush.bf16.msra.mxu0 %v3624
        %4654 = vmatpush.bf16.msra.mxu0 %v3616
        %4655 = vmatpush.bf16.msra.mxu0 %v3608
        %4656 = vmatmul.bf16.gmra.mxu0 %v1867
        %v4657 = vpop.f32.mrf.mxu0
        %v4658 = vadd.f32 %v4645, %v4657
        %v4659 = vpop.f32.mrf.mxu0
        %4660 = vdwg.mxu0
        %4661 = vmatpush.bf16.msra.mxu0 %v3281
        %4662 = vmatpush.bf16.msra.mxu0 %v3273
        %4663 = vmatpush.bf16.msra.mxu0 %v3265
        %4664 = vmatpush.bf16.msra.mxu0 %v3257
        %4665 = vmatpush.bf16.msra.mxu0 %v3249
        %4666 = vmatpush.bf16.msra.mxu0 %v3241
        %4667 = vmatpush.bf16.msra.mxu0 %v3233
        %4668 = vmatpush.bf16.msra.mxu0 %v3225
        %4669 = vmatmul.bf16.gmra.mxu0 %v1861
        %v4670 = vpop.f32.mrf.mxu0
        %v4671 = vadd.f32 0.0, %v4670
        %v4672 = vpop.f32.mrf.mxu0
        %4673 = vdwg.mxu0
        %4674 = vmatpush.bf16.msra.mxu0 %v3345
        %4675 = vmatpush.bf16.msra.mxu0 %v3337
        %4676 = vmatpush.bf16.msra.mxu0 %v3329
        %4677 = vmatpush.bf16.msra.mxu0 %v3321
        %4678 = vmatpush.bf16.msra.mxu0 %v3313
        %4679 = vmatpush.bf16.msra.mxu0 %v3305
        %4680 = vmatpush.bf16.msra.mxu0 %v3297
        %4681 = vmatpush.bf16.msra.mxu0 %v3289
        %4682 = vmatmul.bf16.gmra.mxu0 %v1862
        %v4683 = vpop.f32.mrf.mxu0
        %v4684 = vadd.f32 %v4671, %v4683
        %v4685 = vpop.f32.mrf.mxu0
        %4686 = vdwg.mxu0
        %4687 = vmatpush.bf16.msra.mxu0 %v3409
        %4688 = vmatpush.bf16.msra.mxu0 %v3401
        %4689 = vmatpush.bf16.msra.mxu0 %v3393
        %4690 = vmatpush.bf16.msra.mxu0 %v3385
        %4691 = vmatpush.bf16.msra.mxu0 %v3377
        %4692 = vmatpush.bf16.msra.mxu0 %v3369
        %4693 = vmatpush.bf16.msra.mxu0 %v3361
        %4694 = vmatpush.bf16.msra.mxu0 %v3353
        %4695 = vmatmul.bf16.gmra.mxu0 %v1863
        %v4696 = vpop.f32.mrf.mxu0
        %v4697 = vadd.f32 %v4684, %v4696
        %v4698 = vpop.f32.mrf.mxu0
        %4699 = vdwg.mxu0
        %4700 = vmatpush.bf16.msra.mxu0 %v3473
        %4701 = vmatpush.bf16.msra.mxu0 %v3465
        %4702 = vmatpush.bf16.msra.mxu0 %v3457
        %4703 = vmatpush.bf16.msra.mxu0 %v3449
        %4704 = vmatpush.bf16.msra.mxu0 %v3441
        %4705 = vmatpush.bf16.msra.mxu0 %v3433
        %4706 = vmatpush.bf16.msra.mxu0 %v3425
        %4707 = vmatpush.bf16.msra.mxu0 %v3417
        %4708 = vmatmul.bf16.gmra.mxu0 %v1864
        %v4709 = vpop.f32.mrf.mxu0
        %v4710 = vadd.f32 %v4697, %v4709
        %v4711 = vpop.f32.mrf.mxu0
        %4712 = vdwg.mxu0
        %4713 = vmatpush.bf16.msra.mxu0 %v3537
        %4714 = vmatpush.bf16.msra.mxu0 %v3529
        %4715 = vmatpush.bf16.msra.mxu0 %v3521
        %4716 = vmatpush.bf16.msra.mxu0 %v3513
        %4717 = vmatpush.bf16.msra.mxu0 %v3505
        %4718 = vmatpush.bf16.msra.mxu0 %v3497
        %4719 = vmatpush.bf16.msra.mxu0 %v3489
        %4720 = vmatpush.bf16.msra.mxu0 %v3481
        %4721 = vmatmul.bf16.gmra.mxu0 %v1865
        %v4722 = vpop.f32.mrf.mxu0
        %v4723 = vadd.f32 %v4710, %v4722
        %v4724 = vpop.f32.mrf.mxu0
        %4725 = vdwg.mxu0
        %4726 = vmatpush.bf16.msra.mxu0 %v3601
        %4727 = vmatpush.bf16.msra.mxu0 %v3593
        %4728 = vmatpush.bf16.msra.mxu0 %v3585
        %4729 = vmatpush.bf16.msra.mxu0 %v3577
        %4730 = vmatpush.bf16.msra.mxu0 %v3569
        %4731 = vmatpush.bf16.msra.mxu0 %v3561
        %4732 = vmatpush.bf16.msra.mxu0 %v3553
        %4733 = vmatpush.bf16.msra.mxu0 %v3545
        %4734 = vmatmul.bf16.gmra.mxu0 %v1866
        %v4735 = vpop.f32.mrf.mxu0
        %v4736 = vadd.f32 %v4723, %v4735
        %v4737 = vpop.f32.mrf.mxu0
        %4738 = vdwg.mxu0
        %4739 = vmatpush.bf16.msra.mxu0 %v3665
        %4740 = vmatpush.bf16.msra.mxu0 %v3657
        %4741 = vmatpush.bf16.msra.mxu0 %v3649
        %4742 = vmatpush.bf16.msra.mxu0 %v3641
        %4743 = vmatpush.bf16.msra.mxu0 %v3633
        %4744 = vmatpush.bf16.msra.mxu0 %v3625
        %4745 = vmatpush.bf16.msra.mxu0 %v3617
        %4746 = vmatpush.bf16.msra.mxu0 %v3609
        %4747 = vmatmul.bf16.gmra.mxu0 %v1867
        %v4748 = vpop.f32.mrf.mxu0
        %v4749 = vadd.f32 %v4736, %v4748
        %v4750 = vpop.f32.mrf.mxu0
        %4751 = vdwg.mxu0
        %4752 = vmatpush.bf16.msra.mxu0 %v3282
        %4753 = vmatpush.bf16.msra.mxu0 %v3274
        %4754 = vmatpush.bf16.msra.mxu0 %v3266
        %4755 = vmatpush.bf16.msra.mxu0 %v3258
        %4756 = vmatpush.bf16.msra.mxu0 %v3250
        %4757 = vmatpush.bf16.msra.mxu0 %v3242
        %4758 = vmatpush.bf16.msra.mxu0 %v3234
        %4759 = vmatpush.bf16.msra.mxu0 %v3226
        %4760 = vmatmul.bf16.gmra.mxu0 %v1861
        %v4761 = vpop.f32.mrf.mxu0
        %v4762 = vadd.f32 0.0, %v4761
        %v4763 = vpop.f32.mrf.mxu0
        %4764 = vdwg.mxu0
        %4765 = vmatpush.bf16.msra.mxu0 %v3346
        %4766 = vmatpush.bf16.msra.mxu0 %v3338
        %4767 = vmatpush.bf16.msra.mxu0 %v3330
        %4768 = vmatpush.bf16.msra.mxu0 %v3322
        %4769 = vmatpush.bf16.msra.mxu0 %v3314
        %4770 = vmatpush.bf16.msra.mxu0 %v3306
        %4771 = vmatpush.bf16.msra.mxu0 %v3298
        %4772 = vmatpush.bf16.msra.mxu0 %v3290
        %4773 = vmatmul.bf16.gmra.mxu0 %v1862
        %v4774 = vpop.f32.mrf.mxu0
        %v4775 = vadd.f32 %v4762, %v4774
        %v4776 = vpop.f32.mrf.mxu0
        %4777 = vdwg.mxu0
        %4778 = vmatpush.bf16.msra.mxu0 %v3410
        %4779 = vmatpush.bf16.msra.mxu0 %v3402
        %4780 = vmatpush.bf16.msra.mxu0 %v3394
        %4781 = vmatpush.bf16.msra.mxu0 %v3386
        %4782 = vmatpush.bf16.msra.mxu0 %v3378
        %4783 = vmatpush.bf16.msra.mxu0 %v3370
        %4784 = vmatpush.bf16.msra.mxu0 %v3362
        %4785 = vmatpush.bf16.msra.mxu0 %v3354
        %4786 = vmatmul.bf16.gmra.mxu0 %v1863
        %v4787 = vpop.f32.mrf.mxu0
        %v4788 = vadd.f32 %v4775, %v4787
        %v4789 = vpop.f32.mrf.mxu0
        %4790 = vdwg.mxu0
        %4791 = vmatpush.bf16.msra.mxu0 %v3474
        %4792 = vmatpush.bf16.msra.mxu0 %v3466
        %4793 = vmatpush.bf16.msra.mxu0 %v3458
        %4794 = vmatpush.bf16.msra.mxu0 %v3450
        %4795 = vmatpush.bf16.msra.mxu0 %v3442
        %4796 = vmatpush.bf16.msra.mxu0 %v3434
        %4797 = vmatpush.bf16.msra.mxu0 %v3426
        %4798 = vmatpush.bf16.msra.mxu0 %v3418
        %4799 = vmatmul.bf16.gmra.mxu0 %v1864
        %v4800 = vpop.f32.mrf.mxu0
        %v4801 = vadd.f32 %v4788, %v4800
        %v4802 = vpop.f32.mrf.mxu0
        %4803 = vdwg.mxu0
        %4804 = vmatpush.bf16.msra.mxu0 %v3538
        %4805 = vmatpush.bf16.msra.mxu0 %v3530
        %4806 = vmatpush.bf16.msra.mxu0 %v3522
        %4807 = vmatpush.bf16.msra.mxu0 %v3514
        %4808 = vmatpush.bf16.msra.mxu0 %v3506
        %4809 = vmatpush.bf16.msra.mxu0 %v3498
        %4810 = vmatpush.bf16.msra.mxu0 %v3490
        %4811 = vmatpush.bf16.msra.mxu0 %v3482
        %4812 = vmatmul.bf16.gmra.mxu0 %v1865
        %v4813 = vpop.f32.mrf.mxu0
        %v4814 = vadd.f32 %v4801, %v4813
        %v4815 = vpop.f32.mrf.mxu0
        %4816 = vdwg.mxu0
        %4817 = vmatpush.bf16.msra.mxu0 %v3602
        %4818 = vmatpush.bf16.msra.mxu0 %v3594
        %4819 = vmatpush.bf16.msra.mxu0 %v3586
        %4820 = vmatpush.bf16.msra.mxu0 %v3578
        %4821 = vmatpush.bf16.msra.mxu0 %v3570
        %4822 = vmatpush.bf16.msra.mxu0 %v3562
        %4823 = vmatpush.bf16.msra.mxu0 %v3554
        %4824 = vmatpush.bf16.msra.mxu0 %v3546
        %4825 = vmatmul.bf16.gmra.mxu0 %v1866
        %v4826 = vpop.f32.mrf.mxu0
        %v4827 = vadd.f32 %v4814, %v4826
        %v4828 = vpop.f32.mrf.mxu0
        %4829 = vdwg.mxu0
        %4830 = vmatpush.bf16.msra.mxu0 %v3666
        %4831 = vmatpush.bf16.msra.mxu0 %v3658
        %4832 = vmatpush.bf16.msra.mxu0 %v3650
        %4833 = vmatpush.bf16.msra.mxu0 %v3642
        %4834 = vmatpush.bf16.msra.mxu0 %v3634
        %4835 = vmatpush.bf16.msra.mxu0 %v3626
        %4836 = vmatpush.bf16.msra.mxu0 %v3618
        %4837 = vmatpush.bf16.msra.mxu0 %v3610
        %4838 = vmatmul.bf16.gmra.mxu0 %v1867
        %v4839 = vpop.f32.mrf.mxu0
        %v4840 = vadd.f32 %v4827, %v4839
        %v4841 = vpop.f32.mrf.mxu0
        %4842 = vdwg.mxu0
        %v4851 = vrot.slane %v4294, 6
        %v4852 = vrot.slane %v4385, 4
        %v4853 = vrot.slane %v4476, 2
        %v4854 = vrot.slane %v4658, 6
        %v4855 = vrot.slane %v4749, 4
        %v4856 = vrot.slane %v4840, 2
        %vm4857 = vcmask 1041408
        %v4858 = vsel %vm4857, %v4203, %v4851
        %vm4859 = vcmask 1045508
        %v4860 = vsel %vm4859, %v4852, %v4853
        %vm4861 = vcmask 1043456
        %v4862 = vsel %vm4861, %v4858, %v4860
        %v4863 = vsel %vm4857, %v4567, %v4854
        %v4864 = vsel %vm4859, %v4855, %v4856
        %v4865 = vsel %vm4861, %v4863, %v4864
        %v4868 = vadd.f32 %v1408, %v4862
        %v4869 = vadd.f32 %v1409, %v4865
        %4870 = vst [vmem:[#allocation2] sm:$0xff] %v4868
        %4871 = vst [vmem:[#allocation2 + $0x8] sm:$0xff] %v4869
        %p4872 = scmp.eq.s32.totalorder %s24, 2
        // Predicated region
        $region57: #{mnih2016_forward.5} parent=51 // pred_check
          %p4873 = pneg %p4872
        $region58: #{mnih2016_forward.5} parent=51 // pred_check_branch
          %4875 = sbr.rel (%p4873) target = $region60
        $region59: #{mnih2016_forward.5} parent=51 // pred_region
          %v4876 = vld [vmem:[#allocation2] sm:$0xff]
          %v4877 = vld [vmem:[#allocation2 + $0x8] sm:$0xff]
          %v4878 = vxor.u32 %v4876, 2147483648
          %v4879 = vmul.f32 %v4878, 1.442695
          %v4880 = vpow.pop %v4879
          %v4881 = vadd.f32 %v4880, 1.0
          %v4882 = vrcp.pop %v4881
          %v4883 = vmul.f32 %v4881, %v4882
          %v4884 = vsub.f32 1.0, %v4883
          %v4885 = vmul.f32 %v4882, %v4884
          %v4886 = vadd.f32 %v4882, %v4885
          %vm4887 = vweird.f32 %v4881
          %vm4888 = vweird.f32 %v4882
          %vm4889 = vmor %vm4887, %vm4888
          %v4890 = vsel %vm4889, %v4882, %v4886
          %v4891 = vand.u32 2147483647, %v4881
          %vm4892 = vcmp.eq.f32.partialorder %v4891, 8.507059e+37
          %v4893 = vand.u32 %v4881, 2147483648
          %v4894 = vor.u32 1.1754944e-38, %v4893
          %v4895 = vsel %vm4892, %v4894, %v4890
          %v4896 = vmul.f32 1.0, %v4895
          %v4898 = vrot.slane %v4876, 4
          %v4900 = vxor.u32 %v4898, 2147483648
          %v4901 = vmul.f32 %v4900, 1.442695
          %v4902 = vpow.pop %v4901
          %v4903 = vadd.f32 %v4902, 1.0
          %v4904 = vrcp.pop %v4903
          %v4905 = vmul.f32 %v4903, %v4904
          %v4906 = vsub.f32 1.0, %v4905
          %v4907 = vmul.f32 %v4904, %v4906
          %v4908 = vadd.f32 %v4904, %v4907
          %vm4909 = vweird.f32 %v4903
          %vm4910 = vweird.f32 %v4904
          %vm4911 = vmor %vm4909, %vm4910
          %v4912 = vsel %vm4911, %v4904, %v4908
          %v4913 = vand.u32 2147483647, %v4903
          %vm4914 = vcmp.eq.f32.partialorder %v4913, 8.507059e+37
          %v4915 = vand.u32 %v4903, 2147483648
          %v4916 = vor.u32 1.1754944e-38, %v4915
          %v4917 = vsel %vm4914, %v4916, %v4912
          %v4918 = vmul.f32 1.0, %v4917
          %v4919 = vtanh.pop %v4877
          %v4921 = vrot.slane %v4877, 4
          %v4923 = vxor.u32 %v4921, 2147483648
          %v4924 = vmul.f32 %v4923, 1.442695
          %v4925 = vpow.pop %v4924
          %v4926 = vadd.f32 %v4925, 1.0
          %v4927 = vrcp.pop %v4926
          %v4928 = vmul.f32 %v4926, %v4927
          %v4929 = vsub.f32 1.0, %v4928
          %v4930 = vmul.f32 %v4927, %v4929
          %v4931 = vadd.f32 %v4927, %v4930
          %vm4932 = vweird.f32 %v4926
          %vm4933 = vweird.f32 %v4927
          %vm4934 = vmor %vm4932, %vm4933
          %v4935 = vsel %vm4934, %v4927, %v4931
          %v4936 = vand.u32 2147483647, %v4926
          %vm4937 = vcmp.eq.f32.partialorder %v4936, 8.507059e+37
          %v4938 = vand.u32 %v4926, 2147483648
          %v4939 = vor.u32 1.1754944e-38, %v4938
          %v4940 = vsel %vm4937, %v4939, %v4935
          %v4941 = vmul.f32 1.0, %v4940
          %v4942 = vld [vmem:[%s3] sm:$0xf]
          %v4943 = vmul.f32 %v4918, %v4942
          %v4944 = vmul.f32 %v4896, %v4919
          %v4945 = vadd.f32 %v4943, %v4944
          %v4946 = vtanh.pop %v4945
          %v4947 = vmul.f32 %v4941, %v4946
          %4948 = vst [vmem:[#allocation5] sm:$0xf] %v4945
          %4949 = vst [vmem:[#allocation3] sm:$0xf] %v4947
          %4951 = vst [vmem:[#allocation1] ss:$4 sm:$0xff] %v4947
          %v4952 = vld.sshfl [vmem:[#allocation1] sm:$0xff pattern:$0x73625140]
          %v4953 = vld.sshfl [vmem:[#allocation1 + $0x8] sm:$0xff pattern:$0x73625140]
          %v4956 = vpack.c.bf16 %v4952, %v4952
          %v4957 = vpack.c.bf16 %v4953, %v4953
          %v4958 = vld [vmem:[%s6] sm:$0xf]
          %v4959 = vld [vmem:[%s6 + $0x4] sm:$0xf]
          %v4960 = vld [vmem:[%s6 + $0x8] sm:$0xf]
          %v4961 = vld [vmem:[%s6 + $0xc] sm:$0xf]
          %v4962 = vld [vmem:[%s6 + $0x10] sm:$0xf]
          %v4963 = vld [vmem:[%s6 + $0x14] sm:$0xf]
          %v4964 = vld [vmem:[%s6 + $0x18] sm:$0xf]
          %v4965 = vld [vmem:[%s6 + $0x1c] sm:$0xf]
          %v4966 = vld [vmem:[%s6 + $0x20] sm:$0xf]
          %v4967 = vld [vmem:[%s6 + $0x24] sm:$0xf]
          %v4968 = vld [vmem:[%s6 + $0x28] sm:$0xf]
          %v4969 = vld [vmem:[%s6 + $0x2c] sm:$0xf]
          %v4970 = vld [vmem:[%s6 + $0x30] sm:$0xf]
          %v4971 = vld [vmem:[%s6 + $0x34] sm:$0xf]
          %v4972 = vld [vmem:[%s6 + $0x38] sm:$0xf]
          %v4973 = vld [vmem:[%s6 + $0x3c] sm:$0xf]
          %v4974 = vld [vmem:[%s6 + $0x40] sm:$0xf]
          %v4975 = vld [vmem:[%s6 + $0x44] sm:$0xf]
          %v4976 = vld [vmem:[%s6 + $0x48] sm:$0xf]
          %v4977 = vld [vmem:[%s6 + $0x4c] sm:$0xf]
          %v4978 = vld [vmem:[%s6 + $0x50] sm:$0xf]
          %v4979 = vld [vmem:[%s6 + $0x54] sm:$0xf]
          %v4980 = vld [vmem:[%s6 + $0x58] sm:$0xf]
          %v4981 = vld [vmem:[%s6 + $0x5c] sm:$0xf]
          %v4982 = vld [vmem:[%s6 + $0x60] sm:$0xf]
          %v4983 = vld [vmem:[%s6 + $0x64] sm:$0xf]
          %v4984 = vld [vmem:[%s6 + $0x68] sm:$0xf]
          %v4985 = vld [vmem:[%s6 + $0x6c] sm:$0xf]
          %v4986 = vld [vmem:[%s6 + $0x70] sm:$0xf]
          %v4987 = vld [vmem:[%s6 + $0x74] sm:$0xf]
          %v4988 = vld [vmem:[%s6 + $0x78] sm:$0xf]
          %v4989 = vld [vmem:[%s6 + $0x7c] sm:$0xf]
          %v4990 = vld [vmem:[%s7] sm:$0x1]
          %v4992 = vperm.slane %v4990, 0
          %v5026 = vunpack.c.l.b16 %v4958
          %v5027 = vunpack.c.l.b16 %v4959
          %v5028 = vunpack.c.l.b16 %v4960
          %v5029 = vunpack.c.l.b16 %v4961
          %v5030 = vunpack.c.l.b16 %v4962
          %v5031 = vunpack.c.l.b16 %v4963
          %v5032 = vunpack.c.l.b16 %v4964
          %v5033 = vunpack.c.l.b16 %v4965
          %v5034 = vunpack.c.l.b16 %v4966
          %v5035 = vunpack.c.l.b16 %v4967
          %v5036 = vunpack.c.l.b16 %v4968
          %v5037 = vunpack.c.l.b16 %v4969
          %v5038 = vunpack.c.l.b16 %v4970
          %v5039 = vunpack.c.l.b16 %v4971
          %v5040 = vunpack.c.l.b16 %v4972
          %v5041 = vunpack.c.l.b16 %v4973
          %v5042 = vunpack.c.l.b16 %v4974
          %v5043 = vunpack.c.l.b16 %v4975
          %v5044 = vunpack.c.l.b16 %v4976
          %v5045 = vunpack.c.l.b16 %v4977
          %v5046 = vunpack.c.l.b16 %v4978
          %v5047 = vunpack.c.l.b16 %v4979
          %v5048 = vunpack.c.l.b16 %v4980
          %v5049 = vunpack.c.l.b16 %v4981
          %v5050 = vunpack.c.l.b16 %v4982
          %v5051 = vunpack.c.l.b16 %v4983
          %v5052 = vunpack.c.l.b16 %v4984
          %v5053 = vunpack.c.l.b16 %v4985
          %v5054 = vunpack.c.l.b16 %v4986
          %v5055 = vunpack.c.l.b16 %v4987
          %v5056 = vunpack.c.l.b16 %v4988
          %v5057 = vunpack.c.l.b16 %v4989
          %v5058 = vpack.c.b16 %v5027, %v5026
          %v5059 = vpack.c.b16 %v5029, %v5028
          %v5060 = vpack.c.b16 %v5031, %v5030
          %v5061 = vpack.c.b16 %v5033, %v5032
          %v5062 = vpack.c.b16 %v5035, %v5034
          %v5063 = vpack.c.b16 %v5037, %v5036
          %v5064 = vpack.c.b16 %v5039, %v5038
          %v5065 = vpack.c.b16 %v5041, %v5040
          %v5066 = vpack.c.b16 %v5043, %v5042
          %v5067 = vpack.c.b16 %v5045, %v5044
          %v5068 = vpack.c.b16 %v5047, %v5046
          %v5069 = vpack.c.b16 %v5049, %v5048
          %v5070 = vpack.c.b16 %v5051, %v5050
          %v5071 = vpack.c.b16 %v5053, %v5052
          %v5072 = vpack.c.b16 %v5055, %v5054
          %v5073 = vpack.c.b16 %v5057, %v5056
          %5090 = vmatpush.bf16.msra.mxu0 %v5065
          %5091 = vmatpush.bf16.msra.mxu0 %v5064
          %5092 = vmatpush.bf16.msra.mxu0 %v5063
          %5093 = vmatpush.bf16.msra.mxu0 %v5062
          %5094 = vmatpush.bf16.msra.mxu0 %v5061
          %5095 = vmatpush.bf16.msra.mxu0 %v5060
          %5096 = vmatpush.bf16.msra.mxu0 %v5059
          %5097 = vmatpush.bf16.msra.mxu0 %v5058
          %5098 = vmatmul.bf16.gmra.mxu0 %v4956
          %v5099 = vpop.f32.mrf.mxu0
          %v5100 = vadd.f32 %v4992, %v5099
          %v5101 = vpop.f32.mrf.mxu0
          %5102 = vdwg.mxu0
          %5103 = vmatpush.bf16.msra.mxu0 %v5073
          %5104 = vmatpush.bf16.msra.mxu0 %v5072
          %5105 = vmatpush.bf16.msra.mxu0 %v5071
          %5106 = vmatpush.bf16.msra.mxu0 %v5070
          %5107 = vmatpush.bf16.msra.mxu0 %v5069
          %5108 = vmatpush.bf16.msra.mxu0 %v5068
          %5109 = vmatpush.bf16.msra.mxu0 %v5067
          %5110 = vmatpush.bf16.msra.mxu0 %v5066
          %5111 = vmatmul.bf16.gmra.mxu0 %v4957
          %v5112 = vpop.f32.mrf.mxu0
          %v5113 = vadd.f32 %v5100, %v5112
          %v5114 = vpop.f32.mrf.mxu0
          %5115 = vdwg.mxu0
          %5116 = vst [vmem:[%s8] sm:$0x3] %v5113
        $region60: #{mnih2016_forward.5} parent=51 // pred_fallthru
          _
        // Predicated region
        $region61: #{mnih2016_forward.5} parent=51 // pred_check
          %p5117 = pneg %p215
        $region62: #{mnih2016_forward.5} parent=51 // pred_check_branch
          %5119 = sbr.rel (%p5117) target = $region64
        $region63: #{mnih2016_forward.5} parent=51 // pred_region
          _
        $region64: #{mnih2016_forward.5} parent=51 // pred_fallthru
          _
        // Predicated region
        $region65: #{mnih2016_forward.5} parent=51 // pred_check
          %p5120 = pneg %p236
        $region66: #{mnih2016_forward.5} parent=51 // pred_check_branch
          %5122 = sbr.rel (%p5120) target = $region68
        $region67: #{mnih2016_forward.5} parent=51 // pred_region
          %5124 = vsyncadd [#allocation4], 0
          %s5126 = sshll.u32 [#allocation3], 4
          %s5127 = int_to_ptr.vmem [resolvable:$true] %s5126
          %s5128 = sshll.u32 %s9, 4
          %s5129 = int_to_ptr.hbm [resolvable:$true] %s5128
          %5131 = dma.vmem_to_hbm [thread:$0]  %s5127, 64, %s5129, [#allocation4]
        $region68: #{mnih2016_forward.5} parent=51 // pred_fallthru
          _
        // Predicated region
        $region69: #{mnih2016_forward.5} parent=51 // pred_check
          %p5132 = pneg %p257
        $region70: #{mnih2016_forward.5} parent=51 // pred_check_branch
          %5134 = sbr.rel (%p5132) target = $region72
        $region71: #{mnih2016_forward.5} parent=51 // pred_region
          %5136 = vsyncadd [#allocation6], 0
          %s5138 = sshll.u32 [#allocation5], 4
          %s5139 = int_to_ptr.vmem [resolvable:$true] %s5138
          %s5140 = sshll.u32 %s10, 4
          %s5141 = int_to_ptr.hbm [resolvable:$true] %s5140
          %5143 = dma.vmem_to_hbm [thread:$0]  %s5139, 64, %s5141, [#allocation6]
        $region72: #{mnih2016_forward.5} parent=51 // pred_fallthru
          _
        // Predicated region
        $region73: #{mnih2016_forward.5} parent=51 // pred_check
          %p5144 = pneg %p215
        $region74: #{mnih2016_forward.5} parent=51 // pred_check_branch
          %5146 = sbr.rel (%p5144) target = $region76
        $region75: #{mnih2016_forward.5} parent=51 // pred_region
          _
        $region76: #{mnih2016_forward.5} parent=51 // pred_fallthru
          _
        // Predicated region
        $region77: #{mnih2016_forward.5} parent=51 // pred_check
          %p5147 = pneg %p236
        $region78: #{mnih2016_forward.5} parent=51 // pred_check_branch
          %5149 = sbr.rel (%p5147) target = $region80
        $region79: #{mnih2016_forward.5} parent=51 // pred_region
          %5151 = dma.done [#allocation4], 64
        $region80: #{mnih2016_forward.5} parent=51 // pred_fallthru
          _
        // Predicated region
        $region81: #{mnih2016_forward.5} parent=51 // pred_check
          %p5152 = pneg %p257
        $region82: #{mnih2016_forward.5} parent=51 // pred_check_branch
          %5154 = sbr.rel (%p5152) target = $region84
        $region83: #{mnih2016_forward.5} parent=51 // pred_region
          %5156 = dma.done [#allocation6], 64
        $region84: #{mnih2016_forward.5} parent=51 // pred_fallthru
          _
      $region52: #{mnih2016_forward.5} parent=5 // pred_fallthru
        _
      %p5157 = scmp.le.s32.totalorder 2, %s19
      // Predicated region
      $region85: #{mnih2016_forward.5} parent=5 // pred_check
        %p5158 = pneg %p5157
      $region86: #{mnih2016_forward.5} parent=5 // pred_check_branch
        %5160 = sbr.rel (%p5158) target = $region88
      $region87: #{mnih2016_forward.5} parent=5 // pred_region
        %s5161 = ssub.s32 %s19, 2
      $region88: #{mnih2016_forward.5} parent=5 // pred_fallthru
        _
    $region6: #{mnih2016_forward.5} parent=1 // loop_footer
      %s23 = sadd.s32 1, %s19
    $region7: #{mnih2016_forward.5} parent=1 // loop_footer_branch
      %18 = sbr.rel target = $region3
    $region8: #{mnih2016_forward.5} parent=1 // loop_exit
      _
    %5162 = vsyncpa [#allocation4], 1
    %s5163 = scalar_lea.sflag [#allocation4], 1
    %5164 = vsyncpa %s5163, 1
    %5165 = vsyncpa [#allocation6], 1

</llo_original>
